<compile_context>
chip_gen: v7x
topology: tpu7x:2x2x1
jax: 0.10.0
libtpu: 0.0.40
codegen_flags: <defaults>
</compile_context>

<pallas_src>
import functools
import math

import jax
import jax.numpy as jnp
from jax.experimental import pallas as pl
from jax.experimental.pallas import tpu as pltpu


# ------------------------------ fused kernel --------------------------------

def _decoder_layer_kernel(x_ref, y_ref, xb_ref, yb_ref, ln_ref,
                          wqkv_ref, bqkv_ref, wo_ref, bo_ref,
                          w1_ref, b1_ref, w2_ref, b2_ref,
                          o_ref, *, n_heads, eps):
    D = x_ref.shape[-1]
    dh = D // n_heads
    scale = 1.0 / math.sqrt(dh)

    x = x_ref[0].astype(jnp.float32)            # (L, D)
    y = y_ref[0].astype(jnp.float32)            # (S, D)
    xb = xb_ref[0].astype(jnp.float32)          # (L, L) additive mask bias
    yb = yb_ref[0].astype(jnp.float32)          # (L, S) additive mask bias

    # Load all (tiny) parameters once; they stay resident for the whole step.
    ln = ln_ref[...].astype(jnp.float32)        # (6, D): g1,b1,g2,b2,g3,b3
    wqkv = wqkv_ref[...].astype(jnp.float32)    # (D, 3D) fused Q|K|V weights
    bqkv = bqkv_ref[...].astype(jnp.float32)    # (1, 3D)
    wo = wo_ref[...].astype(jnp.float32)        # (H, dh, D) output proj, per-head rows
    bo = bo_ref[...].astype(jnp.float32)        # (1, D)
    w1 = w1_ref[...].astype(jnp.float32)        # (D, F)
    b1 = b1_ref[...].astype(jnp.float32)        # (1, F)
    w2 = w2_ref[...].astype(jnp.float32)        # (F, D)
    b2 = b2_ref[...].astype(jnp.float32)        # (1, D)

    def layer_norm(t, idx):
        g = ln[idx:idx + 1]                     # (1, D) -> broadcasts over rows
        b = ln[idx + 1:idx + 2]
        mu = jnp.mean(t, axis=-1, keepdims=True)
        tc = t - mu
        var = jnp.mean(tc * tc, axis=-1, keepdims=True)
        return tc * jax.lax.rsqrt(var + eps) * g + b

    def attend(q, k, v, bias):
        # q: (Lq, D), k/v: (Lk, D), bias: (Lq, Lk).  Heads unrolled statically;
        # head-merge is fused into the output projection accumulation.
        out = bo                                # (1, D), broadcasts on first add
        for h in range(n_heads):
            lo = h * dh
            qh = q[:, lo:lo + dh]
            kh = k[:, lo:lo + dh]
            vh = v[:, lo:lo + dh]
            # q @ k^T without materializing a transposed copy.
            s = jax.lax.dot_general(
                qh, kh, (((1,), (1,)), ((), ())),
                preferred_element_type=jnp.float32) * scale + bias
            m = jnp.max(s, axis=-1, keepdims=True)
            p = jnp.exp(s - m)
            denom = jnp.sum(p, axis=-1, keepdims=True)
            p = p * pl.reciprocal(denom, approx=True)          # EUP slot
            oh = jnp.dot(p, vh, preferred_element_type=jnp.float32)   # (Lq, dh)
            out = out + jnp.dot(oh, wo[h],
                                preferred_element_type=jnp.float32)   # (Lq, D)
        return out

    # ---- self-attention sublayer: h1 = x + Wo(Attn(LN1(x))) -----------------
    h1n = layer_norm(x, 0)
    qkv = jnp.dot(h1n, wqkv, preferred_element_type=jnp.float32) + bqkv  # (L, 3D)
    h1 = attend(qkv[:, 0:D], qkv[:, D:2 * D], qkv[:, 2 * D:3 * D], xb) + x

    # ---- cross-attention sublayer: queries from LN2(h1), keys/values from y.
    # The reference forward() reuses self.attention's weights here.
    h2n = layer_norm(h1, 2)
    q2 = jnp.dot(h2n, wqkv[:, 0:D],
                 preferred_element_type=jnp.float32) + bqkv[:, 0:D]
    kv = jnp.dot(y, wqkv[:, D:3 * D],
                 preferred_element_type=jnp.float32) + bqkv[:, D:3 * D]
    h2 = attend(q2, kv[:, 0:D], kv[:, D:2 * D], yb) + h1

    # ---- feed-forward sublayer: h3 = h2 + W2 relu(W1 LN3(h2)) ---------------
    h3n = layer_norm(h2, 4)
    ff = jnp.maximum(jnp.dot(h3n, w1, preferred_element_type=jnp.float32) + b1,
                     0.0)
    out = jnp.dot(ff, w2, preferred_element_type=jnp.float32) + b2 + h2

    o_ref[0] = out.astype(o_ref.dtype)


# ------------------------------ host wrapper ---------------------------------

def _mask_to_bias(mask, B, Lq, Lk):
    """mask: None, (B,1,Lk) or (B,Lq,Lk); nonzero/True = may be attended."""
    if mask is None:
        return jnp.zeros((B, Lq, Lk), jnp.float32)
    m = jnp.broadcast_to(mask.astype(bool), (B, Lq, Lk))
    return jnp.where(m, 0.0, -1e9).astype(jnp.float32)


def transformer_decoder_layer(x, x_mask, y, y_mask, params, *, n_heads,
                              eps=1e-5):
    B, L, D = x.shape
    S = y.shape[1]
    F = params["w1"].shape[1]
    dh = D // n_heads

    xb = _mask_to_bias(x_mask, B, L, L)
    yb = _mask_to_bias(y_mask, B, L, S)

    # Fuse Q/K/V projections into one (D, 3D) matmul inside the kernel.
    wqkv = jnp.concatenate([params["wq"], params["wk"], params["wv"]], axis=1)
    bqkv = jnp.concatenate([params["bq"], params["bk"],
                            params["bv"]]).reshape(1, 3 * D)
    ln = jnp.stack([params["ln1_g"], params["ln1_b"],
                    params["ln2_g"], params["ln2_b"],
                    params["ln3_g"], params["ln3_b"]])            # (6, D)
    wo = params["wo"].reshape(n_heads, dh, D)   # per-head row blocks of Wo
    bo = params["bo"].reshape(1, D)
    w1, b1 = params["w1"], params["b1"].reshape(1, F)
    w2, b2 = params["w2"], params["b2"].reshape(1, D)

    # Advisory cost estimate for the XLA scheduler around the custom call.
    matmul_flops = 2 * B * (
        L * D * 3 * D            # fused self QKV
        + 2 * L * L * D          # self attention (scores + weighted sum)
        + L * D * D              # self output projection
        + L * D * D              # cross Q
        + S * D * 2 * D          # cross KV
        + 2 * L * S * D          # cross attention
        + L * D * D              # cross output projection
        + 2 * L * D * F)         # feed-forward
    weight_bytes = sum(int(a.size) * a.dtype.itemsize
                       for a in (ln, wqkv, bqkv, wo, bo, w1, b1, w2, b2))
    io_bytes = 4 * (x.size + y.size + xb.size + yb.size + x.size)
    cost = pl.CostEstimate(flops=int(matmul_flops),
                           transcendentals=int(B * n_heads * (L * L + L * S)),
                           bytes_accessed=int(io_bytes + weight_bytes))

    per_batch = lambda shape: pl.BlockSpec(shape, lambda b: (b, 0, 0))
    const2d = lambda shape: pl.BlockSpec(shape, lambda b: (0, 0))
    const3d = lambda shape: pl.BlockSpec(shape, lambda b: (0, 0, 0))

    return pl.pallas_call(
        functools.partial(_decoder_layer_kernel, n_heads=n_heads, eps=eps),
        out_shape=jax.ShapeDtypeStruct((B, L, D), x.dtype),
        grid=(B,),
        in_specs=[
            per_batch((1, L, D)),        # x
            per_batch((1, S, D)),        # y (memory)
            per_batch((1, L, L)),        # additive self-attention mask bias
            per_batch((1, L, S)),        # additive cross-attention mask bias
            const2d((6, D)),             # layer-norm gammas/betas
            const2d((D, 3 * D)),         # fused wqkv
            const2d((1, 3 * D)),         # fused bqkv
            const3d((n_heads, dh, D)),   # wo (per-head row blocks)
            const2d((1, D)),             # bo
            const2d((D, F)),             # ff w1
            const2d((1, F)),             # ff b1
            const2d((F, D)),             # ff w2
            const2d((1, D)),             # ff b2
        ],
        out_specs=per_batch((1, L, D)),
        compiler_params=pltpu.CompilerParams(
            dimension_semantics=("parallel",)),   # batch across TCs (v7x)
        cost_estimate=cost,
    )(x, y, xb, yb, ln, wqkv, bqkv, wo, bo, w1, b1, w2, b2)


# --------------------------- parameter creation ------------------------------

def _uniform(key, shape, fan_in, dtype=jnp.float32):
    bound = 1.0 / math.sqrt(fan_in)
    return jax.random.uniform(key, shape, dtype, minval=-bound, maxval=bound)


def init_params(key, size, ff_size):
    D, F = size, ff_size
    ks = jax.random.split(key, 12)
    p = {
        "wq": _uniform(ks[0], (D, D), D),  "bq": _uniform(ks[1], (D,), D),
        "wk": _uniform(ks[2], (D, D), D),  "bk": _uniform(ks[3], (D,), D),
        "wv": _uniform(ks[4], (D, D), D),  "bv": _uniform(ks[5], (D,), D),
        "wo": _uniform(ks[6], (D, D), D),  "bo": _uniform(ks[7], (D,), D),
        "w1": _uniform(ks[8], (D, F), D),  "b1": _uniform(ks[9], (F,), D),
        "w2": _uniform(ks[10], (F, D), F), "b2": _uniform(ks[11], (D,), F),
        "ln1_g": jnp.ones((D,), jnp.float32), "ln1_b": jnp.zeros((D,), jnp.float32),
        "ln2_g": jnp.ones((D,), jnp.float32), "ln2_b": jnp.zeros((D,), jnp.float32),
        "ln3_g": jnp.ones((D,), jnp.float32), "ln3_b": jnp.zeros((D,), jnp.float32),
    }
    return p


# ------------------------ pure-JAX reference (check) --------------------------

def reference_forward(x, x_mask, y, y_mask, p, *, n_heads, eps=1e-5):
    B, L, D = x.shape
    S = y.shape[1]
    dh = D // n_heads

    def ln(t, g, b):
        mu = jnp.mean(t, axis=-1, keepdims=True)
        var = jnp.mean((t - mu) ** 2, axis=-1, keepdims=True)
        return (t - mu) / jnp.sqrt(var + eps) * g + b

    def mha(q_in, kv_in, bias):
        Lq, Lk = q_in.shape[1], kv_in.shape[1]
        q = q_in @ p["wq"] + p["bq"]
        k = kv_in @ p["wk"] + p["bk"]
        v = kv_in @ p["wv"] + p["bv"]
        qh = q.reshape(B, Lq, n_heads, dh).transpose(0, 2, 1, 3)
        kh = k.reshape(B, Lk, n_heads, dh).transpose(0, 2, 1, 3)
        vh = v.reshape(B, Lk, n_heads, dh).transpose(0, 2, 1, 3)
        s = jnp.einsum("bhqd,bhkd->bhqk", qh, kh) / math.sqrt(dh) + bias[:, None]
        w = jax.nn.softmax(s, axis=-1)
        o = jnp.einsum("bhqk,bhkd->bhqd", w, vh)
        o = o.transpose(0, 2, 1, 3).reshape(B, Lq, D)
        return o @ p["wo"] + p["bo"]

    xb = _mask_to_bias(x_mask, B, L, L)
    yb = _mask_to_bias(y_mask, B, L, S)
    h1n = ln(x, p["ln1_g"], p["ln1_b"])
    h1 = mha(h1n, h1n, xb) + x
    h2n = ln(h1, p["ln2_g"], p["ln2_b"])
    h2 = mha(h2n, y, yb) + h1          # reference forward reuses self.attention
    h3n = ln(h2, p["ln3_g"], p["ln3_b"])
    ff = jnp.maximum(h3n @ p["w1"] + p["b1"], 0.0) @ p["w2"] + p["b2"]
    return ff + h2


# ---------------------------------- main --------------------------------------

if __name__ == "__main__":
    key = jax.random.PRNGKey(0)
    B, L, S = 2, 8, 12                 # batch, target length, memory length
    size, n_heads = 32, 8
    ff_size = 4 * size

    k_x, k_y, k_p = jax.random.split(key, 3)
    x = jax.random.normal(k_x, (B, L, size), jnp.float32)
    y = jax.random.normal(k_y, (B, S, size), jnp.float32)
    # Padding-style masks: 1 = valid (may be attended).  Mask the last two
    # memory positions of batch 1 to exercise the masking path.
    x_mask = jnp.ones((B, 1, L), jnp.float32)
    y_mask = jnp.ones((B, 1, S), jnp.float32).at[1, 0, S - 2:].set(0.0)

    params = init_params(k_p, size, ff_size)

    out = transformer_decoder_layer(x, x_mask, y, y_mask, params,
                                    n_heads=n_heads)
    jax.block_until_ready(out)
    assert out.shape == (B, L, size) and out.dtype == jnp.float32

    ref = reference_forward(x, x_mask, y, y_mask, params, n_heads=n_heads)
    max_err = float(jnp.max(jnp.abs(out - ref)))
    assert max_err < 5e-2, f"kernel/reference mismatch: max abs err {max_err}"
    print("KERNEL_OK")
</pallas_src>

<mosaic_0001>
module attributes {stable_mosaic.version = 11 : i64} {
  func.func @_decoder_layer_kernel(%arg0: i32, %arg1: memref<1x8x32xf32, #tpu.memory_space<vmem>>, %arg2: memref<1x12x32xf32, #tpu.memory_space<vmem>>, %arg3: memref<1x8x8xf32, #tpu.memory_space<vmem>>, %arg4: memref<1x8x12xf32, #tpu.memory_space<vmem>>, %arg5: memref<6x32xf32, #tpu.memory_space<vmem>>, %arg6: memref<32x96xf32, #tpu.memory_space<vmem>>, %arg7: memref<1x96xf32, #tpu.memory_space<vmem>>, %arg8: memref<8x4x32xf32, #tpu.memory_space<vmem>>, %arg9: memref<1x32xf32, #tpu.memory_space<vmem>>, %arg10: memref<32x128xf32, #tpu.memory_space<vmem>>, %arg11: memref<1x128xf32, #tpu.memory_space<vmem>>, %arg12: memref<128x32xf32, #tpu.memory_space<vmem>>, %arg13: memref<1x32xf32, #tpu.memory_space<vmem>>, %arg14: memref<1x8x32xf32, #tpu.memory_space<vmem>>) attributes {dimension_semantics = [#tpu.dimension_semantics<parallel>], iteration_bounds = array<i64: 2>, scalar_prefetch = 0 : i64, scratch_operands = 0 : i64, tpu.core_type = #tpu.core_type<tc>, window_params = [{transform_indices = @transform_0, window_bounds = array<i64: 1, 8, 32>}, {transform_indices = @transform_1, window_bounds = array<i64: 1, 12, 32>}, {transform_indices = @transform_2, window_bounds = array<i64: 1, 8, 8>}, {transform_indices = @transform_3, window_bounds = array<i64: 1, 8, 12>}, {pipeline_mode = #tpu.pipeline_mode<synchronous>, transform_indices = @transform_4, window_bounds = array<i64: 6, 32>}, {pipeline_mode = #tpu.pipeline_mode<synchronous>, transform_indices = @transform_5, window_bounds = array<i64: 32, 96>}, {pipeline_mode = #tpu.pipeline_mode<synchronous>, transform_indices = @transform_6, window_bounds = array<i64: 1, 96>}, {pipeline_mode = #tpu.pipeline_mode<synchronous>, transform_indices = @transform_7, window_bounds = array<i64: 8, 4, 32>}, {pipeline_mode = #tpu.pipeline_mode<synchronous>, transform_indices = @transform_8, window_bounds = array<i64: 1, 32>}, {pipeline_mode = #tpu.pipeline_mode<synchronous>, transform_indices = @transform_9, window_bounds = array<i64: 32, 128>}, {pipeline_mode = #tpu.pipeline_mode<synchronous>, transform_indices = @transform_10, window_bounds = array<i64: 1, 128>}, {pipeline_mode = #tpu.pipeline_mode<synchronous>, transform_indices = @transform_11, window_bounds = array<i64: 128, 32>}, {pipeline_mode = #tpu.pipeline_mode<synchronous>, transform_indices = @transform_12, window_bounds = array<i64: 1, 32>}, {transform_indices = @transform_13, window_bounds = array<i64: 1, 8, 32>}]} {
    %c0 = arith.constant 0 : index
    %c0_0 = arith.constant 0 : index
    %c0_1 = arith.constant 0 : index
    %0 = vector.load %arg1[%c0, %c0_0, %c0_1] : memref<1x8x32xf32, #tpu.memory_space<vmem>>, vector<1x8x32xf32>
    %1 = vector.shape_cast %0 : vector<1x8x32xf32> to vector<8x32xf32>
    %c0_2 = arith.constant 0 : index
    %c0_3 = arith.constant 0 : index
    %c0_4 = arith.constant 0 : index
    %2 = vector.load %arg2[%c0_2, %c0_3, %c0_4] : memref<1x12x32xf32, #tpu.memory_space<vmem>>, vector<1x12x32xf32>
    %3 = vector.shape_cast %2 : vector<1x12x32xf32> to vector<12x32xf32>
    %c0_5 = arith.constant 0 : index
    %c0_6 = arith.constant 0 : index
    %c0_7 = arith.constant 0 : index
    %4 = vector.load %arg3[%c0_5, %c0_6, %c0_7] : memref<1x8x8xf32, #tpu.memory_space<vmem>>, vector<1x8x8xf32>
    %5 = vector.shape_cast %4 : vector<1x8x8xf32> to vector<8x8xf32>
    %c0_8 = arith.constant 0 : index
    %c0_9 = arith.constant 0 : index
    %c0_10 = arith.constant 0 : index
    %6 = vector.load %arg4[%c0_8, %c0_9, %c0_10] : memref<1x8x12xf32, #tpu.memory_space<vmem>>, vector<1x8x12xf32>
    %7 = vector.shape_cast %6 : vector<1x8x12xf32> to vector<8x12xf32>
    %c0_11 = arith.constant 0 : index
    %c0_12 = arith.constant 0 : index
    %8 = vector.load %arg5[%c0_11, %c0_12] : memref<6x32xf32, #tpu.memory_space<vmem>>, vector<6x32xf32>
    %c0_13 = arith.constant 0 : index
    %c0_14 = arith.constant 0 : index
    %9 = vector.load %arg6[%c0_13, %c0_14] : memref<32x96xf32, #tpu.memory_space<vmem>>, vector<32x96xf32>
    %c0_15 = arith.constant 0 : index
    %c0_16 = arith.constant 0 : index
    %10 = vector.load %arg7[%c0_15, %c0_16] : memref<1x96xf32, #tpu.memory_space<vmem>>, vector<1x96xf32>
    %c0_17 = arith.constant 0 : index
    %c0_18 = arith.constant 0 : index
    %c0_19 = arith.constant 0 : index
    %11 = vector.load %arg8[%c0_17, %c0_18, %c0_19] : memref<8x4x32xf32, #tpu.memory_space<vmem>>, vector<8x4x32xf32>
    %c0_20 = arith.constant 0 : index
    %c0_21 = arith.constant 0 : index
    %12 = vector.load %arg9[%c0_20, %c0_21] : memref<1x32xf32, #tpu.memory_space<vmem>>, vector<1x32xf32>
    %c0_22 = arith.constant 0 : index
    %c0_23 = arith.constant 0 : index
    %13 = vector.load %arg10[%c0_22, %c0_23] : memref<32x128xf32, #tpu.memory_space<vmem>>, vector<32x128xf32>
    %c0_24 = arith.constant 0 : index
    %c0_25 = arith.constant 0 : index
    %14 = vector.load %arg11[%c0_24, %c0_25] : memref<1x128xf32, #tpu.memory_space<vmem>>, vector<1x128xf32>
    %c0_26 = arith.constant 0 : index
    %c0_27 = arith.constant 0 : index
    %15 = vector.load %arg12[%c0_26, %c0_27] : memref<128x32xf32, #tpu.memory_space<vmem>>, vector<128x32xf32>
    %c0_28 = arith.constant 0 : index
    %c0_29 = arith.constant 0 : index
    %16 = vector.load %arg13[%c0_28, %c0_29] : memref<1x32xf32, #tpu.memory_space<vmem>>, vector<1x32xf32>
    %17 = vector.extract_strided_slice %8 {offsets = [0, 0], sizes = [1, 32], strides = [1, 1]} : vector<6x32xf32> to vector<1x32xf32>
    %18 = vector.extract_strided_slice %8 {offsets = [1, 0], sizes = [1, 32], strides = [1, 1]} : vector<6x32xf32> to vector<1x32xf32>
    %cst = arith.constant dense<0.000000e+00> : vector<8xf32>
    %19 = vector.multi_reduction <add>, %1, %cst [1] : vector<8x32xf32> to vector<8xf32>
    %20 = vector.shape_cast %19 : vector<8xf32> to vector<8x1xf32>
    %cst_30 = arith.constant 3.200000e+01 : f32
    %21 = vector.broadcast %cst_30 : f32 to vector<8x1xf32>
    %22 = arith.divf %20, %21 : vector<8x1xf32>
    %23 = vector.broadcast %22 : vector<8x1xf32> to vector<8x32xf32>
    %24 = arith.subf %1, %23 : vector<8x32xf32>
    %25 = arith.mulf %24, %24 : vector<8x32xf32>
    %cst_31 = arith.constant dense<0.000000e+00> : vector<8xf32>
    %26 = vector.multi_reduction <add>, %25, %cst_31 [1] : vector<8x32xf32> to vector<8xf32>
    %27 = vector.shape_cast %26 : vector<8xf32> to vector<8x1xf32>
    %cst_32 = arith.constant 3.200000e+01 : f32
    %28 = vector.broadcast %cst_32 : f32 to vector<8x1xf32>
    %29 = arith.divf %27, %28 : vector<8x1xf32>
    %cst_33 = arith.constant 9.99999974E-6 : f32
    %30 = vector.broadcast %cst_33 : f32 to vector<8x1xf32>
    %31 = arith.addf %29, %30 : vector<8x1xf32>
    %32 = math.rsqrt %31 : vector<8x1xf32>
    %33 = vector.broadcast %32 : vector<8x1xf32> to vector<8x32xf32>
    %34 = arith.mulf %24, %33 : vector<8x32xf32>
    %35 = vector.broadcast %17 : vector<1x32xf32> to vector<8x32xf32>
    %36 = arith.mulf %34, %35 : vector<8x32xf32>
    %37 = vector.broadcast %18 : vector<1x32xf32> to vector<8x32xf32>
    %38 = arith.addf %36, %37 : vector<8x32xf32>
    %cst_34 = arith.constant dense<0.000000e+00> : vector<8x96xf32>
    %39 = tpu.matmul %38, %9, %cst_34 {dimension_numbers = #tpu.dot_dimension_numbers<[1], [0], [0], [1], [0, 0, 1, 1], [], []>} : vector<8x32xf32>, vector<32x96xf32>, vector<8x96xf32> -> vector<8x96xf32>
    %40 = vector.broadcast %10 : vector<1x96xf32> to vector<8x96xf32>
    %41 = arith.addf %39, %40 : vector<8x96xf32>
    %42 = vector.extract_strided_slice %41 {offsets = [0, 0], sizes = [8, 32], strides = [1, 1]} : vector<8x96xf32> to vector<8x32xf32>
    %43 = vector.extract_strided_slice %41 {offsets = [0, 32], sizes = [8, 32], strides = [1, 1]} : vector<8x96xf32> to vector<8x32xf32>
    %44 = vector.extract_strided_slice %41 {offsets = [0, 64], sizes = [8, 32], strides = [1, 1]} : vector<8x96xf32> to vector<8x32xf32>
    %45 = vector.extract_strided_slice %42 {offsets = [0, 0], sizes = [8, 4], strides = [1, 1]} : vector<8x32xf32> to vector<8x4xf32>
    %46 = vector.extract_strided_slice %43 {offsets = [0, 0], sizes = [8, 4], strides = [1, 1]} : vector<8x32xf32> to vector<8x4xf32>
    %47 = vector.extract_strided_slice %44 {offsets = [0, 0], sizes = [8, 4], strides = [1, 1]} : vector<8x32xf32> to vector<8x4xf32>
    %cst_35 = arith.constant dense<0.000000e+00> : vector<8x8xf32>
    %48 = tpu.matmul %45, %46, %cst_35 {dimension_numbers = #tpu.dot_dimension_numbers<[1], [1], [0], [0], [0, 0, 1, 0], [], []>} : vector<8x4xf32>, vector<8x4xf32>, vector<8x8xf32> -> vector<8x8xf32>
    %cst_36 = arith.constant 5.000000e-01 : f32
    %49 = vector.broadcast %cst_36 : f32 to vector<8x8xf32>
    %50 = arith.mulf %48, %49 : vector<8x8xf32>
    %51 = arith.addf %50, %5 : vector<8x8xf32>
    %cst_37 = arith.constant dense<0xFF800000> : vector<8xf32>
    %52 = vector.multi_reduction <maximumf>, %51, %cst_37 [1] : vector<8x8xf32> to vector<8xf32>
    %53 = vector.shape_cast %52 : vector<8xf32> to vector<8x1xf32>
    %54 = vector.broadcast %53 : vector<8x1xf32> to vector<8x8xf32>
    %55 = arith.subf %51, %54 : vector<8x8xf32>
    %56 = math.exp %55 : vector<8x8xf32>
    %cst_38 = arith.constant dense<0.000000e+00> : vector<8xf32>
    %57 = vector.multi_reduction <add>, %56, %cst_38 [1] : vector<8x8xf32> to vector<8xf32>
    %58 = vector.shape_cast %57 : vector<8xf32> to vector<8x1xf32>
    %59 = tpu.reciprocal %58 {approx = true} : vector<8x1xf32> -> vector<8x1xf32>
    %60 = vector.broadcast %59 : vector<8x1xf32> to vector<8x8xf32>
    %61 = arith.mulf %56, %60 : vector<8x8xf32>
    %cst_39 = arith.constant dense<0.000000e+00> : vector<8x4xf32>
    %62 = tpu.matmul %61, %47, %cst_39 {dimension_numbers = #tpu.dot_dimension_numbers<[1], [0], [0], [1], [0, 0, 1, 1], [], []>} : vector<8x8xf32>, vector<8x4xf32>, vector<8x4xf32> -> vector<8x4xf32>
    %63 = vector.extract_strided_slice %11 {offsets = [0, 0, 0], sizes = [1, 4, 32], strides = [1, 1, 1]} : vector<8x4x32xf32> to vector<1x4x32xf32>
    %64 = vector.shape_cast %63 : vector<1x4x32xf32> to vector<4x32xf32>
    %cst_40 = arith.constant dense<0.000000e+00> : vector<8x32xf32>
    %65 = tpu.matmul %62, %64, %cst_40 {dimension_numbers = #tpu.dot_dimension_numbers<[1], [0], [0], [1], [0, 0, 1, 1], [], []>} : vector<8x4xf32>, vector<4x32xf32>, vector<8x32xf32> -> vector<8x32xf32>
    %66 = vector.broadcast %12 : vector<1x32xf32> to vector<8x32xf32>
    %67 = arith.addf %66, %65 : vector<8x32xf32>
    %68 = vector.extract_strided_slice %42 {offsets = [0, 4], sizes = [8, 4], strides = [1, 1]} : vector<8x32xf32> to vector<8x4xf32>
    %69 = vector.extract_strided_slice %43 {offsets = [0, 4], sizes = [8, 4], strides = [1, 1]} : vector<8x32xf32> to vector<8x4xf32>
    %70 = vector.extract_strided_slice %44 {offsets = [0, 4], sizes = [8, 4], strides = [1, 1]} : vector<8x32xf32> to vector<8x4xf32>
    %cst_41 = arith.constant dense<0.000000e+00> : vector<8x8xf32>
    %71 = tpu.matmul %68, %69, %cst_41 {dimension_numbers = #tpu.dot_dimension_numbers<[1], [1], [0], [0], [0, 0, 1, 0], [], []>} : vector<8x4xf32>, vector<8x4xf32>, vector<8x8xf32> -> vector<8x8xf32>
    %cst_42 = arith.constant 5.000000e-01 : f32
    %72 = vector.broadcast %cst_42 : f32 to vector<8x8xf32>
    %73 = arith.mulf %71, %72 : vector<8x8xf32>
    %74 = arith.addf %73, %5 : vector<8x8xf32>
    %cst_43 = arith.constant dense<0xFF800000> : vector<8xf32>
    %75 = vector.multi_reduction <maximumf>, %74, %cst_43 [1] : vector<8x8xf32> to vector<8xf32>
    %76 = vector.shape_cast %75 : vector<8xf32> to vector<8x1xf32>
    %77 = vector.broadcast %76 : vector<8x1xf32> to vector<8x8xf32>
    %78 = arith.subf %74, %77 : vector<8x8xf32>
    %79 = math.exp %78 : vector<8x8xf32>
    %cst_44 = arith.constant dense<0.000000e+00> : vector<8xf32>
    %80 = vector.multi_reduction <add>, %79, %cst_44 [1] : vector<8x8xf32> to vector<8xf32>
    %81 = vector.shape_cast %80 : vector<8xf32> to vector<8x1xf32>
    %82 = tpu.reciprocal %81 {approx = true} : vector<8x1xf32> -> vector<8x1xf32>
    %83 = vector.broadcast %82 : vector<8x1xf32> to vector<8x8xf32>
    %84 = arith.mulf %79, %83 : vector<8x8xf32>
    %cst_45 = arith.constant dense<0.000000e+00> : vector<8x4xf32>
    %85 = tpu.matmul %84, %70, %cst_45 {dimension_numbers = #tpu.dot_dimension_numbers<[1], [0], [0], [1], [0, 0, 1, 1], [], []>} : vector<8x8xf32>, vector<8x4xf32>, vector<8x4xf32> -> vector<8x4xf32>
    %86 = vector.extract_strided_slice %11 {offsets = [1, 0, 0], sizes = [1, 4, 32], strides = [1, 1, 1]} : vector<8x4x32xf32> to vector<1x4x32xf32>
    %87 = vector.shape_cast %86 : vector<1x4x32xf32> to vector<4x32xf32>
    %cst_46 = arith.constant dense<0.000000e+00> : vector<8x32xf32>
    %88 = tpu.matmul %85, %87, %cst_46 {dimension_numbers = #tpu.dot_dimension_numbers<[1], [0], [0], [1], [0, 0, 1, 1], [], []>} : vector<8x4xf32>, vector<4x32xf32>, vector<8x32xf32> -> vector<8x32xf32>
    %89 = arith.addf %67, %88 : vector<8x32xf32>
    %90 = vector.extract_strided_slice %42 {offsets = [0, 8], sizes = [8, 4], strides = [1, 1]} : vector<8x32xf32> to vector<8x4xf32>
    %91 = vector.extract_strided_slice %43 {offsets = [0, 8], sizes = [8, 4], strides = [1, 1]} : vector<8x32xf32> to vector<8x4xf32>
    %92 = vector.extract_strided_slice %44 {offsets = [0, 8], sizes = [8, 4], strides = [1, 1]} : vector<8x32xf32> to vector<8x4xf32>
    %cst_47 = arith.constant dense<0.000000e+00> : vector<8x8xf32>
    %93 = tpu.matmul %90, %91, %cst_47 {dimension_numbers = #tpu.dot_dimension_numbers<[1], [1], [0], [0], [0, 0, 1, 0], [], []>} : vector<8x4xf32>, vector<8x4xf32>, vector<8x8xf32> -> vector<8x8xf32>
    %cst_48 = arith.constant 5.000000e-01 : f32
    %94 = vector.broadcast %cst_48 : f32 to vector<8x8xf32>
    %95 = arith.mulf %93, %94 : vector<8x8xf32>
    %96 = arith.addf %95, %5 : vector<8x8xf32>
    %cst_49 = arith.constant dense<0xFF800000> : vector<8xf32>
    %97 = vector.multi_reduction <maximumf>, %96, %cst_49 [1] : vector<8x8xf32> to vector<8xf32>
    %98 = vector.shape_cast %97 : vector<8xf32> to vector<8x1xf32>
    %99 = vector.broadcast %98 : vector<8x1xf32> to vector<8x8xf32>
    %100 = arith.subf %96, %99 : vector<8x8xf32>
    %101 = math.exp %100 : vector<8x8xf32>
    %cst_50 = arith.constant dense<0.000000e+00> : vector<8xf32>
    %102 = vector.multi_reduction <add>, %101, %cst_50 [1] : vector<8x8xf32> to vector<8xf32>
    %103 = vector.shape_cast %102 : vector<8xf32> to vector<8x1xf32>
    %104 = tpu.reciprocal %103 {approx = true} : vector<8x1xf32> -> vector<8x1xf32>
    %105 = vector.broadcast %104 : vector<8x1xf32> to vector<8x8xf32>
    %106 = arith.mulf %101, %105 : vector<8x8xf32>
    %cst_51 = arith.constant dense<0.000000e+00> : vector<8x4xf32>
    %107 = tpu.matmul %106, %92, %cst_51 {dimension_numbers = #tpu.dot_dimension_numbers<[1], [0], [0], [1], [0, 0, 1, 1], [], []>} : vector<8x8xf32>, vector<8x4xf32>, vector<8x4xf32> -> vector<8x4xf32>
    %108 = vector.extract_strided_slice %11 {offsets = [2, 0, 0], sizes = [1, 4, 32], strides = [1, 1, 1]} : vector<8x4x32xf32> to vector<1x4x32xf32>
    %109 = vector.shape_cast %108 : vector<1x4x32xf32> to vector<4x32xf32>
    %cst_52 = arith.constant dense<0.000000e+00> : vector<8x32xf32>
    %110 = tpu.matmul %107, %109, %cst_52 {dimension_numbers = #tpu.dot_dimension_numbers<[1], [0], [0], [1], [0, 0, 1, 1], [], []>} : vector<8x4xf32>, vector<4x32xf32>, vector<8x32xf32> -> vector<8x32xf32>
    %111 = arith.addf %89, %110 : vector<8x32xf32>
    %112 = vector.extract_strided_slice %42 {offsets = [0, 12], sizes = [8, 4], strides = [1, 1]} : vector<8x32xf32> to vector<8x4xf32>
    %113 = vector.extract_strided_slice %43 {offsets = [0, 12], sizes = [8, 4], strides = [1, 1]} : vector<8x32xf32> to vector<8x4xf32>
    %114 = vector.extract_strided_slice %44 {offsets = [0, 12], sizes = [8, 4], strides = [1, 1]} : vector<8x32xf32> to vector<8x4xf32>
    %cst_53 = arith.constant dense<0.000000e+00> : vector<8x8xf32>
    %115 = tpu.matmul %112, %113, %cst_53 {dimension_numbers = #tpu.dot_dimension_numbers<[1], [1], [0], [0], [0, 0, 1, 0], [], []>} : vector<8x4xf32>, vector<8x4xf32>, vector<8x8xf32> -> vector<8x8xf32>
    %cst_54 = arith.constant 5.000000e-01 : f32
    %116 = vector.broadcast %cst_54 : f32 to vector<8x8xf32>
    %117 = arith.mulf %115, %116 : vector<8x8xf32>
    %118 = arith.addf %117, %5 : vector<8x8xf32>
    %cst_55 = arith.constant dense<0xFF800000> : vector<8xf32>
    %119 = vector.multi_reduction <maximumf>, %118, %cst_55 [1] : vector<8x8xf32> to vector<8xf32>
    %120 = vector.shape_cast %119 : vector<8xf32> to vector<8x1xf32>
    %121 = vector.broadcast %120 : vector<8x1xf32> to vector<8x8xf32>
    %122 = arith.subf %118, %121 : vector<8x8xf32>
    %123 = math.exp %122 : vector<8x8xf32>
    %cst_56 = arith.constant dense<0.000000e+00> : vector<8xf32>
    %124 = vector.multi_reduction <add>, %123, %cst_56 [1] : vector<8x8xf32> to vector<8xf32>
    %125 = vector.shape_cast %124 : vector<8xf32> to vector<8x1xf32>
    %126 = tpu.reciprocal %125 {approx = true} : vector<8x1xf32> -> vector<8x1xf32>
    %127 = vector.broadcast %126 : vector<8x1xf32> to vector<8x8xf32>
    %128 = arith.mulf %123, %127 : vector<8x8xf32>
    %cst_57 = arith.constant dense<0.000000e+00> : vector<8x4xf32>
    %129 = tpu.matmul %128, %114, %cst_57 {dimension_numbers = #tpu.dot_dimension_numbers<[1], [0], [0], [1], [0, 0, 1, 1], [], []>} : vector<8x8xf32>, vector<8x4xf32>, vector<8x4xf32> -> vector<8x4xf32>
    %130 = vector.extract_strided_slice %11 {offsets = [3, 0, 0], sizes = [1, 4, 32], strides = [1, 1, 1]} : vector<8x4x32xf32> to vector<1x4x32xf32>
    %131 = vector.shape_cast %130 : vector<1x4x32xf32> to vector<4x32xf32>
    %cst_58 = arith.constant dense<0.000000e+00> : vector<8x32xf32>
    %132 = tpu.matmul %129, %131, %cst_58 {dimension_numbers = #tpu.dot_dimension_numbers<[1], [0], [0], [1], [0, 0, 1, 1], [], []>} : vector<8x4xf32>, vector<4x32xf32>, vector<8x32xf32> -> vector<8x32xf32>
    %133 = arith.addf %111, %132 : vector<8x32xf32>
    %134 = vector.extract_strided_slice %42 {offsets = [0, 16], sizes = [8, 4], strides = [1, 1]} : vector<8x32xf32> to vector<8x4xf32>
    %135 = vector.extract_strided_slice %43 {offsets = [0, 16], sizes = [8, 4], strides = [1, 1]} : vector<8x32xf32> to vector<8x4xf32>
    %136 = vector.extract_strided_slice %44 {offsets = [0, 16], sizes = [8, 4], strides = [1, 1]} : vector<8x32xf32> to vector<8x4xf32>
    %cst_59 = arith.constant dense<0.000000e+00> : vector<8x8xf32>
    %137 = tpu.matmul %134, %135, %cst_59 {dimension_numbers = #tpu.dot_dimension_numbers<[1], [1], [0], [0], [0, 0, 1, 0], [], []>} : vector<8x4xf32>, vector<8x4xf32>, vector<8x8xf32> -> vector<8x8xf32>
    %cst_60 = arith.constant 5.000000e-01 : f32
    %138 = vector.broadcast %cst_60 : f32 to vector<8x8xf32>
    %139 = arith.mulf %137, %138 : vector<8x8xf32>
    %140 = arith.addf %139, %5 : vector<8x8xf32>
    %cst_61 = arith.constant dense<0xFF800000> : vector<8xf32>
    %141 = vector.multi_reduction <maximumf>, %140, %cst_61 [1] : vector<8x8xf32> to vector<8xf32>
    %142 = vector.shape_cast %141 : vector<8xf32> to vector<8x1xf32>
    %143 = vector.broadcast %142 : vector<8x1xf32> to vector<8x8xf32>
    %144 = arith.subf %140, %143 : vector<8x8xf32>
    %145 = math.exp %144 : vector<8x8xf32>
    %cst_62 = arith.constant dense<0.000000e+00> : vector<8xf32>
    %146 = vector.multi_reduction <add>, %145, %cst_62 [1] : vector<8x8xf32> to vector<8xf32>
    %147 = vector.shape_cast %146 : vector<8xf32> to vector<8x1xf32>
    %148 = tpu.reciprocal %147 {approx = true} : vector<8x1xf32> -> vector<8x1xf32>
    %149 = vector.broadcast %148 : vector<8x1xf32> to vector<8x8xf32>
    %150 = arith.mulf %145, %149 : vector<8x8xf32>
    %cst_63 = arith.constant dense<0.000000e+00> : vector<8x4xf32>
    %151 = tpu.matmul %150, %136, %cst_63 {dimension_numbers = #tpu.dot_dimension_numbers<[1], [0], [0], [1], [0, 0, 1, 1], [], []>} : vector<8x8xf32>, vector<8x4xf32>, vector<8x4xf32> -> vector<8x4xf32>
    %152 = vector.extract_strided_slice %11 {offsets = [4, 0, 0], sizes = [1, 4, 32], strides = [1, 1, 1]} : vector<8x4x32xf32> to vector<1x4x32xf32>
    %153 = vector.shape_cast %152 : vector<1x4x32xf32> to vector<4x32xf32>
    %cst_64 = arith.constant dense<0.000000e+00> : vector<8x32xf32>
    %154 = tpu.matmul %151, %153, %cst_64 {dimension_numbers = #tpu.dot_dimension_numbers<[1], [0], [0], [1], [0, 0, 1, 1], [], []>} : vector<8x4xf32>, vector<4x32xf32>, vector<8x32xf32> -> vector<8x32xf32>
    %155 = arith.addf %133, %154 : vector<8x32xf32>
    %156 = vector.extract_strided_slice %42 {offsets = [0, 20], sizes = [8, 4], strides = [1, 1]} : vector<8x32xf32> to vector<8x4xf32>
    %157 = vector.extract_strided_slice %43 {offsets = [0, 20], sizes = [8, 4], strides = [1, 1]} : vector<8x32xf32> to vector<8x4xf32>
    %158 = vector.extract_strided_slice %44 {offsets = [0, 20], sizes = [8, 4], strides = [1, 1]} : vector<8x32xf32> to vector<8x4xf32>
    %cst_65 = arith.constant dense<0.000000e+00> : vector<8x8xf32>
    %159 = tpu.matmul %156, %157, %cst_65 {dimension_numbers = #tpu.dot_dimension_numbers<[1], [1], [0], [0], [0, 0, 1, 0], [], []>} : vector<8x4xf32>, vector<8x4xf32>, vector<8x8xf32> -> vector<8x8xf32>
    %cst_66 = arith.constant 5.000000e-01 : f32
    %160 = vector.broadcast %cst_66 : f32 to vector<8x8xf32>
    %161 = arith.mulf %159, %160 : vector<8x8xf32>
    %162 = arith.addf %161, %5 : vector<8x8xf32>
    %cst_67 = arith.constant dense<0xFF800000> : vector<8xf32>
    %163 = vector.multi_reduction <maximumf>, %162, %cst_67 [1] : vector<8x8xf32> to vector<8xf32>
    %164 = vector.shape_cast %163 : vector<8xf32> to vector<8x1xf32>
    %165 = vector.broadcast %164 : vector<8x1xf32> to vector<8x8xf32>
    %166 = arith.subf %162, %165 : vector<8x8xf32>
    %167 = math.exp %166 : vector<8x8xf32>
    %cst_68 = arith.constant dense<0.000000e+00> : vector<8xf32>
    %168 = vector.multi_reduction <add>, %167, %cst_68 [1] : vector<8x8xf32> to vector<8xf32>
    %169 = vector.shape_cast %168 : vector<8xf32> to vector<8x1xf32>
    %170 = tpu.reciprocal %169 {approx = true} : vector<8x1xf32> -> vector<8x1xf32>
    %171 = vector.broadcast %170 : vector<8x1xf32> to vector<8x8xf32>
    %172 = arith.mulf %167, %171 : vector<8x8xf32>
    %cst_69 = arith.constant dense<0.000000e+00> : vector<8x4xf32>
    %173 = tpu.matmul %172, %158, %cst_69 {dimension_numbers = #tpu.dot_dimension_numbers<[1], [0], [0], [1], [0, 0, 1, 1], [], []>} : vector<8x8xf32>, vector<8x4xf32>, vector<8x4xf32> -> vector<8x4xf32>
    %174 = vector.extract_strided_slice %11 {offsets = [5, 0, 0], sizes = [1, 4, 32], strides = [1, 1, 1]} : vector<8x4x32xf32> to vector<1x4x32xf32>
    %175 = vector.shape_cast %174 : vector<1x4x32xf32> to vector<4x32xf32>
    %cst_70 = arith.constant dense<0.000000e+00> : vector<8x32xf32>
    %176 = tpu.matmul %173, %175, %cst_70 {dimension_numbers = #tpu.dot_dimension_numbers<[1], [0], [0], [1], [0, 0, 1, 1], [], []>} : vector<8x4xf32>, vector<4x32xf32>, vector<8x32xf32> -> vector<8x32xf32>
    %177 = arith.addf %155, %176 : vector<8x32xf32>
    %178 = vector.extract_strided_slice %42 {offsets = [0, 24], sizes = [8, 4], strides = [1, 1]} : vector<8x32xf32> to vector<8x4xf32>
    %179 = vector.extract_strided_slice %43 {offsets = [0, 24], sizes = [8, 4], strides = [1, 1]} : vector<8x32xf32> to vector<8x4xf32>
    %180 = vector.extract_strided_slice %44 {offsets = [0, 24], sizes = [8, 4], strides = [1, 1]} : vector<8x32xf32> to vector<8x4xf32>
    %cst_71 = arith.constant dense<0.000000e+00> : vector<8x8xf32>
    %181 = tpu.matmul %178, %179, %cst_71 {dimension_numbers = #tpu.dot_dimension_numbers<[1], [1], [0], [0], [0, 0, 1, 0], [], []>} : vector<8x4xf32>, vector<8x4xf32>, vector<8x8xf32> -> vector<8x8xf32>
    %cst_72 = arith.constant 5.000000e-01 : f32
    %182 = vector.broadcast %cst_72 : f32 to vector<8x8xf32>
    %183 = arith.mulf %181, %182 : vector<8x8xf32>
    %184 = arith.addf %183, %5 : vector<8x8xf32>
    %cst_73 = arith.constant dense<0xFF800000> : vector<8xf32>
    %185 = vector.multi_reduction <maximumf>, %184, %cst_73 [1] : vector<8x8xf32> to vector<8xf32>
    %186 = vector.shape_cast %185 : vector<8xf32> to vector<8x1xf32>
    %187 = vector.broadcast %186 : vector<8x1xf32> to vector<8x8xf32>
    %188 = arith.subf %184, %187 : vector<8x8xf32>
    %189 = math.exp %188 : vector<8x8xf32>
    %cst_74 = arith.constant dense<0.000000e+00> : vector<8xf32>
    %190 = vector.multi_reduction <add>, %189, %cst_74 [1] : vector<8x8xf32> to vector<8xf32>
    %191 = vector.shape_cast %190 : vector<8xf32> to vector<8x1xf32>
    %192 = tpu.reciprocal %191 {approx = true} : vector<8x1xf32> -> vector<8x1xf32>
    %193 = vector.broadcast %192 : vector<8x1xf32> to vector<8x8xf32>
    %194 = arith.mulf %189, %193 : vector<8x8xf32>
    %cst_75 = arith.constant dense<0.000000e+00> : vector<8x4xf32>
    %195 = tpu.matmul %194, %180, %cst_75 {dimension_numbers = #tpu.dot_dimension_numbers<[1], [0], [0], [1], [0, 0, 1, 1], [], []>} : vector<8x8xf32>, vector<8x4xf32>, vector<8x4xf32> -> vector<8x4xf32>
    %196 = vector.extract_strided_slice %11 {offsets = [6, 0, 0], sizes = [1, 4, 32], strides = [1, 1, 1]} : vector<8x4x32xf32> to vector<1x4x32xf32>
    %197 = vector.shape_cast %196 : vector<1x4x32xf32> to vector<4x32xf32>
    %cst_76 = arith.constant dense<0.000000e+00> : vector<8x32xf32>
    %198 = tpu.matmul %195, %197, %cst_76 {dimension_numbers = #tpu.dot_dimension_numbers<[1], [0], [0], [1], [0, 0, 1, 1], [], []>} : vector<8x4xf32>, vector<4x32xf32>, vector<8x32xf32> -> vector<8x32xf32>
    %199 = arith.addf %177, %198 : vector<8x32xf32>
    %200 = vector.extract_strided_slice %42 {offsets = [0, 28], sizes = [8, 4], strides = [1, 1]} : vector<8x32xf32> to vector<8x4xf32>
    %201 = vector.extract_strided_slice %43 {offsets = [0, 28], sizes = [8, 4], strides = [1, 1]} : vector<8x32xf32> to vector<8x4xf32>
    %202 = vector.extract_strided_slice %44 {offsets = [0, 28], sizes = [8, 4], strides = [1, 1]} : vector<8x32xf32> to vector<8x4xf32>
    %cst_77 = arith.constant dense<0.000000e+00> : vector<8x8xf32>
    %203 = tpu.matmul %200, %201, %cst_77 {dimension_numbers = #tpu.dot_dimension_numbers<[1], [1], [0], [0], [0, 0, 1, 0], [], []>} : vector<8x4xf32>, vector<8x4xf32>, vector<8x8xf32> -> vector<8x8xf32>
    %cst_78 = arith.constant 5.000000e-01 : f32
    %204 = vector.broadcast %cst_78 : f32 to vector<8x8xf32>
    %205 = arith.mulf %203, %204 : vector<8x8xf32>
    %206 = arith.addf %205, %5 : vector<8x8xf32>
    %cst_79 = arith.constant dense<0xFF800000> : vector<8xf32>
    %207 = vector.multi_reduction <maximumf>, %206, %cst_79 [1] : vector<8x8xf32> to vector<8xf32>
    %208 = vector.shape_cast %207 : vector<8xf32> to vector<8x1xf32>
    %209 = vector.broadcast %208 : vector<8x1xf32> to vector<8x8xf32>
    %210 = arith.subf %206, %209 : vector<8x8xf32>
    %211 = math.exp %210 : vector<8x8xf32>
    %cst_80 = arith.constant dense<0.000000e+00> : vector<8xf32>
    %212 = vector.multi_reduction <add>, %211, %cst_80 [1] : vector<8x8xf32> to vector<8xf32>
    %213 = vector.shape_cast %212 : vector<8xf32> to vector<8x1xf32>
    %214 = tpu.reciprocal %213 {approx = true} : vector<8x1xf32> -> vector<8x1xf32>
    %215 = vector.broadcast %214 : vector<8x1xf32> to vector<8x8xf32>
    %216 = arith.mulf %211, %215 : vector<8x8xf32>
    %cst_81 = arith.constant dense<0.000000e+00> : vector<8x4xf32>
    %217 = tpu.matmul %216, %202, %cst_81 {dimension_numbers = #tpu.dot_dimension_numbers<[1], [0], [0], [1], [0, 0, 1, 1], [], []>} : vector<8x8xf32>, vector<8x4xf32>, vector<8x4xf32> -> vector<8x4xf32>
    %218 = vector.extract_strided_slice %11 {offsets = [7, 0, 0], sizes = [1, 4, 32], strides = [1, 1, 1]} : vector<8x4x32xf32> to vector<1x4x32xf32>
    %219 = vector.shape_cast %218 : vector<1x4x32xf32> to vector<4x32xf32>
    %cst_82 = arith.constant dense<0.000000e+00> : vector<8x32xf32>
    %220 = tpu.matmul %217, %219, %cst_82 {dimension_numbers = #tpu.dot_dimension_numbers<[1], [0], [0], [1], [0, 0, 1, 1], [], []>} : vector<8x4xf32>, vector<4x32xf32>, vector<8x32xf32> -> vector<8x32xf32>
    %221 = arith.addf %199, %220 : vector<8x32xf32>
    %222 = arith.addf %221, %1 : vector<8x32xf32>
    %223 = vector.extract_strided_slice %8 {offsets = [2, 0], sizes = [1, 32], strides = [1, 1]} : vector<6x32xf32> to vector<1x32xf32>
    %224 = vector.extract_strided_slice %8 {offsets = [3, 0], sizes = [1, 32], strides = [1, 1]} : vector<6x32xf32> to vector<1x32xf32>
    %cst_83 = arith.constant dense<0.000000e+00> : vector<8xf32>
    %225 = vector.multi_reduction <add>, %222, %cst_83 [1] : vector<8x32xf32> to vector<8xf32>
    %226 = vector.shape_cast %225 : vector<8xf32> to vector<8x1xf32>
    %cst_84 = arith.constant 3.200000e+01 : f32
    %227 = vector.broadcast %cst_84 : f32 to vector<8x1xf32>
    %228 = arith.divf %226, %227 : vector<8x1xf32>
    %229 = vector.broadcast %228 : vector<8x1xf32> to vector<8x32xf32>
    %230 = arith.subf %222, %229 : vector<8x32xf32>
    %231 = arith.mulf %230, %230 : vector<8x32xf32>
    %cst_85 = arith.constant dense<0.000000e+00> : vector<8xf32>
    %232 = vector.multi_reduction <add>, %231, %cst_85 [1] : vector<8x32xf32> to vector<8xf32>
    %233 = vector.shape_cast %232 : vector<8xf32> to vector<8x1xf32>
    %cst_86 = arith.constant 3.200000e+01 : f32
    %234 = vector.broadcast %cst_86 : f32 to vector<8x1xf32>
    %235 = arith.divf %233, %234 : vector<8x1xf32>
    %cst_87 = arith.constant 9.99999974E-6 : f32
    %236 = vector.broadcast %cst_87 : f32 to vector<8x1xf32>
    %237 = arith.addf %235, %236 : vector<8x1xf32>
    %238 = math.rsqrt %237 : vector<8x1xf32>
    %239 = vector.broadcast %238 : vector<8x1xf32> to vector<8x32xf32>
    %240 = arith.mulf %230, %239 : vector<8x32xf32>
    %241 = vector.broadcast %223 : vector<1x32xf32> to vector<8x32xf32>
    %242 = arith.mulf %240, %241 : vector<8x32xf32>
    %243 = vector.broadcast %224 : vector<1x32xf32> to vector<8x32xf32>
    %244 = arith.addf %242, %243 : vector<8x32xf32>
    %245 = vector.extract_strided_slice %9 {offsets = [0, 0], sizes = [32, 32], strides = [1, 1]} : vector<32x96xf32> to vector<32x32xf32>
    %cst_88 = arith.constant dense<0.000000e+00> : vector<8x32xf32>
    %246 = tpu.matmul %244, %245, %cst_88 {dimension_numbers = #tpu.dot_dimension_numbers<[1], [0], [0], [1], [0, 0, 1, 1], [], []>} : vector<8x32xf32>, vector<32x32xf32>, vector<8x32xf32> -> vector<8x32xf32>
    %247 = vector.extract_strided_slice %10 {offsets = [0, 0], sizes = [1, 32], strides = [1, 1]} : vector<1x96xf32> to vector<1x32xf32>
    %248 = vector.broadcast %247 : vector<1x32xf32> to vector<8x32xf32>
    %249 = arith.addf %246, %248 : vector<8x32xf32>
    %250 = vector.extract_strided_slice %9 {offsets = [0, 32], sizes = [32, 64], strides = [1, 1]} : vector<32x96xf32> to vector<32x64xf32>
    %cst_89 = arith.constant dense<0.000000e+00> : vector<12x64xf32>
    %251 = tpu.matmul %3, %250, %cst_89 {dimension_numbers = #tpu.dot_dimension_numbers<[1], [0], [0], [1], [0, 0, 1, 1], [], []>} : vector<12x32xf32>, vector<32x64xf32>, vector<12x64xf32> -> vector<12x64xf32>
    %252 = vector.extract_strided_slice %10 {offsets = [0, 32], sizes = [1, 64], strides = [1, 1]} : vector<1x96xf32> to vector<1x64xf32>
    %253 = vector.broadcast %252 : vector<1x64xf32> to vector<12x64xf32>
    %254 = arith.addf %251, %253 : vector<12x64xf32>
    %255 = vector.extract_strided_slice %254 {offsets = [0, 0], sizes = [12, 32], strides = [1, 1]} : vector<12x64xf32> to vector<12x32xf32>
    %256 = vector.extract_strided_slice %254 {offsets = [0, 32], sizes = [12, 32], strides = [1, 1]} : vector<12x64xf32> to vector<12x32xf32>
    %257 = vector.extract_strided_slice %249 {offsets = [0, 0], sizes = [8, 4], strides = [1, 1]} : vector<8x32xf32> to vector<8x4xf32>
    %258 = vector.extract_strided_slice %255 {offsets = [0, 0], sizes = [12, 4], strides = [1, 1]} : vector<12x32xf32> to vector<12x4xf32>
    %259 = vector.extract_strided_slice %256 {offsets = [0, 0], sizes = [12, 4], strides = [1, 1]} : vector<12x32xf32> to vector<12x4xf32>
    %cst_90 = arith.constant dense<0.000000e+00> : vector<8x12xf32>
    %260 = tpu.matmul %257, %258, %cst_90 {dimension_numbers = #tpu.dot_dimension_numbers<[1], [1], [0], [0], [0, 0, 1, 0], [], []>} : vector<8x4xf32>, vector<12x4xf32>, vector<8x12xf32> -> vector<8x12xf32>
    %cst_91 = arith.constant 5.000000e-01 : f32
    %261 = vector.broadcast %cst_91 : f32 to vector<8x12xf32>
    %262 = arith.mulf %260, %261 : vector<8x12xf32>
    %263 = arith.addf %262, %7 : vector<8x12xf32>
    %cst_92 = arith.constant dense<0xFF800000> : vector<8xf32>
    %264 = vector.multi_reduction <maximumf>, %263, %cst_92 [1] : vector<8x12xf32> to vector<8xf32>
    %265 = vector.shape_cast %264 : vector<8xf32> to vector<8x1xf32>
    %266 = vector.broadcast %265 : vector<8x1xf32> to vector<8x12xf32>
    %267 = arith.subf %263, %266 : vector<8x12xf32>
    %268 = math.exp %267 : vector<8x12xf32>
    %cst_93 = arith.constant dense<0.000000e+00> : vector<8xf32>
    %269 = vector.multi_reduction <add>, %268, %cst_93 [1] : vector<8x12xf32> to vector<8xf32>
    %270 = vector.shape_cast %269 : vector<8xf32> to vector<8x1xf32>
    %271 = tpu.reciprocal %270 {approx = true} : vector<8x1xf32> -> vector<8x1xf32>
    %272 = vector.broadcast %271 : vector<8x1xf32> to vector<8x12xf32>
    %273 = arith.mulf %268, %272 : vector<8x12xf32>
    %cst_94 = arith.constant dense<0.000000e+00> : vector<8x4xf32>
    %274 = tpu.matmul %273, %259, %cst_94 {dimension_numbers = #tpu.dot_dimension_numbers<[1], [0], [0], [1], [0, 0, 1, 1], [], []>} : vector<8x12xf32>, vector<12x4xf32>, vector<8x4xf32> -> vector<8x4xf32>
    %275 = vector.extract_strided_slice %11 {offsets = [0, 0, 0], sizes = [1, 4, 32], strides = [1, 1, 1]} : vector<8x4x32xf32> to vector<1x4x32xf32>
    %276 = vector.shape_cast %275 : vector<1x4x32xf32> to vector<4x32xf32>
    %cst_95 = arith.constant dense<0.000000e+00> : vector<8x32xf32>
    %277 = tpu.matmul %274, %276, %cst_95 {dimension_numbers = #tpu.dot_dimension_numbers<[1], [0], [0], [1], [0, 0, 1, 1], [], []>} : vector<8x4xf32>, vector<4x32xf32>, vector<8x32xf32> -> vector<8x32xf32>
    %278 = vector.broadcast %12 : vector<1x32xf32> to vector<8x32xf32>
    %279 = arith.addf %278, %277 : vector<8x32xf32>
    %280 = vector.extract_strided_slice %249 {offsets = [0, 4], sizes = [8, 4], strides = [1, 1]} : vector<8x32xf32> to vector<8x4xf32>
    %281 = vector.extract_strided_slice %255 {offsets = [0, 4], sizes = [12, 4], strides = [1, 1]} : vector<12x32xf32> to vector<12x4xf32>
    %282 = vector.extract_strided_slice %256 {offsets = [0, 4], sizes = [12, 4], strides = [1, 1]} : vector<12x32xf32> to vector<12x4xf32>
    %cst_96 = arith.constant dense<0.000000e+00> : vector<8x12xf32>
    %283 = tpu.matmul %280, %281, %cst_96 {dimension_numbers = #tpu.dot_dimension_numbers<[1], [1], [0], [0], [0, 0, 1, 0], [], []>} : vector<8x4xf32>, vector<12x4xf32>, vector<8x12xf32> -> vector<8x12xf32>
    %cst_97 = arith.constant 5.000000e-01 : f32
    %284 = vector.broadcast %cst_97 : f32 to vector<8x12xf32>
    %285 = arith.mulf %283, %284 : vector<8x12xf32>
    %286 = arith.addf %285, %7 : vector<8x12xf32>
    %cst_98 = arith.constant dense<0xFF800000> : vector<8xf32>
    %287 = vector.multi_reduction <maximumf>, %286, %cst_98 [1] : vector<8x12xf32> to vector<8xf32>
    %288 = vector.shape_cast %287 : vector<8xf32> to vector<8x1xf32>
    %289 = vector.broadcast %288 : vector<8x1xf32> to vector<8x12xf32>
    %290 = arith.subf %286, %289 : vector<8x12xf32>
    %291 = math.exp %290 : vector<8x12xf32>
    %cst_99 = arith.constant dense<0.000000e+00> : vector<8xf32>
    %292 = vector.multi_reduction <add>, %291, %cst_99 [1] : vector<8x12xf32> to vector<8xf32>
    %293 = vector.shape_cast %292 : vector<8xf32> to vector<8x1xf32>
    %294 = tpu.reciprocal %293 {approx = true} : vector<8x1xf32> -> vector<8x1xf32>
    %295 = vector.broadcast %294 : vector<8x1xf32> to vector<8x12xf32>
    %296 = arith.mulf %291, %295 : vector<8x12xf32>
    %cst_100 = arith.constant dense<0.000000e+00> : vector<8x4xf32>
    %297 = tpu.matmul %296, %282, %cst_100 {dimension_numbers = #tpu.dot_dimension_numbers<[1], [0], [0], [1], [0, 0, 1, 1], [], []>} : vector<8x12xf32>, vector<12x4xf32>, vector<8x4xf32> -> vector<8x4xf32>
    %298 = vector.extract_strided_slice %11 {offsets = [1, 0, 0], sizes = [1, 4, 32], strides = [1, 1, 1]} : vector<8x4x32xf32> to vector<1x4x32xf32>
    %299 = vector.shape_cast %298 : vector<1x4x32xf32> to vector<4x32xf32>
    %cst_101 = arith.constant dense<0.000000e+00> : vector<8x32xf32>
    %300 = tpu.matmul %297, %299, %cst_101 {dimension_numbers = #tpu.dot_dimension_numbers<[1], [0], [0], [1], [0, 0, 1, 1], [], []>} : vector<8x4xf32>, vector<4x32xf32>, vector<8x32xf32> -> vector<8x32xf32>
    %301 = arith.addf %279, %300 : vector<8x32xf32>
    %302 = vector.extract_strided_slice %249 {offsets = [0, 8], sizes = [8, 4], strides = [1, 1]} : vector<8x32xf32> to vector<8x4xf32>
    %303 = vector.extract_strided_slice %255 {offsets = [0, 8], sizes = [12, 4], strides = [1, 1]} : vector<12x32xf32> to vector<12x4xf32>
    %304 = vector.extract_strided_slice %256 {offsets = [0, 8], sizes = [12, 4], strides = [1, 1]} : vector<12x32xf32> to vector<12x4xf32>
    %cst_102 = arith.constant dense<0.000000e+00> : vector<8x12xf32>
    %305 = tpu.matmul %302, %303, %cst_102 {dimension_numbers = #tpu.dot_dimension_numbers<[1], [1], [0], [0], [0, 0, 1, 0], [], []>} : vector<8x4xf32>, vector<12x4xf32>, vector<8x12xf32> -> vector<8x12xf32>
    %cst_103 = arith.constant 5.000000e-01 : f32
    %306 = vector.broadcast %cst_103 : f32 to vector<8x12xf32>
    %307 = arith.mulf %305, %306 : vector<8x12xf32>
    %308 = arith.addf %307, %7 : vector<8x12xf32>
    %cst_104 = arith.constant dense<0xFF800000> : vector<8xf32>
    %309 = vector.multi_reduction <maximumf>, %308, %cst_104 [1] : vector<8x12xf32> to vector<8xf32>
    %310 = vector.shape_cast %309 : vector<8xf32> to vector<8x1xf32>
    %311 = vector.broadcast %310 : vector<8x1xf32> to vector<8x12xf32>
    %312 = arith.subf %308, %311 : vector<8x12xf32>
    %313 = math.exp %312 : vector<8x12xf32>
    %cst_105 = arith.constant dense<0.000000e+00> : vector<8xf32>
    %314 = vector.multi_reduction <add>, %313, %cst_105 [1] : vector<8x12xf32> to vector<8xf32>
    %315 = vector.shape_cast %314 : vector<8xf32> to vector<8x1xf32>
    %316 = tpu.reciprocal %315 {approx = true} : vector<8x1xf32> -> vector<8x1xf32>
    %317 = vector.broadcast %316 : vector<8x1xf32> to vector<8x12xf32>
    %318 = arith.mulf %313, %317 : vector<8x12xf32>
    %cst_106 = arith.constant dense<0.000000e+00> : vector<8x4xf32>
    %319 = tpu.matmul %318, %304, %cst_106 {dimension_numbers = #tpu.dot_dimension_numbers<[1], [0], [0], [1], [0, 0, 1, 1], [], []>} : vector<8x12xf32>, vector<12x4xf32>, vector<8x4xf32> -> vector<8x4xf32>
    %320 = vector.extract_strided_slice %11 {offsets = [2, 0, 0], sizes = [1, 4, 32], strides = [1, 1, 1]} : vector<8x4x32xf32> to vector<1x4x32xf32>
    %321 = vector.shape_cast %320 : vector<1x4x32xf32> to vector<4x32xf32>
    %cst_107 = arith.constant dense<0.000000e+00> : vector<8x32xf32>
    %322 = tpu.matmul %319, %321, %cst_107 {dimension_numbers = #tpu.dot_dimension_numbers<[1], [0], [0], [1], [0, 0, 1, 1], [], []>} : vector<8x4xf32>, vector<4x32xf32>, vector<8x32xf32> -> vector<8x32xf32>
    %323 = arith.addf %301, %322 : vector<8x32xf32>
    %324 = vector.extract_strided_slice %249 {offsets = [0, 12], sizes = [8, 4], strides = [1, 1]} : vector<8x32xf32> to vector<8x4xf32>
    %325 = vector.extract_strided_slice %255 {offsets = [0, 12], sizes = [12, 4], strides = [1, 1]} : vector<12x32xf32> to vector<12x4xf32>
    %326 = vector.extract_strided_slice %256 {offsets = [0, 12], sizes = [12, 4], strides = [1, 1]} : vector<12x32xf32> to vector<12x4xf32>
    %cst_108 = arith.constant dense<0.000000e+00> : vector<8x12xf32>
    %327 = tpu.matmul %324, %325, %cst_108 {dimension_numbers = #tpu.dot_dimension_numbers<[1], [1], [0], [0], [0, 0, 1, 0], [], []>} : vector<8x4xf32>, vector<12x4xf32>, vector<8x12xf32> -> vector<8x12xf32>
    %cst_109 = arith.constant 5.000000e-01 : f32
    %328 = vector.broadcast %cst_109 : f32 to vector<8x12xf32>
    %329 = arith.mulf %327, %328 : vector<8x12xf32>
    %330 = arith.addf %329, %7 : vector<8x12xf32>
    %cst_110 = arith.constant dense<0xFF800000> : vector<8xf32>
    %331 = vector.multi_reduction <maximumf>, %330, %cst_110 [1] : vector<8x12xf32> to vector<8xf32>
    %332 = vector.shape_cast %331 : vector<8xf32> to vector<8x1xf32>
    %333 = vector.broadcast %332 : vector<8x1xf32> to vector<8x12xf32>
    %334 = arith.subf %330, %333 : vector<8x12xf32>
    %335 = math.exp %334 : vector<8x12xf32>
    %cst_111 = arith.constant dense<0.000000e+00> : vector<8xf32>
    %336 = vector.multi_reduction <add>, %335, %cst_111 [1] : vector<8x12xf32> to vector<8xf32>
    %337 = vector.shape_cast %336 : vector<8xf32> to vector<8x1xf32>
    %338 = tpu.reciprocal %337 {approx = true} : vector<8x1xf32> -> vector<8x1xf32>
    %339 = vector.broadcast %338 : vector<8x1xf32> to vector<8x12xf32>
    %340 = arith.mulf %335, %339 : vector<8x12xf32>
    %cst_112 = arith.constant dense<0.000000e+00> : vector<8x4xf32>
    %341 = tpu.matmul %340, %326, %cst_112 {dimension_numbers = #tpu.dot_dimension_numbers<[1], [0], [0], [1], [0, 0, 1, 1], [], []>} : vector<8x12xf32>, vector<12x4xf32>, vector<8x4xf32> -> vector<8x4xf32>
    %342 = vector.extract_strided_slice %11 {offsets = [3, 0, 0], sizes = [1, 4, 32], strides = [1, 1, 1]} : vector<8x4x32xf32> to vector<1x4x32xf32>
    %343 = vector.shape_cast %342 : vector<1x4x32xf32> to vector<4x32xf32>
    %cst_113 = arith.constant dense<0.000000e+00> : vector<8x32xf32>
    %344 = tpu.matmul %341, %343, %cst_113 {dimension_numbers = #tpu.dot_dimension_numbers<[1], [0], [0], [1], [0, 0, 1, 1], [], []>} : vector<8x4xf32>, vector<4x32xf32>, vector<8x32xf32> -> vector<8x32xf32>
    %345 = arith.addf %323, %344 : vector<8x32xf32>
    %346 = vector.extract_strided_slice %249 {offsets = [0, 16], sizes = [8, 4], strides = [1, 1]} : vector<8x32xf32> to vector<8x4xf32>
    %347 = vector.extract_strided_slice %255 {offsets = [0, 16], sizes = [12, 4], strides = [1, 1]} : vector<12x32xf32> to vector<12x4xf32>
    %348 = vector.extract_strided_slice %256 {offsets = [0, 16], sizes = [12, 4], strides = [1, 1]} : vector<12x32xf32> to vector<12x4xf32>
    %cst_114 = arith.constant dense<0.000000e+00> : vector<8x12xf32>
    %349 = tpu.matmul %346, %347, %cst_114 {dimension_numbers = #tpu.dot_dimension_numbers<[1], [1], [0], [0], [0, 0, 1, 0], [], []>} : vector<8x4xf32>, vector<12x4xf32>, vector<8x12xf32> -> vector<8x12xf32>
    %cst_115 = arith.constant 5.000000e-01 : f32
    %350 = vector.broadcast %cst_115 : f32 to vector<8x12xf32>
    %351 = arith.mulf %349, %350 : vector<8x12xf32>
    %352 = arith.addf %351, %7 : vector<8x12xf32>
    %cst_116 = arith.constant dense<0xFF800000> : vector<8xf32>
    %353 = vector.multi_reduction <maximumf>, %352, %cst_116 [1] : vector<8x12xf32> to vector<8xf32>
    %354 = vector.shape_cast %353 : vector<8xf32> to vector<8x1xf32>
    %355 = vector.broadcast %354 : vector<8x1xf32> to vector<8x12xf32>
    %356 = arith.subf %352, %355 : vector<8x12xf32>
    %357 = math.exp %356 : vector<8x12xf32>
    %cst_117 = arith.constant dense<0.000000e+00> : vector<8xf32>
    %358 = vector.multi_reduction <add>, %357, %cst_117 [1] : vector<8x12xf32> to vector<8xf32>
    %359 = vector.shape_cast %358 : vector<8xf32> to vector<8x1xf32>
    %360 = tpu.reciprocal %359 {approx = true} : vector<8x1xf32> -> vector<8x1xf32>
    %361 = vector.broadcast %360 : vector<8x1xf32> to vector<8x12xf32>
    %362 = arith.mulf %357, %361 : vector<8x12xf32>
    %cst_118 = arith.constant dense<0.000000e+00> : vector<8x4xf32>
    %363 = tpu.matmul %362, %348, %cst_118 {dimension_numbers = #tpu.dot_dimension_numbers<[1], [0], [0], [1], [0, 0, 1, 1], [], []>} : vector<8x12xf32>, vector<12x4xf32>, vector<8x4xf32> -> vector<8x4xf32>
    %364 = vector.extract_strided_slice %11 {offsets = [4, 0, 0], sizes = [1, 4, 32], strides = [1, 1, 1]} : vector<8x4x32xf32> to vector<1x4x32xf32>
    %365 = vector.shape_cast %364 : vector<1x4x32xf32> to vector<4x32xf32>
    %cst_119 = arith.constant dense<0.000000e+00> : vector<8x32xf32>
    %366 = tpu.matmul %363, %365, %cst_119 {dimension_numbers = #tpu.dot_dimension_numbers<[1], [0], [0], [1], [0, 0, 1, 1], [], []>} : vector<8x4xf32>, vector<4x32xf32>, vector<8x32xf32> -> vector<8x32xf32>
    %367 = arith.addf %345, %366 : vector<8x32xf32>
    %368 = vector.extract_strided_slice %249 {offsets = [0, 20], sizes = [8, 4], strides = [1, 1]} : vector<8x32xf32> to vector<8x4xf32>
    %369 = vector.extract_strided_slice %255 {offsets = [0, 20], sizes = [12, 4], strides = [1, 1]} : vector<12x32xf32> to vector<12x4xf32>
    %370 = vector.extract_strided_slice %256 {offsets = [0, 20], sizes = [12, 4], strides = [1, 1]} : vector<12x32xf32> to vector<12x4xf32>
    %cst_120 = arith.constant dense<0.000000e+00> : vector<8x12xf32>
    %371 = tpu.matmul %368, %369, %cst_120 {dimension_numbers = #tpu.dot_dimension_numbers<[1], [1], [0], [0], [0, 0, 1, 0], [], []>} : vector<8x4xf32>, vector<12x4xf32>, vector<8x12xf32> -> vector<8x12xf32>
    %cst_121 = arith.constant 5.000000e-01 : f32
    %372 = vector.broadcast %cst_121 : f32 to vector<8x12xf32>
    %373 = arith.mulf %371, %372 : vector<8x12xf32>
    %374 = arith.addf %373, %7 : vector<8x12xf32>
    %cst_122 = arith.constant dense<0xFF800000> : vector<8xf32>
    %375 = vector.multi_reduction <maximumf>, %374, %cst_122 [1] : vector<8x12xf32> to vector<8xf32>
    %376 = vector.shape_cast %375 : vector<8xf32> to vector<8x1xf32>
    %377 = vector.broadcast %376 : vector<8x1xf32> to vector<8x12xf32>
    %378 = arith.subf %374, %377 : vector<8x12xf32>
    %379 = math.exp %378 : vector<8x12xf32>
    %cst_123 = arith.constant dense<0.000000e+00> : vector<8xf32>
    %380 = vector.multi_reduction <add>, %379, %cst_123 [1] : vector<8x12xf32> to vector<8xf32>
    %381 = vector.shape_cast %380 : vector<8xf32> to vector<8x1xf32>
    %382 = tpu.reciprocal %381 {approx = true} : vector<8x1xf32> -> vector<8x1xf32>
    %383 = vector.broadcast %382 : vector<8x1xf32> to vector<8x12xf32>
    %384 = arith.mulf %379, %383 : vector<8x12xf32>
    %cst_124 = arith.constant dense<0.000000e+00> : vector<8x4xf32>
    %385 = tpu.matmul %384, %370, %cst_124 {dimension_numbers = #tpu.dot_dimension_numbers<[1], [0], [0], [1], [0, 0, 1, 1], [], []>} : vector<8x12xf32>, vector<12x4xf32>, vector<8x4xf32> -> vector<8x4xf32>
    %386 = vector.extract_strided_slice %11 {offsets = [5, 0, 0], sizes = [1, 4, 32], strides = [1, 1, 1]} : vector<8x4x32xf32> to vector<1x4x32xf32>
    %387 = vector.shape_cast %386 : vector<1x4x32xf32> to vector<4x32xf32>
    %cst_125 = arith.constant dense<0.000000e+00> : vector<8x32xf32>
    %388 = tpu.matmul %385, %387, %cst_125 {dimension_numbers = #tpu.dot_dimension_numbers<[1], [0], [0], [1], [0, 0, 1, 1], [], []>} : vector<8x4xf32>, vector<4x32xf32>, vector<8x32xf32> -> vector<8x32xf32>
    %389 = arith.addf %367, %388 : vector<8x32xf32>
    %390 = vector.extract_strided_slice %249 {offsets = [0, 24], sizes = [8, 4], strides = [1, 1]} : vector<8x32xf32> to vector<8x4xf32>
    %391 = vector.extract_strided_slice %255 {offsets = [0, 24], sizes = [12, 4], strides = [1, 1]} : vector<12x32xf32> to vector<12x4xf32>
    %392 = vector.extract_strided_slice %256 {offsets = [0, 24], sizes = [12, 4], strides = [1, 1]} : vector<12x32xf32> to vector<12x4xf32>
    %cst_126 = arith.constant dense<0.000000e+00> : vector<8x12xf32>
    %393 = tpu.matmul %390, %391, %cst_126 {dimension_numbers = #tpu.dot_dimension_numbers<[1], [1], [0], [0], [0, 0, 1, 0], [], []>} : vector<8x4xf32>, vector<12x4xf32>, vector<8x12xf32> -> vector<8x12xf32>
    %cst_127 = arith.constant 5.000000e-01 : f32
    %394 = vector.broadcast %cst_127 : f32 to vector<8x12xf32>
    %395 = arith.mulf %393, %394 : vector<8x12xf32>
    %396 = arith.addf %395, %7 : vector<8x12xf32>
    %cst_128 = arith.constant dense<0xFF800000> : vector<8xf32>
    %397 = vector.multi_reduction <maximumf>, %396, %cst_128 [1] : vector<8x12xf32> to vector<8xf32>
    %398 = vector.shape_cast %397 : vector<8xf32> to vector<8x1xf32>
    %399 = vector.broadcast %398 : vector<8x1xf32> to vector<8x12xf32>
    %400 = arith.subf %396, %399 : vector<8x12xf32>
    %401 = math.exp %400 : vector<8x12xf32>
    %cst_129 = arith.constant dense<0.000000e+00> : vector<8xf32>
    %402 = vector.multi_reduction <add>, %401, %cst_129 [1] : vector<8x12xf32> to vector<8xf32>
    %403 = vector.shape_cast %402 : vector<8xf32> to vector<8x1xf32>
    %404 = tpu.reciprocal %403 {approx = true} : vector<8x1xf32> -> vector<8x1xf32>
    %405 = vector.broadcast %404 : vector<8x1xf32> to vector<8x12xf32>
    %406 = arith.mulf %401, %405 : vector<8x12xf32>
    %cst_130 = arith.constant dense<0.000000e+00> : vector<8x4xf32>
    %407 = tpu.matmul %406, %392, %cst_130 {dimension_numbers = #tpu.dot_dimension_numbers<[1], [0], [0], [1], [0, 0, 1, 1], [], []>} : vector<8x12xf32>, vector<12x4xf32>, vector<8x4xf32> -> vector<8x4xf32>
    %408 = vector.extract_strided_slice %11 {offsets = [6, 0, 0], sizes = [1, 4, 32], strides = [1, 1, 1]} : vector<8x4x32xf32> to vector<1x4x32xf32>
    %409 = vector.shape_cast %408 : vector<1x4x32xf32> to vector<4x32xf32>
    %cst_131 = arith.constant dense<0.000000e+00> : vector<8x32xf32>
    %410 = tpu.matmul %407, %409, %cst_131 {dimension_numbers = #tpu.dot_dimension_numbers<[1], [0], [0], [1], [0, 0, 1, 1], [], []>} : vector<8x4xf32>, vector<4x32xf32>, vector<8x32xf32> -> vector<8x32xf32>
    %411 = arith.addf %389, %410 : vector<8x32xf32>
    %412 = vector.extract_strided_slice %249 {offsets = [0, 28], sizes = [8, 4], strides = [1, 1]} : vector<8x32xf32> to vector<8x4xf32>
    %413 = vector.extract_strided_slice %255 {offsets = [0, 28], sizes = [12, 4], strides = [1, 1]} : vector<12x32xf32> to vector<12x4xf32>
    %414 = vector.extract_strided_slice %256 {offsets = [0, 28], sizes = [12, 4], strides = [1, 1]} : vector<12x32xf32> to vector<12x4xf32>
    %cst_132 = arith.constant dense<0.000000e+00> : vector<8x12xf32>
    %415 = tpu.matmul %412, %413, %cst_132 {dimension_numbers = #tpu.dot_dimension_numbers<[1], [1], [0], [0], [0, 0, 1, 0], [], []>} : vector<8x4xf32>, vector<12x4xf32>, vector<8x12xf32> -> vector<8x12xf32>
    %cst_133 = arith.constant 5.000000e-01 : f32
    %416 = vector.broadcast %cst_133 : f32 to vector<8x12xf32>
    %417 = arith.mulf %415, %416 : vector<8x12xf32>
    %418 = arith.addf %417, %7 : vector<8x12xf32>
    %cst_134 = arith.constant dense<0xFF800000> : vector<8xf32>
    %419 = vector.multi_reduction <maximumf>, %418, %cst_134 [1] : vector<8x12xf32> to vector<8xf32>
    %420 = vector.shape_cast %419 : vector<8xf32> to vector<8x1xf32>
    %421 = vector.broadcast %420 : vector<8x1xf32> to vector<8x12xf32>
    %422 = arith.subf %418, %421 : vector<8x12xf32>
    %423 = math.exp %422 : vector<8x12xf32>
    %cst_135 = arith.constant dense<0.000000e+00> : vector<8xf32>
    %424 = vector.multi_reduction <add>, %423, %cst_135 [1] : vector<8x12xf32> to vector<8xf32>
    %425 = vector.shape_cast %424 : vector<8xf32> to vector<8x1xf32>
    %426 = tpu.reciprocal %425 {approx = true} : vector<8x1xf32> -> vector<8x1xf32>
    %427 = vector.broadcast %426 : vector<8x1xf32> to vector<8x12xf32>
    %428 = arith.mulf %423, %427 : vector<8x12xf32>
    %cst_136 = arith.constant dense<0.000000e+00> : vector<8x4xf32>
    %429 = tpu.matmul %428, %414, %cst_136 {dimension_numbers = #tpu.dot_dimension_numbers<[1], [0], [0], [1], [0, 0, 1, 1], [], []>} : vector<8x12xf32>, vector<12x4xf32>, vector<8x4xf32> -> vector<8x4xf32>
    %430 = vector.extract_strided_slice %11 {offsets = [7, 0, 0], sizes = [1, 4, 32], strides = [1, 1, 1]} : vector<8x4x32xf32> to vector<1x4x32xf32>
    %431 = vector.shape_cast %430 : vector<1x4x32xf32> to vector<4x32xf32>
    %cst_137 = arith.constant dense<0.000000e+00> : vector<8x32xf32>
    %432 = tpu.matmul %429, %431, %cst_137 {dimension_numbers = #tpu.dot_dimension_numbers<[1], [0], [0], [1], [0, 0, 1, 1], [], []>} : vector<8x4xf32>, vector<4x32xf32>, vector<8x32xf32> -> vector<8x32xf32>
    %433 = arith.addf %411, %432 : vector<8x32xf32>
    %434 = arith.addf %433, %222 : vector<8x32xf32>
    %435 = vector.extract_strided_slice %8 {offsets = [4, 0], sizes = [1, 32], strides = [1, 1]} : vector<6x32xf32> to vector<1x32xf32>
    %436 = vector.extract_strided_slice %8 {offsets = [5, 0], sizes = [1, 32], strides = [1, 1]} : vector<6x32xf32> to vector<1x32xf32>
    %cst_138 = arith.constant dense<0.000000e+00> : vector<8xf32>
    %437 = vector.multi_reduction <add>, %434, %cst_138 [1] : vector<8x32xf32> to vector<8xf32>
    %438 = vector.shape_cast %437 : vector<8xf32> to vector<8x1xf32>
    %cst_139 = arith.constant 3.200000e+01 : f32
    %439 = vector.broadcast %cst_139 : f32 to vector<8x1xf32>
    %440 = arith.divf %438, %439 : vector<8x1xf32>
    %441 = vector.broadcast %440 : vector<8x1xf32> to vector<8x32xf32>
    %442 = arith.subf %434, %441 : vector<8x32xf32>
    %443 = arith.mulf %442, %442 : vector<8x32xf32>
    %cst_140 = arith.constant dense<0.000000e+00> : vector<8xf32>
    %444 = vector.multi_reduction <add>, %443, %cst_140 [1] : vector<8x32xf32> to vector<8xf32>
    %445 = vector.shape_cast %444 : vector<8xf32> to vector<8x1xf32>
    %cst_141 = arith.constant 3.200000e+01 : f32
    %446 = vector.broadcast %cst_141 : f32 to vector<8x1xf32>
    %447 = arith.divf %445, %446 : vector<8x1xf32>
    %cst_142 = arith.constant 9.99999974E-6 : f32
    %448 = vector.broadcast %cst_142 : f32 to vector<8x1xf32>
    %449 = arith.addf %447, %448 : vector<8x1xf32>
    %450 = math.rsqrt %449 : vector<8x1xf32>
    %451 = vector.broadcast %450 : vector<8x1xf32> to vector<8x32xf32>
    %452 = arith.mulf %442, %451 : vector<8x32xf32>
    %453 = vector.broadcast %435 : vector<1x32xf32> to vector<8x32xf32>
    %454 = arith.mulf %452, %453 : vector<8x32xf32>
    %455 = vector.broadcast %436 : vector<1x32xf32> to vector<8x32xf32>
    %456 = arith.addf %454, %455 : vector<8x32xf32>
    %cst_143 = arith.constant dense<0.000000e+00> : vector<8x128xf32>
    %457 = tpu.matmul %456, %13, %cst_143 {dimension_numbers = #tpu.dot_dimension_numbers<[1], [0], [0], [1], [0, 0, 1, 1], [], []>} : vector<8x32xf32>, vector<32x128xf32>, vector<8x128xf32> -> vector<8x128xf32>
    %458 = vector.broadcast %14 : vector<1x128xf32> to vector<8x128xf32>
    %459 = arith.addf %457, %458 : vector<8x128xf32>
    %cst_144 = arith.constant 0.000000e+00 : f32
    %460 = vector.broadcast %cst_144 : f32 to vector<8x128xf32>
    %461 = arith.maximumf %459, %460 : vector<8x128xf32>
    %cst_145 = arith.constant dense<0.000000e+00> : vector<8x32xf32>
    %462 = tpu.matmul %461, %15, %cst_145 {dimension_numbers = #tpu.dot_dimension_numbers<[1], [0], [0], [1], [0, 0, 1, 1], [], []>} : vector<8x128xf32>, vector<128x32xf32>, vector<8x32xf32> -> vector<8x32xf32>
    %463 = vector.broadcast %16 : vector<1x32xf32> to vector<8x32xf32>
    %464 = arith.addf %462, %463 : vector<8x32xf32>
    %465 = arith.addf %464, %434 : vector<8x32xf32>
    %c0_146 = arith.constant 0 : index
    %c0_147 = arith.constant 0 : index
    %c0_148 = arith.constant 0 : index
    %466 = vector.load %arg14[%c0_146, %c0_147, %c0_148] : memref<1x8x32xf32, #tpu.memory_space<vmem>>, vector<1x8x32xf32>
    %467 = vector.shape_cast %466 : vector<1x8x32xf32> to vector<8x32xf32>
    %468 = vector.shape_cast %465 : vector<8x32xf32> to vector<1x8x32xf32>
    tpu.vector_store %arg14[%c0_146, %c0_147, %c0_148], %468 {strides = array<i32>} : memref<1x8x32xf32, #tpu.memory_space<vmem>>, vector<1x8x32xf32>,
    return
  }
  func.func @transform_0(%arg0: i32) -> (i32, i32, i32) {
    %c0_i32 = arith.constant 0 : i32
    %c0_i32_0 = arith.constant 0 : i32
    %c0_i32_1 = arith.constant 0 : i32
    return %arg0, %c0_i32, %c0_i32_0 : i32, i32, i32
  }
  func.func @transform_1(%arg0: i32) -> (i32, i32, i32) {
    %c0_i32 = arith.constant 0 : i32
    %c0_i32_0 = arith.constant 0 : i32
    %c0_i32_1 = arith.constant 0 : i32
    return %arg0, %c0_i32, %c0_i32_0 : i32, i32, i32
  }
  func.func @transform_2(%arg0: i32) -> (i32, i32, i32) {
    %c0_i32 = arith.constant 0 : i32
    %c0_i32_0 = arith.constant 0 : i32
    %c0_i32_1 = arith.constant 0 : i32
    return %arg0, %c0_i32, %c0_i32_0 : i32, i32, i32
  }
  func.func @transform_3(%arg0: i32) -> (i32, i32, i32) {
    %c0_i32 = arith.constant 0 : i32
    %c0_i32_0 = arith.constant 0 : i32
    %c0_i32_1 = arith.constant 0 : i32
    return %arg0, %c0_i32, %c0_i32_0 : i32, i32, i32
  }
  func.func @transform_4(%arg0: i32) -> (i32, i32) {
    %c0_i32 = arith.constant 0 : i32
    %c0_i32_0 = arith.constant 0 : i32
    %c0_i32_1 = arith.constant 0 : i32
    return %c0_i32, %c0_i32_0 : i32, i32
  }
  func.func @transform_5(%arg0: i32) -> (i32, i32) {
    %c0_i32 = arith.constant 0 : i32
    %c0_i32_0 = arith.constant 0 : i32
    %c0_i32_1 = arith.constant 0 : i32
    return %c0_i32, %c0_i32_0 : i32, i32
  }
  func.func @transform_6(%arg0: i32) -> (i32, i32) {
    %c0_i32 = arith.constant 0 : i32
    %c0_i32_0 = arith.constant 0 : i32
    %c0_i32_1 = arith.constant 0 : i32
    return %c0_i32, %c0_i32_0 : i32, i32
  }
  func.func @transform_7(%arg0: i32) -> (i32, i32, i32) {
    %c0_i32 = arith.constant 0 : i32
    %c0_i32_0 = arith.constant 0 : i32
    %c0_i32_1 = arith.constant 0 : i32
    %c0_i32_2 = arith.constant 0 : i32
    return %c0_i32, %c0_i32_0, %c0_i32_1 : i32, i32, i32
  }
  func.func @transform_8(%arg0: i32) -> (i32, i32) {
    %c0_i32 = arith.constant 0 : i32
    %c0_i32_0 = arith.constant 0 : i32
    %c0_i32_1 = arith.constant 0 : i32
    return %c0_i32, %c0_i32_0 : i32, i32
  }
  func.func @transform_9(%arg0: i32) -> (i32, i32) {
    %c0_i32 = arith.constant 0 : i32
    %c0_i32_0 = arith.constant 0 : i32
    %c0_i32_1 = arith.constant 0 : i32
    return %c0_i32, %c0_i32_0 : i32, i32
  }
  func.func @transform_10(%arg0: i32) -> (i32, i32) {
    %c0_i32 = arith.constant 0 : i32
    %c0_i32_0 = arith.constant 0 : i32
    %c0_i32_1 = arith.constant 0 : i32
    return %c0_i32, %c0_i32_0 : i32, i32
  }
  func.func @transform_11(%arg0: i32) -> (i32, i32) {
    %c0_i32 = arith.constant 0 : i32
    %c0_i32_0 = arith.constant 0 : i32
    %c0_i32_1 = arith.constant 0 : i32
    return %c0_i32, %c0_i32_0 : i32, i32
  }
  func.func @transform_12(%arg0: i32) -> (i32, i32) {
    %c0_i32 = arith.constant 0 : i32
    %c0_i32_0 = arith.constant 0 : i32
    %c0_i32_1 = arith.constant 0 : i32
    return %c0_i32, %c0_i32_0 : i32, i32
  }
  func.func @transform_13(%arg0: i32) -> (i32, i32, i32) {
    %c0_i32 = arith.constant 0 : i32
    %c0_i32_0 = arith.constant 0 : i32
    %c0_i32_1 = arith.constant 0 : i32
    return %arg0, %c0_i32, %c0_i32_0 : i32, i32, i32
  }
}

</mosaic_0001>

<llo_original>
// kernel: tpu_custom_call.1
$region0: #{tpu_custom_call.1}
  #allocation0 [shape = 'u32[]', space=smem, size = 0x4, offset = 0x4, fixed_abs, tag = 'smem constant byte address 0x4 - core index']
  #allocation1 [shape = 'u32[144,128]{1,0:T(1,128)}', space=vmem, size = 0x12000, scoped, tag = 'internal scratch']
  %s0 = inlined_call_operand.vmem [shape: f32[2,8,32], index: 0, kind: input, shape index: {}]
  %s1 = inlined_call_operand.vmem [shape: f32[2,12,32], index: 1, kind: input, shape index: {}]
  %s2 = inlined_call_operand.vmem [shape: f32[2,8,8], index: 2, kind: input, shape index: {}]
  %s3 = inlined_call_operand.vmem [shape: f32[2,8,12], index: 3, kind: input, shape index: {}]
  %s4 = inlined_call_operand.vmem [shape: f32[6,32], index: 4, kind: input, shape index: {}]
  %s5 = inlined_call_operand.vmem [shape: f32[32,96], index: 5, kind: input, shape index: {}]
  %s6 = inlined_call_operand.vmem [shape: f32[1,96], index: 6, kind: input, shape index: {}]
  %s7 = inlined_call_operand.vmem [shape: f32[8,4,32], index: 7, kind: input, shape index: {}]
  %s8 = inlined_call_operand.vmem [shape: f32[1,32], index: 8, kind: input, shape index: {}]
  %s9 = inlined_call_operand.vmem [shape: f32[32,128], index: 9, kind: input, shape index: {}]
  %s10 = inlined_call_operand.vmem [shape: f32[1,128], index: 10, kind: input, shape index: {}]
  %s11 = inlined_call_operand.vmem [shape: f32[128,32], index: 11, kind: input, shape index: {}]
  %s12 = inlined_call_operand.vmem [shape: f32[1,32], index: 12, kind: input, shape index: {}]
  %s13 = inlined_call_operand.hbm [shape: f32[2,8,32], index: 13, kind: output, shape index: {}]
  %s14 = sld [smem:[#allocation0]]
  $region85: #{tpu_custom_call.1} parent=0
    _
  %s16 = ssub.s32 1, %s14
  %s17 = scalar_select 0, %s16, %s14
  $region1: #{tpu_custom_call.1} parent=0
    #allocation2 [shape = 'u8[8192]{0}', space=vmem, size = 0x2000, scoped, tag = 'output window, operand 0']
    #allocation3 [shape = 's32[2]{0}', space=sflag, size = 0x8, scoped, tag = 'scoped memory for tpu_custom_call.1']
    %18 = vsyncpa [#allocation3], 0
    %s19 = scalar_lea.sflag [#allocation3], 1
    %20 = vsyncpa %s19, 0
    loop: start=0, step=1, limit=4
    $region2: #{tpu_custom_call.1} parent=1 // loop_pre_header
      _
    $region3: #{tpu_custom_call.1} parent=1 // loop_header
      %s22 = sphi 0, %s26
      %p23 = scmp.ge.s32.totalorder %s22, 4
      %s32 = sphi 0, %s34
      %s35 = sphi 0, %s32
      %s36 = sphi 0, %s35
      %s52 = sphi 0, %s36
      %s58 = sphi 0, %s60
      %s61 = sphi 0, %s58
      %s62 = sphi 0, %s61
      %s78 = sphi 0, %s62
      %s84 = sphi 0, %s86
      %s87 = sphi 0, %s84
      %s88 = sphi 0, %s87
      %s104 = sphi 0, %s88
      %s110 = sphi 0, %s112
      %s113 = sphi 0, %s110
      %s114 = sphi 0, %s113
      %s130 = sphi 0, %s114
      %s134 = sphi 0, %s134
      %s136 = sphi 0, %s134
      %s137 = sphi 0, %s136
      %s151 = sphi 0, %s137
      %s155 = sphi 0, %s155
      %s157 = sphi 0, %s155
      %s158 = sphi 0, %s157
      %s172 = sphi 0, %s158
      %s176 = sphi 0, %s176
      %s178 = sphi 0, %s176
      %s179 = sphi 0, %s178
      %s193 = sphi 0, %s179
      %s197 = sphi 0, %s197
      %s199 = sphi 0, %s197
      %s200 = sphi 0, %s199
      %s214 = sphi 0, %s200
      %s218 = sphi 0, %s218
      %s220 = sphi 0, %s218
      %s221 = sphi 0, %s220
      %s235 = sphi 0, %s221
      %s239 = sphi 0, %s239
      %s241 = sphi 0, %s239
      %s242 = sphi 0, %s241
      %s256 = sphi 0, %s242
      %s260 = sphi 0, %s260
      %s262 = sphi 0, %s260
      %s263 = sphi 0, %s262
      %s277 = sphi 0, %s263
      %s281 = sphi 0, %s281
      %s283 = sphi 0, %s281
      %s284 = sphi 0, %s283
      %s298 = sphi 0, %s284
      %s302 = sphi 0, %s302
      %s304 = sphi 0, %s302
      %s305 = sphi 0, %s304
      %s319 = sphi 0, %s305
      %s325 = sphi 0, %s327
      %s328 = sphi 0, %s325
      %s329 = sphi 0, %s328
      %s345 = sphi 0, %s329
    $region4: #{tpu_custom_call.1} parent=1 // loop_header_branch
      %25 = sbr.rel (%p23) target = $region8
    $region5: #{tpu_custom_call.1} parent=1 // loop_body
      %s27 = ssub.s32 %s22, 1
      %s28 = ssub.s32 %s22, 2
      %s29 = sadd.s32 %s22, 1
      %s30 = ssub.s32 %s22, %s29
      %p31 = scmp.eq.s32.totalorder %s30, 0
      %s33 = sadd.s32 %s32, 1
      %s34 = scalar_select %p31, %s32, %s33
      %p37 = pneg %p31
      %p38 = scmp.eq.s32.totalorder %s22, 1
      %p39 = por %p37, %p38
      %p40 = scmp.ne.s32.totalorder %s32, %s35
      %p41 = scmp.eq.s32.totalorder %s22, 0
      %p42 = por %p40, %p41
      %p43 = scmp.ne.s32.totalorder %s32, %s35
      %p44 = scmp.eq.s32.totalorder %s27, 1
      %p45 = por %p43, %p44
      %p46 = scmp.ne.s32.totalorder %s35, %s36
      %p47 = scmp.eq.s32.totalorder %s27, 0
      %p48 = por %p46, %p47
      %p49 = scmp.ne.s32.totalorder %s35, %s36
      %p50 = scmp.eq.s32.totalorder %s28, 1
      %p51 = por %p49, %p50
      %p53 = scmp.ne.s32.totalorder %s36, %s52
      %p54 = scmp.eq.s32.totalorder %s28, 0
      %p55 = por %p53, %p54
      %s56 = ssub.s32 %s22, %s29
      %p57 = scmp.eq.s32.totalorder %s56, 0
      %s59 = sadd.s32 %s58, 1
      %s60 = scalar_select %p57, %s58, %s59
      %p63 = pneg %p57
      %p64 = scmp.eq.s32.totalorder %s22, 1
      %p65 = por %p63, %p64
      %p66 = scmp.ne.s32.totalorder %s58, %s61
      %p67 = scmp.eq.s32.totalorder %s22, 0
      %p68 = por %p66, %p67
      %p69 = scmp.ne.s32.totalorder %s58, %s61
      %p70 = scmp.eq.s32.totalorder %s27, 1
      %p71 = por %p69, %p70
      %p72 = scmp.ne.s32.totalorder %s61, %s62
      %p73 = scmp.eq.s32.totalorder %s27, 0
      %p74 = por %p72, %p73
      %p75 = scmp.ne.s32.totalorder %s61, %s62
      %p76 = scmp.eq.s32.totalorder %s28, 1
      %p77 = por %p75, %p76
      %p79 = scmp.ne.s32.totalorder %s62, %s78
      %p80 = scmp.eq.s32.totalorder %s28, 0
      %p81 = por %p79, %p80
      %s82 = ssub.s32 %s22, %s29
      %p83 = scmp.eq.s32.totalorder %s82, 0
      %s85 = sadd.s32 %s84, 1
      %s86 = scalar_select %p83, %s84, %s85
      %p89 = pneg %p83
      %p90 = scmp.eq.s32.totalorder %s22, 1
      %p91 = por %p89, %p90
      %p92 = scmp.ne.s32.totalorder %s84, %s87
      %p93 = scmp.eq.s32.totalorder %s22, 0
      %p94 = por %p92, %p93
      %p95 = scmp.ne.s32.totalorder %s84, %s87
      %p96 = scmp.eq.s32.totalorder %s27, 1
      %p97 = por %p95, %p96
      %p98 = scmp.ne.s32.totalorder %s87, %s88
      %p99 = scmp.eq.s32.totalorder %s27, 0
      %p100 = por %p98, %p99
      %p101 = scmp.ne.s32.totalorder %s87, %s88
      %p102 = scmp.eq.s32.totalorder %s28, 1
      %p103 = por %p101, %p102
      %p105 = scmp.ne.s32.totalorder %s88, %s104
      %p106 = scmp.eq.s32.totalorder %s28, 0
      %p107 = por %p105, %p106
      %s108 = ssub.s32 %s22, %s29
      %p109 = scmp.eq.s32.totalorder %s108, 0
      %s111 = sadd.s32 %s110, 1
      %s112 = scalar_select %p109, %s110, %s111
      %p115 = pneg %p109
      %p116 = scmp.eq.s32.totalorder %s22, 1
      %p117 = por %p115, %p116
      %p118 = scmp.ne.s32.totalorder %s110, %s113
      %p119 = scmp.eq.s32.totalorder %s22, 0
      %p120 = por %p118, %p119
      %p121 = scmp.ne.s32.totalorder %s110, %s113
      %p122 = scmp.eq.s32.totalorder %s27, 1
      %p123 = por %p121, %p122
      %p124 = scmp.ne.s32.totalorder %s113, %s114
      %p125 = scmp.eq.s32.totalorder %s27, 0
      %p126 = por %p124, %p125
      %p127 = scmp.ne.s32.totalorder %s113, %s114
      %p128 = scmp.eq.s32.totalorder %s28, 1
      %p129 = por %p127, %p128
      %p131 = scmp.ne.s32.totalorder %s114, %s130
      %p132 = scmp.eq.s32.totalorder %s28, 0
      %p133 = por %p131, %p132
      %s135 = sadd.s32 %s134, 1
      %p138 = scmp.eq.s32.totalorder %s22, 1
      %p139 = scmp.ne.s32.totalorder %s134, %s136
      %p140 = scmp.eq.s32.totalorder %s22, 0
      %p141 = por %p139, %p140
      %p142 = scmp.ne.s32.totalorder %s134, %s136
      %p143 = scmp.eq.s32.totalorder %s27, 1
      %p144 = por %p142, %p143
      %p145 = scmp.ne.s32.totalorder %s136, %s137
      %p146 = scmp.eq.s32.totalorder %s27, 0
      %p147 = por %p145, %p146
      %p148 = scmp.ne.s32.totalorder %s136, %s137
      %p149 = scmp.eq.s32.totalorder %s28, 1
      %p150 = por %p148, %p149
      %p152 = scmp.ne.s32.totalorder %s137, %s151
      %p153 = scmp.eq.s32.totalorder %s28, 0
      %p154 = por %p152, %p153
      %s156 = sadd.s32 %s155, 1
      %p159 = scmp.eq.s32.totalorder %s22, 1
      %p160 = scmp.ne.s32.totalorder %s155, %s157
      %p161 = scmp.eq.s32.totalorder %s22, 0
      %p162 = por %p160, %p161
      %p163 = scmp.ne.s32.totalorder %s155, %s157
      %p164 = scmp.eq.s32.totalorder %s27, 1
      %p165 = por %p163, %p164
      %p166 = scmp.ne.s32.totalorder %s157, %s158
      %p167 = scmp.eq.s32.totalorder %s27, 0
      %p168 = por %p166, %p167
      %p169 = scmp.ne.s32.totalorder %s157, %s158
      %p170 = scmp.eq.s32.totalorder %s28, 1
      %p171 = por %p169, %p170
      %p173 = scmp.ne.s32.totalorder %s158, %s172
      %p174 = scmp.eq.s32.totalorder %s28, 0
      %p175 = por %p173, %p174
      %s177 = sadd.s32 %s176, 1
      %p180 = scmp.eq.s32.totalorder %s22, 1
      %p181 = scmp.ne.s32.totalorder %s176, %s178
      %p182 = scmp.eq.s32.totalorder %s22, 0
      %p183 = por %p181, %p182
      %p184 = scmp.ne.s32.totalorder %s176, %s178
      %p185 = scmp.eq.s32.totalorder %s27, 1
      %p186 = por %p184, %p185
      %p187 = scmp.ne.s32.totalorder %s178, %s179
      %p188 = scmp.eq.s32.totalorder %s27, 0
      %p189 = por %p187, %p188
      %p190 = scmp.ne.s32.totalorder %s178, %s179
      %p191 = scmp.eq.s32.totalorder %s28, 1
      %p192 = por %p190, %p191
      %p194 = scmp.ne.s32.totalorder %s179, %s193
      %p195 = scmp.eq.s32.totalorder %s28, 0
      %p196 = por %p194, %p195
      %s198 = sadd.s32 %s197, 1
      %p201 = scmp.eq.s32.totalorder %s22, 1
      %p202 = scmp.ne.s32.totalorder %s197, %s199
      %p203 = scmp.eq.s32.totalorder %s22, 0
      %p204 = por %p202, %p203
      %p205 = scmp.ne.s32.totalorder %s197, %s199
      %p206 = scmp.eq.s32.totalorder %s27, 1
      %p207 = por %p205, %p206
      %p208 = scmp.ne.s32.totalorder %s199, %s200
      %p209 = scmp.eq.s32.totalorder %s27, 0
      %p210 = por %p208, %p209
      %p211 = scmp.ne.s32.totalorder %s199, %s200
      %p212 = scmp.eq.s32.totalorder %s28, 1
      %p213 = por %p211, %p212
      %p215 = scmp.ne.s32.totalorder %s200, %s214
      %p216 = scmp.eq.s32.totalorder %s28, 0
      %p217 = por %p215, %p216
      %s219 = sadd.s32 %s218, 1
      %p222 = scmp.eq.s32.totalorder %s22, 1
      %p223 = scmp.ne.s32.totalorder %s218, %s220
      %p224 = scmp.eq.s32.totalorder %s22, 0
      %p225 = por %p223, %p224
      %p226 = scmp.ne.s32.totalorder %s218, %s220
      %p227 = scmp.eq.s32.totalorder %s27, 1
      %p228 = por %p226, %p227
      %p229 = scmp.ne.s32.totalorder %s220, %s221
      %p230 = scmp.eq.s32.totalorder %s27, 0
      %p231 = por %p229, %p230
      %p232 = scmp.ne.s32.totalorder %s220, %s221
      %p233 = scmp.eq.s32.totalorder %s28, 1
      %p234 = por %p232, %p233
      %p236 = scmp.ne.s32.totalorder %s221, %s235
      %p237 = scmp.eq.s32.totalorder %s28, 0
      %p238 = por %p236, %p237
      %s240 = sadd.s32 %s239, 1
      %p243 = scmp.eq.s32.totalorder %s22, 1
      %p244 = scmp.ne.s32.totalorder %s239, %s241
      %p245 = scmp.eq.s32.totalorder %s22, 0
      %p246 = por %p244, %p245
      %p247 = scmp.ne.s32.totalorder %s239, %s241
      %p248 = scmp.eq.s32.totalorder %s27, 1
      %p249 = por %p247, %p248
      %p250 = scmp.ne.s32.totalorder %s241, %s242
      %p251 = scmp.eq.s32.totalorder %s27, 0
      %p252 = por %p250, %p251
      %p253 = scmp.ne.s32.totalorder %s241, %s242
      %p254 = scmp.eq.s32.totalorder %s28, 1
      %p255 = por %p253, %p254
      %p257 = scmp.ne.s32.totalorder %s242, %s256
      %p258 = scmp.eq.s32.totalorder %s28, 0
      %p259 = por %p257, %p258
      %s261 = sadd.s32 %s260, 1
      %p264 = scmp.eq.s32.totalorder %s22, 1
      %p265 = scmp.ne.s32.totalorder %s260, %s262
      %p266 = scmp.eq.s32.totalorder %s22, 0
      %p267 = por %p265, %p266
      %p268 = scmp.ne.s32.totalorder %s260, %s262
      %p269 = scmp.eq.s32.totalorder %s27, 1
      %p270 = por %p268, %p269
      %p271 = scmp.ne.s32.totalorder %s262, %s263
      %p272 = scmp.eq.s32.totalorder %s27, 0
      %p273 = por %p271, %p272
      %p274 = scmp.ne.s32.totalorder %s262, %s263
      %p275 = scmp.eq.s32.totalorder %s28, 1
      %p276 = por %p274, %p275
      %p278 = scmp.ne.s32.totalorder %s263, %s277
      %p279 = scmp.eq.s32.totalorder %s28, 0
      %p280 = por %p278, %p279
      %s282 = sadd.s32 %s281, 1
      %p285 = scmp.eq.s32.totalorder %s22, 1
      %p286 = scmp.ne.s32.totalorder %s281, %s283
      %p287 = scmp.eq.s32.totalorder %s22, 0
      %p288 = por %p286, %p287
      %p289 = scmp.ne.s32.totalorder %s281, %s283
      %p290 = scmp.eq.s32.totalorder %s27, 1
      %p291 = por %p289, %p290
      %p292 = scmp.ne.s32.totalorder %s283, %s284
      %p293 = scmp.eq.s32.totalorder %s27, 0
      %p294 = por %p292, %p293
      %p295 = scmp.ne.s32.totalorder %s283, %s284
      %p296 = scmp.eq.s32.totalorder %s28, 1
      %p297 = por %p295, %p296
      %p299 = scmp.ne.s32.totalorder %s284, %s298
      %p300 = scmp.eq.s32.totalorder %s28, 0
      %p301 = por %p299, %p300
      %s303 = sadd.s32 %s302, 1
      %p306 = scmp.eq.s32.totalorder %s22, 1
      %p307 = scmp.ne.s32.totalorder %s302, %s304
      %p308 = scmp.eq.s32.totalorder %s22, 0
      %p309 = por %p307, %p308
      %p310 = scmp.ne.s32.totalorder %s302, %s304
      %p311 = scmp.eq.s32.totalorder %s27, 1
      %p312 = por %p310, %p311
      %p313 = scmp.ne.s32.totalorder %s304, %s305
      %p314 = scmp.eq.s32.totalorder %s27, 0
      %p315 = por %p313, %p314
      %p316 = scmp.ne.s32.totalorder %s304, %s305
      %p317 = scmp.eq.s32.totalorder %s28, 1
      %p318 = por %p316, %p317
      %p320 = scmp.ne.s32.totalorder %s305, %s319
      %p321 = scmp.eq.s32.totalorder %s28, 0
      %p322 = por %p320, %p321
      %s323 = ssub.s32 %s22, %s29
      %p324 = scmp.eq.s32.totalorder %s323, 0
      %s326 = sadd.s32 %s325, 1
      %s327 = scalar_select %p324, %s325, %s326
      %p330 = pneg %p324
      %p331 = scmp.eq.s32.totalorder %s22, 1
      %p332 = por %p330, %p331
      %p333 = scmp.ne.s32.totalorder %s325, %s328
      %p334 = scmp.eq.s32.totalorder %s22, 0
      %p335 = por %p333, %p334
      %p336 = scmp.ne.s32.totalorder %s325, %s328
      %p337 = scmp.eq.s32.totalorder %s27, 1
      %p338 = por %p336, %p337
      %p339 = scmp.ne.s32.totalorder %s328, %s329
      %p340 = scmp.eq.s32.totalorder %s27, 0
      %p341 = por %p339, %p340
      %p342 = scmp.ne.s32.totalorder %s328, %s329
      %p343 = scmp.eq.s32.totalorder %s28, 1
      %p344 = por %p342, %p343
      %p346 = scmp.ne.s32.totalorder %s329, %s345
      %p347 = scmp.eq.s32.totalorder %s28, 0
      %p348 = por %p346, %p347
      %p349 = scmp.le.s32.totalorder 1, %s22
      %p350 = scmp.lt.s32.totalorder %s22, 3
      %p351 = pnand %p349, %p350
      %p352 = pneg %p351
      // Predicated region
      $region9: #{tpu_custom_call.1} parent=5 // pred_check
        _
      $region10: #{tpu_custom_call.1} parent=5 // pred_check_branch
        %354 = sbr.rel (%p351) target = $region12
      $region11: #{tpu_custom_call.1} parent=5 // pred_region
        %s355 = ssub.s32 %s22, 1
        // Predicated region
        $region13: #{tpu_custom_call.1} parent=11 // pred_check
          %p356 = pneg %p147
        $region14: #{tpu_custom_call.1} parent=11 // pred_check_branch
          %358 = sbr.rel (%p356) target = $region16
        $region15: #{tpu_custom_call.1} parent=11 // pred_region
          _
        $region16: #{tpu_custom_call.1} parent=11 // pred_fallthru
          _
        // Predicated region
        $region17: #{tpu_custom_call.1} parent=11 // pred_check
          %p359 = pneg %p168
        $region18: #{tpu_custom_call.1} parent=11 // pred_check_branch
          %361 = sbr.rel (%p359) target = $region20
        $region19: #{tpu_custom_call.1} parent=11 // pred_region
          _
        $region20: #{tpu_custom_call.1} parent=11 // pred_fallthru
          _
        // Predicated region
        $region21: #{tpu_custom_call.1} parent=11 // pred_check
          %p362 = pneg %p189
        $region22: #{tpu_custom_call.1} parent=11 // pred_check_branch
          %364 = sbr.rel (%p362) target = $region24
        $region23: #{tpu_custom_call.1} parent=11 // pred_region
          _
        $region24: #{tpu_custom_call.1} parent=11 // pred_fallthru
          _
        // Predicated region
        $region25: #{tpu_custom_call.1} parent=11 // pred_check
          %p365 = pneg %p210
        $region26: #{tpu_custom_call.1} parent=11 // pred_check_branch
          %367 = sbr.rel (%p365) target = $region28
        $region27: #{tpu_custom_call.1} parent=11 // pred_region
          _
        $region28: #{tpu_custom_call.1} parent=11 // pred_fallthru
          _
        // Predicated region
        $region29: #{tpu_custom_call.1} parent=11 // pred_check
          %p368 = pneg %p231
        $region30: #{tpu_custom_call.1} parent=11 // pred_check_branch
          %370 = sbr.rel (%p368) target = $region32
        $region31: #{tpu_custom_call.1} parent=11 // pred_region
          _
        $region32: #{tpu_custom_call.1} parent=11 // pred_fallthru
          _
        // Predicated region
        $region33: #{tpu_custom_call.1} parent=11 // pred_check
          %p371 = pneg %p252
        $region34: #{tpu_custom_call.1} parent=11 // pred_check_branch
          %373 = sbr.rel (%p371) target = $region36
        $region35: #{tpu_custom_call.1} parent=11 // pred_region
          _
        $region36: #{tpu_custom_call.1} parent=11 // pred_fallthru
          _
        // Predicated region
        $region37: #{tpu_custom_call.1} parent=11 // pred_check
          %p374 = pneg %p273
        $region38: #{tpu_custom_call.1} parent=11 // pred_check_branch
          %376 = sbr.rel (%p374) target = $region40
        $region39: #{tpu_custom_call.1} parent=11 // pred_region
          _
        $region40: #{tpu_custom_call.1} parent=11 // pred_fallthru
          _
        // Predicated region
        $region41: #{tpu_custom_call.1} parent=11 // pred_check
          %p377 = pneg %p294
        $region42: #{tpu_custom_call.1} parent=11 // pred_check_branch
          %379 = sbr.rel (%p377) target = $region44
        $region43: #{tpu_custom_call.1} parent=11 // pred_region
          _
        $region44: #{tpu_custom_call.1} parent=11 // pred_fallthru
          _
        // Predicated region
        $region45: #{tpu_custom_call.1} parent=11 // pred_check
          %p380 = pneg %p315
        $region46: #{tpu_custom_call.1} parent=11 // pred_check_branch
          %382 = sbr.rel (%p380) target = $region48
        $region47: #{tpu_custom_call.1} parent=11 // pred_region
          _
        $region48: #{tpu_custom_call.1} parent=11 // pred_fallthru
          _
      $region12: #{tpu_custom_call.1} parent=5 // pred_fallthru
        _
      %p383 = scmp.lt.s32.totalorder %s22, 2
      // Predicated region
      $region49: #{tpu_custom_call.1} parent=5 // pred_check
        %p384 = pneg %p383
      $region50: #{tpu_custom_call.1} parent=5 // pred_check_branch
        %386 = sbr.rel (%p384) target = $region52
      $region51: #{tpu_custom_call.1} parent=5 // pred_region
        // Predicated region
        $region53: #{tpu_custom_call.1} parent=51 // pred_check
          %p387 = pneg %p42
        $region54: #{tpu_custom_call.1} parent=51 // pred_check_branch
          %389 = sbr.rel (%p387) target = $region56
        $region55: #{tpu_custom_call.1} parent=51 // pred_region
          %p390 = scmp.lt.s32.totalorder %s22, 1
          %s391 = scalar_select %p390, %s22, 1
          %s392 = smul.addr %s391, 8
          %s393 = scalar_lea.vmem %s0, %s392
        $region56: #{tpu_custom_call.1} parent=51 // pred_fallthru
          _
        // Predicated region
        $region57: #{tpu_custom_call.1} parent=51 // pred_check
          %p394 = pneg %p68
        $region58: #{tpu_custom_call.1} parent=51 // pred_check_branch
          %396 = sbr.rel (%p394) target = $region60
        $region59: #{tpu_custom_call.1} parent=51 // pred_region
          %p397 = scmp.lt.s32.totalorder %s22, 1
          %s398 = scalar_select %p397, %s22, 1
          %s399 = smul.addr %s398, 2
          %s400 = smul.addr %s399, 8
          %s401 = scalar_lea.vmem %s1, %s400
        $region60: #{tpu_custom_call.1} parent=51 // pred_fallthru
          _
        // Predicated region
        $region61: #{tpu_custom_call.1} parent=51 // pred_check
          %p402 = pneg %p94
        $region62: #{tpu_custom_call.1} parent=51 // pred_check_branch
          %404 = sbr.rel (%p402) target = $region64
        $region63: #{tpu_custom_call.1} parent=51 // pred_region
          %p405 = scmp.lt.s32.totalorder %s22, 1
          %s406 = scalar_select %p405, %s22, 1
          %s407 = smul.addr %s406, 8
          %s408 = scalar_lea.vmem %s2, %s407
        $region64: #{tpu_custom_call.1} parent=51 // pred_fallthru
          _
        // Predicated region
        $region65: #{tpu_custom_call.1} parent=51 // pred_check
          %p409 = pneg %p120
        $region66: #{tpu_custom_call.1} parent=51 // pred_check_branch
          %411 = sbr.rel (%p409) target = $region68
        $region67: #{tpu_custom_call.1} parent=51 // pred_region
          %p412 = scmp.lt.s32.totalorder %s22, 1
          %s413 = scalar_select %p412, %s22, 1
          %s414 = smul.addr %s413, 8
          %s415 = scalar_lea.vmem %s3, %s414
        $region68: #{tpu_custom_call.1} parent=51 // pred_fallthru
          _
      $region52: #{tpu_custom_call.1} parent=5 // pred_fallthru
        _
      %p416 = scmp.le.s32.totalorder 1, %s22
      %p417 = scmp.lt.s32.totalorder %s22, 3
      %p418 = pnand %p416, %p417
      %p419 = pneg %p418
      // Predicated region
      $region69: #{tpu_custom_call.1} parent=5 // pred_check
        _
      $region70: #{tpu_custom_call.1} parent=5 // pred_check_branch
        %421 = sbr.rel (%p418) target = $region72
      $region71: #{tpu_custom_call.1} parent=5 // pred_region
        %s422 = ssub.s32 %s22, 1
        %p423 = scmp.lt.s32.totalorder %s27, 1
        %s424 = scalar_select %p423, %s27, 1
        %s425 = smul.addr %s424, 8
        %s426 = scalar_lea.vmem %s0, %s425
        %p427 = pneg %p48
        %p428 = pneg %p45
        %p429 = scmp.lt.s32.totalorder %s27, 1
        %s430 = scalar_select %p429, %s27, 1
        %s431 = smul.addr %s430, 2
        %s432 = smul.addr %s431, 8
        %s433 = scalar_lea.vmem %s1, %s432
        %p434 = pneg %p74
        %p435 = pneg %p71
        %p436 = scmp.lt.s32.totalorder %s27, 1
        %s437 = scalar_select %p436, %s27, 1
        %s438 = smul.addr %s437, 8
        %s439 = scalar_lea.vmem %s2, %s438
        %p440 = pneg %p100
        %p441 = pneg %p97
        %p442 = scmp.lt.s32.totalorder %s27, 1
        %s443 = scalar_select %p442, %s27, 1
        %s444 = smul.addr %s443, 8
        %s445 = scalar_lea.vmem %s3, %s444
        %p446 = pneg %p126
        %p447 = pneg %p123
        %p448 = pneg %p147
        %p449 = pneg %p144
        %p450 = pneg %p168
        %p451 = pneg %p165
        %p452 = pneg %p189
        %p453 = pneg %p186
        %p454 = pneg %p210
        %p455 = pneg %p207
        %p456 = pneg %p231
        %p457 = pneg %p228
        %p458 = pneg %p252
        %p459 = pneg %p249
        %p460 = pneg %p273
        %p461 = pneg %p270
        %p462 = pneg %p294
        %p463 = pneg %p291
        %p464 = pneg %p315
        %p465 = pneg %p312
        %p466 = pneg %p341
        %p467 = pneg %p338
        %s468 = sand.u32 %s328, 1
        %s469 = scalar_lea.sflag [#allocation3], %s468
        %s470 = sand.u32 %s328, 1
        %s471 = smul.addr %s470, 8
        %s472 = scalar_lea.vmem [#allocation2], %s471
        %p473 = scmp.lt.s32.totalorder %s27, 1
        %s474 = scalar_select %p473, %s27, 1
        %s475 = smul.addr %s474, 8
        %s476 = scalar_lea.vmem %s0, %s475
        %p477 = scmp.lt.s32.totalorder %s27, 1
        %s478 = scalar_select %p477, %s27, 1
        %s479 = smul.addr %s478, 2
        %s480 = smul.addr %s479, 8
        %s481 = scalar_lea.vmem %s1, %s480
        %p482 = scmp.lt.s32.totalorder %s27, 1
        %s483 = scalar_select %p482, %s27, 1
        %s484 = smul.addr %s483, 8
        %s485 = scalar_lea.vmem %s2, %s484
        %p486 = scmp.lt.s32.totalorder %s27, 1
        %s487 = scalar_select %p486, %s27, 1
        %s488 = smul.addr %s487, 8
        %s489 = scalar_lea.vmem %s3, %s488
        %v490 = vld [vmem:[%s476] sm:$0xff]
        %v491 = vld [vmem:[%s481] sm:$0xff]
        %v492 = vld [vmem:[%s481 + $0x8] sm:$0xf]
        %v493 = vld [vmem:[%s485] sm:$0xff]
        %v494 = vld [vmem:[%s489] sm:$0xff]
        %v495 = vld [vmem:[%s4] sm:$0x3f]
        %v496 = vld [vmem:[%s5] sm:$0xff]
        %v497 = vld [vmem:[%s5 + $0x8] sm:$0xff]
        %v498 = vld [vmem:[%s5 + $0x10] sm:$0xff]
        %v499 = vld [vmem:[%s5 + $0x18] sm:$0xff]
        %v500 = vld [vmem:[%s6] sm:$0x1]
        %v501 = vld [vmem:[%s7] sm:$0xf]
        %v502 = vld [vmem:[%s7 + $0x4] sm:$0xf]
        %v503 = vld [vmem:[%s7 + $0x8] sm:$0xf]
        %v504 = vld [vmem:[%s7 + $0xc] sm:$0xf]
        %v505 = vld [vmem:[%s7 + $0x10] sm:$0xf]
        %v506 = vld [vmem:[%s7 + $0x14] sm:$0xf]
        %v507 = vld [vmem:[%s7 + $0x18] sm:$0xf]
        %v508 = vld [vmem:[%s7 + $0x1c] sm:$0xf]
        %v509 = vld [vmem:[%s8] sm:$0x1]
        %v510 = vld [vmem:[%s9] sm:$0xff]
        %v511 = vld [vmem:[%s9 + $0x8] sm:$0xff]
        %v512 = vld [vmem:[%s9 + $0x10] sm:$0xff]
        %v513 = vld [vmem:[%s9 + $0x18] sm:$0xff]
        %v514 = vld [vmem:[%s10] sm:$0x1]
        %v515 = vld [vmem:[%s11] sm:$0xff]
        %v516 = vld [vmem:[%s11 + $0x8] sm:$0xff]
        %v517 = vld [vmem:[%s11 + $0x10] sm:$0xff]
        %v518 = vld [vmem:[%s11 + $0x18] sm:$0xff]
        %v519 = vld [vmem:[%s11 + $0x20] sm:$0xff]
        %v520 = vld [vmem:[%s11 + $0x28] sm:$0xff]
        %v521 = vld [vmem:[%s11 + $0x30] sm:$0xff]
        %v522 = vld [vmem:[%s11 + $0x38] sm:$0xff]
        %v523 = vld [vmem:[%s11 + $0x40] sm:$0xff]
        %v524 = vld [vmem:[%s11 + $0x48] sm:$0xff]
        %v525 = vld [vmem:[%s11 + $0x50] sm:$0xff]
        %v526 = vld [vmem:[%s11 + $0x58] sm:$0xff]
        %v527 = vld [vmem:[%s11 + $0x60] sm:$0xff]
        %v528 = vld [vmem:[%s11 + $0x68] sm:$0xff]
        %v529 = vld [vmem:[%s11 + $0x70] sm:$0xff]
        %v530 = vld [vmem:[%s11 + $0x78] sm:$0xff]
        %v531 = vld [vmem:[%s12] sm:$0x1]
        %vm532 = vcmask 261120
        %v533 = vsel %vm532, %v490, 0.0
        %534 = vadd.xlane.f32.xlu0 %v533
        %v535 = vpop.xlane.xlu0 %534
        %v536 = vrcp.pop 32.0
        %v537 = vmul.f32 %v535, %v536
        %v538 = vsub.f32 %v490, %v537
        %v539 = vmul.f32 %v538, %v538
        %v540 = vsel %vm532, %v539, 0.0
        %541 = vadd.xlane.f32.xlu0 %v540
        %v542 = vpop.xlane.xlu0 %541
        %v543 = vmul.f32 %v542, %v536
        %v544 = vadd.f32 %v543, 1e-05
        %v545 = vrsqrt.pop %v544
        %v546 = vmul.f32 %v538, %v545
        %v547 = vlaneseq
        %v548 = vshrl.u32 %v547, 7
        %v549 = vsub.s32 0, %v548
        %v550 = vrot.slane %v495, %v549
        %v551 = vmul.f32 %v546, %v550
        %v552 = vlaneseq
        %v553 = vshrl.u32 %v552, 7
        %v554 = vsub.s32 1, %v553
        %v555 = vrot.slane %v495, %v554
        %v556 = vadd.f32 %v551, %v555
        %v558 = vlaneseq
        %v559 = vshrl.u32 %v558, 7
        %v560 = vsub.s32 0, %v559
        %v561 = vrot.slane %v500, %v560
        %v564 = vsel %vm532, %v556, 0
        %566 = vmatprep.subr.mxu0 0.0
        %567 = vmatpush1.msra.mxu0 %v496
        %568 = vmatprep.subr.mxu0 0.0
        %569 = vmatpush1.msra.mxu0 %v497
        %570 = vmatprep.subr.mxu0 0.0
        %571 = vmatpush1.msra.mxu0 %v498
        %572 = vmatprep.subr.mxu0 0.0
        %573 = vmatpush1.msra.mxu0 %v499
        %574 = vmatprep.subr.mxu0 0.0
        %575 = vmatpush1.msra.mxu0 0.0
        %576 = vmatprep.subr.mxu0 0.0
        %577 = vmatpush1.msra.mxu0 0.0
        %578 = vmatprep.subr.mxu0 0.0
        %579 = vmatpush1.msra.mxu0 0.0
        %580 = vmatprep.subr.mxu0 0.0
        %581 = vmatpush1.msra.mxu0 0.0
        %582 = vmatprep.subr.mxu0 0.0
        %583 = vmatpush1.msra.mxu0 0.0
        %584 = vmatprep.subr.mxu0 0.0
        %585 = vmatpush1.msra.mxu0 0.0
        %586 = vmatprep.subr.mxu0 0.0
        %587 = vmatpush1.msra.mxu0 0.0
        %588 = vmatprep.subr.mxu0 0.0
        %589 = vmatpush1.msra.mxu0 0.0
        %590 = vmatprep.subr.mxu0 0.0
        %591 = vmatpush1.msra.mxu0 0.0
        %592 = vmatprep.subr.mxu0 0.0
        %593 = vmatpush1.msra.mxu0 0.0
        %594 = vmatprep.subr.mxu0 0.0
        %595 = vmatpush1.msra.mxu0 0.0
        %596 = vmatprep.subr.mxu0 0.0
        %597 = vmatpush1.msra.mxu0 0.0
        %598 = vmatprep.subr.mxu0 0.0
        %599 = vmatpush1.msra.mxu0 0.0
        %600 = vmatprep.subr.mxu0 0.0
        %601 = vmatpush1.msra.mxu0 0.0
        %602 = vmatprep.subr.mxu0 0.0
        %603 = vmatpush1.msra.mxu0 0.0
        %604 = vmatprep.subr.mxu0 0.0
        %605 = vmatpush1.msra.mxu0 0.0
        %606 = vmatprep.subr.mxu0 0.0
        %607 = vmatpush1.msra.mxu0 0.0
        %608 = vmatprep.subr.mxu0 0.0
        %609 = vmatpush1.msra.mxu0 0.0
        %610 = vmatprep.subr.mxu0 0.0
        %611 = vmatpush1.msra.mxu0 0.0
        %612 = vmatprep.subr.mxu0 0.0
        %613 = vmatpush1.msra.mxu0 0.0
        %614 = vmatprep.subr.mxu0 0.0
        %615 = vmatpush1.msra.mxu0 0.0
        %616 = vmatprep.subr.mxu0 0.0
        %617 = vmatpush1.msra.mxu0 0.0
        %618 = vmatprep.subr.mxu0 0.0
        %619 = vmatpush1.msra.mxu0 0.0
        %620 = vmatprep.subr.mxu0 0.0
        %621 = vmatpush1.msra.mxu0 0.0
        %622 = vmatprep.subr.mxu0 0.0
        %623 = vmatpush1.msra.mxu0 0.0
        %624 = vmatprep.subr.mxu0 0.0
        %625 = vmatpush1.msra.mxu0 0.0
        %626 = vmatprep.subr.mxu0 0.0
        %627 = vmatpush1.msra.mxu0 0.0
        %628 = vmatprep.subr.mxu0 0.0
        %629 = vmatpush1.msra.mxu0 0.0
        %630 = vmatprep.mubr.f32.mxu0 0.0
        %631 = vmatmul.mubr.f32.gmra.mrb[0].mxu0 %v564
        %v632 = vpop.f32.mrb[0].mxu0
        %v633 = vadd.f32 %v561, %v632
        %v634 = vpop.f32.mrb[0].mxu0
        %635 = vdwg.mxu0
        %637 = vrot.lane.b32.xlu0 %v633, 96
        %v638 = vpop.permute.xlu0 %637
        %vm639 = vcmask 31744
        %v640 = vsel %vm639, %v633, 0
        %v642 = vsel %vm639, %v638, 0
        %644 = vmatprep.subr.mxu0 0.0
        %645 = vmatpush1.xpose.msra.mxu0 %v642
        %646 = vmatprep.subr.mxu0 0.0
        %647 = vmatpush1.xpose.msra.mxu0 0.0
        %648 = vmatprep.subr.mxu0 0.0
        %649 = vmatpush1.xpose.msra.mxu0 0.0
        %650 = vmatprep.subr.mxu0 0.0
        %651 = vmatpush1.xpose.msra.mxu0 0.0
        %652 = vmatprep.subr.mxu0 0.0
        %653 = vmatpush1.xpose.msra.mxu0 0.0
        %654 = vmatprep.subr.mxu0 0.0
        %655 = vmatpush1.xpose.msra.mxu0 0.0
        %656 = vmatprep.subr.mxu0 0.0
        %657 = vmatpush1.xpose.msra.mxu0 0.0
        %658 = vmatprep.subr.mxu0 0.0
        %659 = vmatpush1.xpose.msra.mxu0 0.0
        %660 = vmatprep.subr.mxu0 0.0
        %661 = vmatpush1.xpose.msra.mxu0 0.0
        %662 = vmatprep.subr.mxu0 0.0
        %663 = vmatpush1.xpose.msra.mxu0 0.0
        %664 = vmatprep.subr.mxu0 0.0
        %665 = vmatpush1.xpose.msra.mxu0 0.0
        %666 = vmatprep.subr.mxu0 0.0
        %667 = vmatpush1.xpose.msra.mxu0 0.0
        %668 = vmatprep.subr.mxu0 0.0
        %669 = vmatpush1.xpose.msra.mxu0 0.0
        %670 = vmatprep.subr.mxu0 0.0
        %671 = vmatpush1.xpose.msra.mxu0 0.0
        %672 = vmatprep.subr.mxu0 0.0
        %673 = vmatpush1.xpose.msra.mxu0 0.0
        %674 = vmatprep.subr.mxu0 0.0
        %675 = vmatpush1.xpose.msra.mxu0 0.0
        %676 = vmatprep.subr.mxu0 0.0
        %677 = vmatpush1.xpose.msra.mxu0 0.0
        %678 = vmatprep.subr.mxu0 0.0
        %679 = vmatpush1.xpose.msra.mxu0 0.0
        %680 = vmatprep.subr.mxu0 0.0
        %681 = vmatpush1.xpose.msra.mxu0 0.0
        %682 = vmatprep.subr.mxu0 0.0
        %683 = vmatpush1.xpose.msra.mxu0 0.0
        %684 = vmatprep.subr.mxu0 0.0
        %685 = vmatpush1.xpose.msra.mxu0 0.0
        %686 = vmatprep.subr.mxu0 0.0
        %687 = vmatpush1.xpose.msra.mxu0 0.0
        %688 = vmatprep.subr.mxu0 0.0
        %689 = vmatpush1.xpose.msra.mxu0 0.0
        %690 = vmatprep.subr.mxu0 0.0
        %691 = vmatpush1.xpose.msra.mxu0 0.0
        %692 = vmatprep.subr.mxu0 0.0
        %693 = vmatpush1.xpose.msra.mxu0 0.0
        %694 = vmatprep.subr.mxu0 0.0
        %695 = vmatpush1.xpose.msra.mxu0 0.0
        %696 = vmatprep.subr.mxu0 0.0
        %697 = vmatpush1.xpose.msra.mxu0 0.0
        %698 = vmatprep.subr.mxu0 0.0
        %699 = vmatpush1.xpose.msra.mxu0 0.0
        %700 = vmatprep.subr.mxu0 0.0
        %701 = vmatpush1.xpose.msra.mxu0 0.0
        %702 = vmatprep.subr.mxu0 0.0
        %703 = vmatpush1.xpose.msra.mxu0 0.0
        %704 = vmatprep.subr.mxu0 0.0
        %705 = vmatpush1.xpose.msra.mxu0 0.0
        %706 = vmatprep.subr.mxu0 0.0
        %707 = vmatpush1.xpose.msra.mxu0 0.0
        %708 = vmatprep.mubr.f32.mxu0 0.0
        %709 = vmatmul.mubr.f32.gmra.mrb[0].mxu0 %v640
        %v710 = vpop.f32.mrb[0].mxu0
        %v711 = vadd.f32 0.0, %v710
        %v712 = vpop.f32.mrb[0].mxu0
        %713 = vdwg.mxu0
        %v714 = vmul.f32 %v711, 0.5
        %v715 = vadd.f32 %v714, %v493
        %vm716 = vcmask 64512
        %v717 = vsel %vm716, %v715, -inf
        %718 = vmax.xlane.f32.xlu0 %v717
        %v719 = vpop.xlane.xlu0 %718
        %v720 = vsub.f32 %v715, %v719
        %v721 = vmul.f32 %v720, 1.442695
        %v722 = vpow.pop %v721
        %v723 = vsel %vm716, %v722, 0.0
        %724 = vadd.xlane.f32.xlu0 %v723
        %v725 = vpop.xlane.xlu0 %724
        %v726 = vrcp.pop %v725
        %v727 = vmul.f32 %v722, %v726
        %728 = vrot.lane.b32.xlu0 %v633, 64
        %v729 = vpop.permute.xlu0 %728
        %v732 = vsel %vm716, %v727, 0
        %734 = vmatprep.subr.mxu0 0.0
        %735 = vmatpush1.msra.mxu0 %v729
        %736 = vmatprep.subr.mxu0 0.0
        %737 = vmatpush1.msra.mxu0 0.0
        %738 = vmatprep.subr.mxu0 0.0
        %739 = vmatpush1.msra.mxu0 0.0
        %740 = vmatprep.subr.mxu0 0.0
        %741 = vmatpush1.msra.mxu0 0.0
        %742 = vmatprep.subr.mxu0 0.0
        %743 = vmatpush1.msra.mxu0 0.0
        %744 = vmatprep.subr.mxu0 0.0
        %745 = vmatpush1.msra.mxu0 0.0
        %746 = vmatprep.subr.mxu0 0.0
        %747 = vmatpush1.msra.mxu0 0.0
        %748 = vmatprep.subr.mxu0 0.0
        %749 = vmatpush1.msra.mxu0 0.0
        %750 = vmatprep.subr.mxu0 0.0
        %751 = vmatpush1.msra.mxu0 0.0
        %752 = vmatprep.subr.mxu0 0.0
        %753 = vmatpush1.msra.mxu0 0.0
        %754 = vmatprep.subr.mxu0 0.0
        %755 = vmatpush1.msra.mxu0 0.0
        %756 = vmatprep.subr.mxu0 0.0
        %757 = vmatpush1.msra.mxu0 0.0
        %758 = vmatprep.subr.mxu0 0.0
        %759 = vmatpush1.msra.mxu0 0.0
        %760 = vmatprep.subr.mxu0 0.0
        %761 = vmatpush1.msra.mxu0 0.0
        %762 = vmatprep.subr.mxu0 0.0
        %763 = vmatpush1.msra.mxu0 0.0
        %764 = vmatprep.subr.mxu0 0.0
        %765 = vmatpush1.msra.mxu0 0.0
        %766 = vmatprep.subr.mxu0 0.0
        %767 = vmatpush1.msra.mxu0 0.0
        %768 = vmatprep.subr.mxu0 0.0
        %769 = vmatpush1.msra.mxu0 0.0
        %770 = vmatprep.subr.mxu0 0.0
        %771 = vmatpush1.msra.mxu0 0.0
        %772 = vmatprep.subr.mxu0 0.0
        %773 = vmatpush1.msra.mxu0 0.0
        %774 = vmatprep.subr.mxu0 0.0
        %775 = vmatpush1.msra.mxu0 0.0
        %776 = vmatprep.subr.mxu0 0.0
        %777 = vmatpush1.msra.mxu0 0.0
        %778 = vmatprep.subr.mxu0 0.0
        %779 = vmatpush1.msra.mxu0 0.0
        %780 = vmatprep.subr.mxu0 0.0
        %781 = vmatpush1.msra.mxu0 0.0
        %782 = vmatprep.subr.mxu0 0.0
        %783 = vmatpush1.msra.mxu0 0.0
        %784 = vmatprep.subr.mxu0 0.0
        %785 = vmatpush1.msra.mxu0 0.0
        %786 = vmatprep.subr.mxu0 0.0
        %787 = vmatpush1.msra.mxu0 0.0
        %788 = vmatprep.subr.mxu0 0.0
        %789 = vmatpush1.msra.mxu0 0.0
        %790 = vmatprep.subr.mxu0 0.0
        %791 = vmatpush1.msra.mxu0 0.0
        %792 = vmatprep.subr.mxu0 0.0
        %793 = vmatpush1.msra.mxu0 0.0
        %794 = vmatprep.subr.mxu0 0.0
        %795 = vmatpush1.msra.mxu0 0.0
        %796 = vmatprep.subr.mxu0 0.0
        %797 = vmatpush1.msra.mxu0 0.0
        %798 = vmatprep.mubr.f32.mxu0 0.0
        %799 = vmatmul.mubr.f32.gmra.mrb[0].mxu0 %v732
        %v800 = vpop.f32.mrb[0].mxu0
        %v801 = vadd.f32 0.0, %v800
        %v802 = vpop.f32.mrb[0].mxu0
        %803 = vdwg.mxu0
        %v805 = vsel %vm639, %v801, 0
        %vm807 = vcmask 1043456
        %v809 = vsel %vm807, %v501, 0
        %811 = vmatprep.subr.mxu0 0.0
        %812 = vmatpush1.msra.mxu0 %v809
        %813 = vmatprep.subr.mxu0 0.0
        %814 = vmatpush1.msra.mxu0 0.0
        %815 = vmatprep.subr.mxu0 0.0
        %816 = vmatpush1.msra.mxu0 0.0
        %817 = vmatprep.subr.mxu0 0.0
        %818 = vmatpush1.msra.mxu0 0.0
        %819 = vmatprep.subr.mxu0 0.0
        %820 = vmatpush1.msra.mxu0 0.0
        %821 = vmatprep.subr.mxu0 0.0
        %822 = vmatpush1.msra.mxu0 0.0
        %823 = vmatprep.subr.mxu0 0.0
        %824 = vmatpush1.msra.mxu0 0.0
        %825 = vmatprep.subr.mxu0 0.0
        %826 = vmatpush1.msra.mxu0 0.0
        %827 = vmatprep.subr.mxu0 0.0
        %828 = vmatpush1.msra.mxu0 0.0
        %829 = vmatprep.subr.mxu0 0.0
        %830 = vmatpush1.msra.mxu0 0.0
        %831 = vmatprep.subr.mxu0 0.0
        %832 = vmatpush1.msra.mxu0 0.0
        %833 = vmatprep.subr.mxu0 0.0
        %834 = vmatpush1.msra.mxu0 0.0
        %835 = vmatprep.subr.mxu0 0.0
        %836 = vmatpush1.msra.mxu0 0.0
        %837 = vmatprep.subr.mxu0 0.0
        %838 = vmatpush1.msra.mxu0 0.0
        %839 = vmatprep.subr.mxu0 0.0
        %840 = vmatpush1.msra.mxu0 0.0
        %841 = vmatprep.subr.mxu0 0.0
        %842 = vmatpush1.msra.mxu0 0.0
        %843 = vmatprep.subr.mxu0 0.0
        %844 = vmatpush1.msra.mxu0 0.0
        %845 = vmatprep.subr.mxu0 0.0
        %846 = vmatpush1.msra.mxu0 0.0
        %847 = vmatprep.subr.mxu0 0.0
        %848 = vmatpush1.msra.mxu0 0.0
        %849 = vmatprep.subr.mxu0 0.0
        %850 = vmatpush1.msra.mxu0 0.0
        %851 = vmatprep.subr.mxu0 0.0
        %852 = vmatpush1.msra.mxu0 0.0
        %853 = vmatprep.subr.mxu0 0.0
        %854 = vmatpush1.msra.mxu0 0.0
        %855 = vmatprep.subr.mxu0 0.0
        %856 = vmatpush1.msra.mxu0 0.0
        %857 = vmatprep.subr.mxu0 0.0
        %858 = vmatpush1.msra.mxu0 0.0
        %859 = vmatprep.subr.mxu0 0.0
        %860 = vmatpush1.msra.mxu0 0.0
        %861 = vmatprep.subr.mxu0 0.0
        %862 = vmatpush1.msra.mxu0 0.0
        %863 = vmatprep.subr.mxu0 0.0
        %864 = vmatpush1.msra.mxu0 0.0
        %865 = vmatprep.subr.mxu0 0.0
        %866 = vmatpush1.msra.mxu0 0.0
        %867 = vmatprep.subr.mxu0 0.0
        %868 = vmatpush1.msra.mxu0 0.0
        %869 = vmatprep.subr.mxu0 0.0
        %870 = vmatpush1.msra.mxu0 0.0
        %871 = vmatprep.subr.mxu0 0.0
        %872 = vmatpush1.msra.mxu0 0.0
        %873 = vmatprep.subr.mxu0 0.0
        %874 = vmatpush1.msra.mxu0 0.0
        %875 = vmatprep.mubr.f32.mxu0 0.0
        %876 = vmatmul.mubr.f32.gmra.mrb[0].mxu0 %v805
        %v877 = vpop.f32.mrb[0].mxu0
        %v878 = vadd.f32 0.0, %v877
        %v879 = vpop.f32.mrb[0].mxu0
        %880 = vdwg.mxu0
        %v882 = vlaneseq
        %v883 = vshrl.u32 %v882, 7
        %v884 = vsub.s32 0, %v883
        %v885 = vrot.slane %v509, %v884
        %v887 = vadd.f32 %v885, %v878
        %888 = vrot.lane.b32.xlu0 %v633, 124
        %v889 = vpop.permute.xlu0 %888
        %890 = vrot.lane.b32.xlu0 %v633, 92
        %v891 = vpop.permute.xlu0 %890
        %v892 = vsel %vm639, %v889, 0
        %v894 = vsel %vm639, %v891, 0
        %896 = vmatprep.subr.mxu0 0.0
        %897 = vmatpush1.xpose.msra.mxu0 %v894
        %898 = vmatprep.subr.mxu0 0.0
        %899 = vmatpush1.xpose.msra.mxu0 0.0
        %900 = vmatprep.subr.mxu0 0.0
        %901 = vmatpush1.xpose.msra.mxu0 0.0
        %902 = vmatprep.subr.mxu0 0.0
        %903 = vmatpush1.xpose.msra.mxu0 0.0
        %904 = vmatprep.subr.mxu0 0.0
        %905 = vmatpush1.xpose.msra.mxu0 0.0
        %906 = vmatprep.subr.mxu0 0.0
        %907 = vmatpush1.xpose.msra.mxu0 0.0
        %908 = vmatprep.subr.mxu0 0.0
        %909 = vmatpush1.xpose.msra.mxu0 0.0
        %910 = vmatprep.subr.mxu0 0.0
        %911 = vmatpush1.xpose.msra.mxu0 0.0
        %912 = vmatprep.subr.mxu0 0.0
        %913 = vmatpush1.xpose.msra.mxu0 0.0
        %914 = vmatprep.subr.mxu0 0.0
        %915 = vmatpush1.xpose.msra.mxu0 0.0
        %916 = vmatprep.subr.mxu0 0.0
        %917 = vmatpush1.xpose.msra.mxu0 0.0
        %918 = vmatprep.subr.mxu0 0.0
        %919 = vmatpush1.xpose.msra.mxu0 0.0
        %920 = vmatprep.subr.mxu0 0.0
        %921 = vmatpush1.xpose.msra.mxu0 0.0
        %922 = vmatprep.subr.mxu0 0.0
        %923 = vmatpush1.xpose.msra.mxu0 0.0
        %924 = vmatprep.subr.mxu0 0.0
        %925 = vmatpush1.xpose.msra.mxu0 0.0
        %926 = vmatprep.subr.mxu0 0.0
        %927 = vmatpush1.xpose.msra.mxu0 0.0
        %928 = vmatprep.subr.mxu0 0.0
        %929 = vmatpush1.xpose.msra.mxu0 0.0
        %930 = vmatprep.subr.mxu0 0.0
        %931 = vmatpush1.xpose.msra.mxu0 0.0
        %932 = vmatprep.subr.mxu0 0.0
        %933 = vmatpush1.xpose.msra.mxu0 0.0
        %934 = vmatprep.subr.mxu0 0.0
        %935 = vmatpush1.xpose.msra.mxu0 0.0
        %936 = vmatprep.subr.mxu0 0.0
        %937 = vmatpush1.xpose.msra.mxu0 0.0
        %938 = vmatprep.subr.mxu0 0.0
        %939 = vmatpush1.xpose.msra.mxu0 0.0
        %940 = vmatprep.subr.mxu0 0.0
        %941 = vmatpush1.xpose.msra.mxu0 0.0
        %942 = vmatprep.subr.mxu0 0.0
        %943 = vmatpush1.xpose.msra.mxu0 0.0
        %944 = vmatprep.subr.mxu0 0.0
        %945 = vmatpush1.xpose.msra.mxu0 0.0
        %946 = vmatprep.subr.mxu0 0.0
        %947 = vmatpush1.xpose.msra.mxu0 0.0
        %948 = vmatprep.subr.mxu0 0.0
        %949 = vmatpush1.xpose.msra.mxu0 0.0
        %950 = vmatprep.subr.mxu0 0.0
        %951 = vmatpush1.xpose.msra.mxu0 0.0
        %952 = vmatprep.subr.mxu0 0.0
        %953 = vmatpush1.xpose.msra.mxu0 0.0
        %954 = vmatprep.subr.mxu0 0.0
        %955 = vmatpush1.xpose.msra.mxu0 0.0
        %956 = vmatprep.subr.mxu0 0.0
        %957 = vmatpush1.xpose.msra.mxu0 0.0
        %958 = vmatprep.subr.mxu0 0.0
        %959 = vmatpush1.xpose.msra.mxu0 0.0
        %960 = vmatprep.mubr.f32.mxu0 0.0
        %961 = vmatmul.mubr.f32.gmra.mrb[0].mxu0 %v892
        %v962 = vpop.f32.mrb[0].mxu0
        %v963 = vadd.f32 0.0, %v962
        %v964 = vpop.f32.mrb[0].mxu0
        %965 = vdwg.mxu0
        %v966 = vmul.f32 %v963, 0.5
        %v967 = vadd.f32 %v966, %v493
        %v968 = vsel %vm716, %v967, -inf
        %969 = vmax.xlane.f32.xlu0 %v968
        %v970 = vpop.xlane.xlu0 %969
        %v971 = vsub.f32 %v967, %v970
        %v972 = vmul.f32 %v971, 1.442695
        %v973 = vpow.pop %v972
        %v974 = vsel %vm716, %v973, 0.0
        %975 = vadd.xlane.f32.xlu0 %v974
        %v976 = vpop.xlane.xlu0 %975
        %v977 = vrcp.pop %v976
        %v978 = vmul.f32 %v973, %v977
        %979 = vrot.lane.b32.xlu0 %v633, 60
        %v980 = vpop.permute.xlu0 %979
        %v983 = vsel %vm716, %v978, 0
        %985 = vmatprep.subr.mxu0 0.0
        %986 = vmatpush1.msra.mxu0 %v980
        %987 = vmatprep.subr.mxu0 0.0
        %988 = vmatpush1.msra.mxu0 0.0
        %989 = vmatprep.subr.mxu0 0.0
        %990 = vmatpush1.msra.mxu0 0.0
        %991 = vmatprep.subr.mxu0 0.0
        %992 = vmatpush1.msra.mxu0 0.0
        %993 = vmatprep.subr.mxu0 0.0
        %994 = vmatpush1.msra.mxu0 0.0
        %995 = vmatprep.subr.mxu0 0.0
        %996 = vmatpush1.msra.mxu0 0.0
        %997 = vmatprep.subr.mxu0 0.0
        %998 = vmatpush1.msra.mxu0 0.0
        %999 = vmatprep.subr.mxu0 0.0
        %1000 = vmatpush1.msra.mxu0 0.0
        %1001 = vmatprep.subr.mxu0 0.0
        %1002 = vmatpush1.msra.mxu0 0.0
        %1003 = vmatprep.subr.mxu0 0.0
        %1004 = vmatpush1.msra.mxu0 0.0
        %1005 = vmatprep.subr.mxu0 0.0
        %1006 = vmatpush1.msra.mxu0 0.0
        %1007 = vmatprep.subr.mxu0 0.0
        %1008 = vmatpush1.msra.mxu0 0.0
        %1009 = vmatprep.subr.mxu0 0.0
        %1010 = vmatpush1.msra.mxu0 0.0
        %1011 = vmatprep.subr.mxu0 0.0
        %1012 = vmatpush1.msra.mxu0 0.0
        %1013 = vmatprep.subr.mxu0 0.0
        %1014 = vmatpush1.msra.mxu0 0.0
        %1015 = vmatprep.subr.mxu0 0.0
        %1016 = vmatpush1.msra.mxu0 0.0
        %1017 = vmatprep.subr.mxu0 0.0
        %1018 = vmatpush1.msra.mxu0 0.0
        %1019 = vmatprep.subr.mxu0 0.0
        %1020 = vmatpush1.msra.mxu0 0.0
        %1021 = vmatprep.subr.mxu0 0.0
        %1022 = vmatpush1.msra.mxu0 0.0
        %1023 = vmatprep.subr.mxu0 0.0
        %1024 = vmatpush1.msra.mxu0 0.0
        %1025 = vmatprep.subr.mxu0 0.0
        %1026 = vmatpush1.msra.mxu0 0.0
        %1027 = vmatprep.subr.mxu0 0.0
        %1028 = vmatpush1.msra.mxu0 0.0
        %1029 = vmatprep.subr.mxu0 0.0
        %1030 = vmatpush1.msra.mxu0 0.0
        %1031 = vmatprep.subr.mxu0 0.0
        %1032 = vmatpush1.msra.mxu0 0.0
        %1033 = vmatprep.subr.mxu0 0.0
        %1034 = vmatpush1.msra.mxu0 0.0
        %1035 = vmatprep.subr.mxu0 0.0
        %1036 = vmatpush1.msra.mxu0 0.0
        %1037 = vmatprep.subr.mxu0 0.0
        %1038 = vmatpush1.msra.mxu0 0.0
        %1039 = vmatprep.subr.mxu0 0.0
        %1040 = vmatpush1.msra.mxu0 0.0
        %1041 = vmatprep.subr.mxu0 0.0
        %1042 = vmatpush1.msra.mxu0 0.0
        %1043 = vmatprep.subr.mxu0 0.0
        %1044 = vmatpush1.msra.mxu0 0.0
        %1045 = vmatprep.subr.mxu0 0.0
        %1046 = vmatpush1.msra.mxu0 0.0
        %1047 = vmatprep.subr.mxu0 0.0
        %1048 = vmatpush1.msra.mxu0 0.0
        %1049 = vmatprep.mubr.f32.mxu0 0.0
        %1050 = vmatmul.mubr.f32.gmra.mrb[0].mxu0 %v983
        %v1051 = vpop.f32.mrb[0].mxu0
        %v1052 = vadd.f32 0.0, %v1051
        %v1053 = vpop.f32.mrb[0].mxu0
        %1054 = vdwg.mxu0
        %v1056 = vsel %vm639, %v1052, 0
        %v1059 = vsel %vm807, %v502, 0
        %1061 = vmatprep.subr.mxu0 0.0
        %1062 = vmatpush1.msra.mxu0 %v1059
        %1063 = vmatprep.subr.mxu0 0.0
        %1064 = vmatpush1.msra.mxu0 0.0
        %1065 = vmatprep.subr.mxu0 0.0
        %1066 = vmatpush1.msra.mxu0 0.0
        %1067 = vmatprep.subr.mxu0 0.0
        %1068 = vmatpush1.msra.mxu0 0.0
        %1069 = vmatprep.subr.mxu0 0.0
        %1070 = vmatpush1.msra.mxu0 0.0
        %1071 = vmatprep.subr.mxu0 0.0
        %1072 = vmatpush1.msra.mxu0 0.0
        %1073 = vmatprep.subr.mxu0 0.0
        %1074 = vmatpush1.msra.mxu0 0.0
        %1075 = vmatprep.subr.mxu0 0.0
        %1076 = vmatpush1.msra.mxu0 0.0
        %1077 = vmatprep.subr.mxu0 0.0
        %1078 = vmatpush1.msra.mxu0 0.0
        %1079 = vmatprep.subr.mxu0 0.0
        %1080 = vmatpush1.msra.mxu0 0.0
        %1081 = vmatprep.subr.mxu0 0.0
        %1082 = vmatpush1.msra.mxu0 0.0
        %1083 = vmatprep.subr.mxu0 0.0
        %1084 = vmatpush1.msra.mxu0 0.0
        %1085 = vmatprep.subr.mxu0 0.0
        %1086 = vmatpush1.msra.mxu0 0.0
        %1087 = vmatprep.subr.mxu0 0.0
        %1088 = vmatpush1.msra.mxu0 0.0
        %1089 = vmatprep.subr.mxu0 0.0
        %1090 = vmatpush1.msra.mxu0 0.0
        %1091 = vmatprep.subr.mxu0 0.0
        %1092 = vmatpush1.msra.mxu0 0.0
        %1093 = vmatprep.subr.mxu0 0.0
        %1094 = vmatpush1.msra.mxu0 0.0
        %1095 = vmatprep.subr.mxu0 0.0
        %1096 = vmatpush1.msra.mxu0 0.0
        %1097 = vmatprep.subr.mxu0 0.0
        %1098 = vmatpush1.msra.mxu0 0.0
        %1099 = vmatprep.subr.mxu0 0.0
        %1100 = vmatpush1.msra.mxu0 0.0
        %1101 = vmatprep.subr.mxu0 0.0
        %1102 = vmatpush1.msra.mxu0 0.0
        %1103 = vmatprep.subr.mxu0 0.0
        %1104 = vmatpush1.msra.mxu0 0.0
        %1105 = vmatprep.subr.mxu0 0.0
        %1106 = vmatpush1.msra.mxu0 0.0
        %1107 = vmatprep.subr.mxu0 0.0
        %1108 = vmatpush1.msra.mxu0 0.0
        %1109 = vmatprep.subr.mxu0 0.0
        %1110 = vmatpush1.msra.mxu0 0.0
        %1111 = vmatprep.subr.mxu0 0.0
        %1112 = vmatpush1.msra.mxu0 0.0
        %1113 = vmatprep.subr.mxu0 0.0
        %1114 = vmatpush1.msra.mxu0 0.0
        %1115 = vmatprep.subr.mxu0 0.0
        %1116 = vmatpush1.msra.mxu0 0.0
        %1117 = vmatprep.subr.mxu0 0.0
        %1118 = vmatpush1.msra.mxu0 0.0
        %1119 = vmatprep.subr.mxu0 0.0
        %1120 = vmatpush1.msra.mxu0 0.0
        %1121 = vmatprep.subr.mxu0 0.0
        %1122 = vmatpush1.msra.mxu0 0.0
        %1123 = vmatprep.subr.mxu0 0.0
        %1124 = vmatpush1.msra.mxu0 0.0
        %1125 = vmatprep.mubr.f32.mxu0 0.0
        %1126 = vmatmul.mubr.f32.gmra.mrb[0].mxu0 %v1056
        %v1127 = vpop.f32.mrb[0].mxu0
        %v1128 = vadd.f32 0.0, %v1127
        %v1129 = vpop.f32.mrb[0].mxu0
        %1130 = vdwg.mxu0
        %v1131 = vadd.f32 %v887, %v1128
        %1132 = vrot.lane.b32.xlu0 %v633, 120
        %v1133 = vpop.permute.xlu0 %1132
        %1134 = vrot.lane.b32.xlu0 %v633, 88
        %v1135 = vpop.permute.xlu0 %1134
        %v1136 = vsel %vm639, %v1133, 0
        %v1138 = vsel %vm639, %v1135, 0
        %1140 = vmatprep.subr.mxu0 0.0
        %1141 = vmatpush1.xpose.msra.mxu0 %v1138
        %1142 = vmatprep.subr.mxu0 0.0
        %1143 = vmatpush1.xpose.msra.mxu0 0.0
        %1144 = vmatprep.subr.mxu0 0.0
        %1145 = vmatpush1.xpose.msra.mxu0 0.0
        %1146 = vmatprep.subr.mxu0 0.0
        %1147 = vmatpush1.xpose.msra.mxu0 0.0
        %1148 = vmatprep.subr.mxu0 0.0
        %1149 = vmatpush1.xpose.msra.mxu0 0.0
        %1150 = vmatprep.subr.mxu0 0.0
        %1151 = vmatpush1.xpose.msra.mxu0 0.0
        %1152 = vmatprep.subr.mxu0 0.0
        %1153 = vmatpush1.xpose.msra.mxu0 0.0
        %1154 = vmatprep.subr.mxu0 0.0
        %1155 = vmatpush1.xpose.msra.mxu0 0.0
        %1156 = vmatprep.subr.mxu0 0.0
        %1157 = vmatpush1.xpose.msra.mxu0 0.0
        %1158 = vmatprep.subr.mxu0 0.0
        %1159 = vmatpush1.xpose.msra.mxu0 0.0
        %1160 = vmatprep.subr.mxu0 0.0
        %1161 = vmatpush1.xpose.msra.mxu0 0.0
        %1162 = vmatprep.subr.mxu0 0.0
        %1163 = vmatpush1.xpose.msra.mxu0 0.0
        %1164 = vmatprep.subr.mxu0 0.0
        %1165 = vmatpush1.xpose.msra.mxu0 0.0
        %1166 = vmatprep.subr.mxu0 0.0
        %1167 = vmatpush1.xpose.msra.mxu0 0.0
        %1168 = vmatprep.subr.mxu0 0.0
        %1169 = vmatpush1.xpose.msra.mxu0 0.0
        %1170 = vmatprep.subr.mxu0 0.0
        %1171 = vmatpush1.xpose.msra.mxu0 0.0
        %1172 = vmatprep.subr.mxu0 0.0
        %1173 = vmatpush1.xpose.msra.mxu0 0.0
        %1174 = vmatprep.subr.mxu0 0.0
        %1175 = vmatpush1.xpose.msra.mxu0 0.0
        %1176 = vmatprep.subr.mxu0 0.0
        %1177 = vmatpush1.xpose.msra.mxu0 0.0
        %1178 = vmatprep.subr.mxu0 0.0
        %1179 = vmatpush1.xpose.msra.mxu0 0.0
        %1180 = vmatprep.subr.mxu0 0.0
        %1181 = vmatpush1.xpose.msra.mxu0 0.0
        %1182 = vmatprep.subr.mxu0 0.0
        %1183 = vmatpush1.xpose.msra.mxu0 0.0
        %1184 = vmatprep.subr.mxu0 0.0
        %1185 = vmatpush1.xpose.msra.mxu0 0.0
        %1186 = vmatprep.subr.mxu0 0.0
        %1187 = vmatpush1.xpose.msra.mxu0 0.0
        %1188 = vmatprep.subr.mxu0 0.0
        %1189 = vmatpush1.xpose.msra.mxu0 0.0
        %1190 = vmatprep.subr.mxu0 0.0
        %1191 = vmatpush1.xpose.msra.mxu0 0.0
        %1192 = vmatprep.subr.mxu0 0.0
        %1193 = vmatpush1.xpose.msra.mxu0 0.0
        %1194 = vmatprep.subr.mxu0 0.0
        %1195 = vmatpush1.xpose.msra.mxu0 0.0
        %1196 = vmatprep.subr.mxu0 0.0
        %1197 = vmatpush1.xpose.msra.mxu0 0.0
        %1198 = vmatprep.subr.mxu0 0.0
        %1199 = vmatpush1.xpose.msra.mxu0 0.0
        %1200 = vmatprep.subr.mxu0 0.0
        %1201 = vmatpush1.xpose.msra.mxu0 0.0
        %1202 = vmatprep.subr.mxu0 0.0
        %1203 = vmatpush1.xpose.msra.mxu0 0.0
        %1204 = vmatprep.mubr.f32.mxu0 0.0
        %1205 = vmatmul.mubr.f32.gmra.mrb[0].mxu0 %v1136
        %v1206 = vpop.f32.mrb[0].mxu0
        %v1207 = vadd.f32 0.0, %v1206
        %v1208 = vpop.f32.mrb[0].mxu0
        %1209 = vdwg.mxu0
        %v1210 = vmul.f32 %v1207, 0.5
        %v1211 = vadd.f32 %v1210, %v493
        %v1212 = vsel %vm716, %v1211, -inf
        %1213 = vmax.xlane.f32.xlu0 %v1212
        %v1214 = vpop.xlane.xlu0 %1213
        %v1215 = vsub.f32 %v1211, %v1214
        %v1216 = vmul.f32 %v1215, 1.442695
        %v1217 = vpow.pop %v1216
        %v1218 = vsel %vm716, %v1217, 0.0
        %1219 = vadd.xlane.f32.xlu0 %v1218
        %v1220 = vpop.xlane.xlu0 %1219
        %v1221 = vrcp.pop %v1220
        %v1222 = vmul.f32 %v1217, %v1221
        %1223 = vrot.lane.b32.xlu0 %v633, 56
        %v1224 = vpop.permute.xlu0 %1223
        %v1227 = vsel %vm716, %v1222, 0
        %1229 = vmatprep.subr.mxu0 0.0
        %1230 = vmatpush1.msra.mxu0 %v1224
        %1231 = vmatprep.subr.mxu0 0.0
        %1232 = vmatpush1.msra.mxu0 0.0
        %1233 = vmatprep.subr.mxu0 0.0
        %1234 = vmatpush1.msra.mxu0 0.0
        %1235 = vmatprep.subr.mxu0 0.0
        %1236 = vmatpush1.msra.mxu0 0.0
        %1237 = vmatprep.subr.mxu0 0.0
        %1238 = vmatpush1.msra.mxu0 0.0
        %1239 = vmatprep.subr.mxu0 0.0
        %1240 = vmatpush1.msra.mxu0 0.0
        %1241 = vmatprep.subr.mxu0 0.0
        %1242 = vmatpush1.msra.mxu0 0.0
        %1243 = vmatprep.subr.mxu0 0.0
        %1244 = vmatpush1.msra.mxu0 0.0
        %1245 = vmatprep.subr.mxu0 0.0
        %1246 = vmatpush1.msra.mxu0 0.0
        %1247 = vmatprep.subr.mxu0 0.0
        %1248 = vmatpush1.msra.mxu0 0.0
        %1249 = vmatprep.subr.mxu0 0.0
        %1250 = vmatpush1.msra.mxu0 0.0
        %1251 = vmatprep.subr.mxu0 0.0
        %1252 = vmatpush1.msra.mxu0 0.0
        %1253 = vmatprep.subr.mxu0 0.0
        %1254 = vmatpush1.msra.mxu0 0.0
        %1255 = vmatprep.subr.mxu0 0.0
        %1256 = vmatpush1.msra.mxu0 0.0
        %1257 = vmatprep.subr.mxu0 0.0
        %1258 = vmatpush1.msra.mxu0 0.0
        %1259 = vmatprep.subr.mxu0 0.0
        %1260 = vmatpush1.msra.mxu0 0.0
        %1261 = vmatprep.subr.mxu0 0.0
        %1262 = vmatpush1.msra.mxu0 0.0
        %1263 = vmatprep.subr.mxu0 0.0
        %1264 = vmatpush1.msra.mxu0 0.0
        %1265 = vmatprep.subr.mxu0 0.0
        %1266 = vmatpush1.msra.mxu0 0.0
        %1267 = vmatprep.subr.mxu0 0.0
        %1268 = vmatpush1.msra.mxu0 0.0
        %1269 = vmatprep.subr.mxu0 0.0
        %1270 = vmatpush1.msra.mxu0 0.0
        %1271 = vmatprep.subr.mxu0 0.0
        %1272 = vmatpush1.msra.mxu0 0.0
        %1273 = vmatprep.subr.mxu0 0.0
        %1274 = vmatpush1.msra.mxu0 0.0
        %1275 = vmatprep.subr.mxu0 0.0
        %1276 = vmatpush1.msra.mxu0 0.0
        %1277 = vmatprep.subr.mxu0 0.0
        %1278 = vmatpush1.msra.mxu0 0.0
        %1279 = vmatprep.subr.mxu0 0.0
        %1280 = vmatpush1.msra.mxu0 0.0
        %1281 = vmatprep.subr.mxu0 0.0
        %1282 = vmatpush1.msra.mxu0 0.0
        %1283 = vmatprep.subr.mxu0 0.0
        %1284 = vmatpush1.msra.mxu0 0.0
        %1285 = vmatprep.subr.mxu0 0.0
        %1286 = vmatpush1.msra.mxu0 0.0
        %1287 = vmatprep.subr.mxu0 0.0
        %1288 = vmatpush1.msra.mxu0 0.0
        %1289 = vmatprep.subr.mxu0 0.0
        %1290 = vmatpush1.msra.mxu0 0.0
        %1291 = vmatprep.subr.mxu0 0.0
        %1292 = vmatpush1.msra.mxu0 0.0
        %1293 = vmatprep.mubr.f32.mxu0 0.0
        %1294 = vmatmul.mubr.f32.gmra.mrb[0].mxu0 %v1227
        %v1295 = vpop.f32.mrb[0].mxu0
        %v1296 = vadd.f32 0.0, %v1295
        %v1297 = vpop.f32.mrb[0].mxu0
        %1298 = vdwg.mxu0
        %v1300 = vsel %vm639, %v1296, 0
        %v1303 = vsel %vm807, %v503, 0
        %1305 = vmatprep.subr.mxu0 0.0
        %1306 = vmatpush1.msra.mxu0 %v1303
        %1307 = vmatprep.subr.mxu0 0.0
        %1308 = vmatpush1.msra.mxu0 0.0
        %1309 = vmatprep.subr.mxu0 0.0
        %1310 = vmatpush1.msra.mxu0 0.0
        %1311 = vmatprep.subr.mxu0 0.0
        %1312 = vmatpush1.msra.mxu0 0.0
        %1313 = vmatprep.subr.mxu0 0.0
        %1314 = vmatpush1.msra.mxu0 0.0
        %1315 = vmatprep.subr.mxu0 0.0
        %1316 = vmatpush1.msra.mxu0 0.0
        %1317 = vmatprep.subr.mxu0 0.0
        %1318 = vmatpush1.msra.mxu0 0.0
        %1319 = vmatprep.subr.mxu0 0.0
        %1320 = vmatpush1.msra.mxu0 0.0
        %1321 = vmatprep.subr.mxu0 0.0
        %1322 = vmatpush1.msra.mxu0 0.0
        %1323 = vmatprep.subr.mxu0 0.0
        %1324 = vmatpush1.msra.mxu0 0.0
        %1325 = vmatprep.subr.mxu0 0.0
        %1326 = vmatpush1.msra.mxu0 0.0
        %1327 = vmatprep.subr.mxu0 0.0
        %1328 = vmatpush1.msra.mxu0 0.0
        %1329 = vmatprep.subr.mxu0 0.0
        %1330 = vmatpush1.msra.mxu0 0.0
        %1331 = vmatprep.subr.mxu0 0.0
        %1332 = vmatpush1.msra.mxu0 0.0
        %1333 = vmatprep.subr.mxu0 0.0
        %1334 = vmatpush1.msra.mxu0 0.0
        %1335 = vmatprep.subr.mxu0 0.0
        %1336 = vmatpush1.msra.mxu0 0.0
        %1337 = vmatprep.subr.mxu0 0.0
        %1338 = vmatpush1.msra.mxu0 0.0
        %1339 = vmatprep.subr.mxu0 0.0
        %1340 = vmatpush1.msra.mxu0 0.0
        %1341 = vmatprep.subr.mxu0 0.0
        %1342 = vmatpush1.msra.mxu0 0.0
        %1343 = vmatprep.subr.mxu0 0.0
        %1344 = vmatpush1.msra.mxu0 0.0
        %1345 = vmatprep.subr.mxu0 0.0
        %1346 = vmatpush1.msra.mxu0 0.0
        %1347 = vmatprep.subr.mxu0 0.0
        %1348 = vmatpush1.msra.mxu0 0.0
        %1349 = vmatprep.subr.mxu0 0.0
        %1350 = vmatpush1.msra.mxu0 0.0
        %1351 = vmatprep.subr.mxu0 0.0
        %1352 = vmatpush1.msra.mxu0 0.0
        %1353 = vmatprep.subr.mxu0 0.0
        %1354 = vmatpush1.msra.mxu0 0.0
        %1355 = vmatprep.subr.mxu0 0.0
        %1356 = vmatpush1.msra.mxu0 0.0
        %1357 = vmatprep.subr.mxu0 0.0
        %1358 = vmatpush1.msra.mxu0 0.0
        %1359 = vmatprep.subr.mxu0 0.0
        %1360 = vmatpush1.msra.mxu0 0.0
        %1361 = vmatprep.subr.mxu0 0.0
        %1362 = vmatpush1.msra.mxu0 0.0
        %1363 = vmatprep.subr.mxu0 0.0
        %1364 = vmatpush1.msra.mxu0 0.0
        %1365 = vmatprep.subr.mxu0 0.0
        %1366 = vmatpush1.msra.mxu0 0.0
        %1367 = vmatprep.subr.mxu0 0.0
        %1368 = vmatpush1.msra.mxu0 0.0
        %1369 = vmatprep.mubr.f32.mxu0 0.0
        %1370 = vmatmul.mubr.f32.gmra.mrb[0].mxu0 %v1300
        %v1371 = vpop.f32.mrb[0].mxu0
        %v1372 = vadd.f32 0.0, %v1371
        %v1373 = vpop.f32.mrb[0].mxu0
        %1374 = vdwg.mxu0
        %v1375 = vadd.f32 %v1131, %v1372
        %1376 = vrot.lane.b32.xlu0 %v633, 116
        %v1377 = vpop.permute.xlu0 %1376
        %1378 = vrot.lane.b32.xlu0 %v633, 84
        %v1379 = vpop.permute.xlu0 %1378
        %v1380 = vsel %vm639, %v1377, 0
        %v1382 = vsel %vm639, %v1379, 0
        %1384 = vmatprep.subr.mxu0 0.0
        %1385 = vmatpush1.xpose.msra.mxu0 %v1382
        %1386 = vmatprep.subr.mxu0 0.0
        %1387 = vmatpush1.xpose.msra.mxu0 0.0
        %1388 = vmatprep.subr.mxu0 0.0
        %1389 = vmatpush1.xpose.msra.mxu0 0.0
        %1390 = vmatprep.subr.mxu0 0.0
        %1391 = vmatpush1.xpose.msra.mxu0 0.0
        %1392 = vmatprep.subr.mxu0 0.0
        %1393 = vmatpush1.xpose.msra.mxu0 0.0
        %1394 = vmatprep.subr.mxu0 0.0
        %1395 = vmatpush1.xpose.msra.mxu0 0.0
        %1396 = vmatprep.subr.mxu0 0.0
        %1397 = vmatpush1.xpose.msra.mxu0 0.0
        %1398 = vmatprep.subr.mxu0 0.0
        %1399 = vmatpush1.xpose.msra.mxu0 0.0
        %1400 = vmatprep.subr.mxu0 0.0
        %1401 = vmatpush1.xpose.msra.mxu0 0.0
        %1402 = vmatprep.subr.mxu0 0.0
        %1403 = vmatpush1.xpose.msra.mxu0 0.0
        %1404 = vmatprep.subr.mxu0 0.0
        %1405 = vmatpush1.xpose.msra.mxu0 0.0
        %1406 = vmatprep.subr.mxu0 0.0
        %1407 = vmatpush1.xpose.msra.mxu0 0.0
        %1408 = vmatprep.subr.mxu0 0.0
        %1409 = vmatpush1.xpose.msra.mxu0 0.0
        %1410 = vmatprep.subr.mxu0 0.0
        %1411 = vmatpush1.xpose.msra.mxu0 0.0
        %1412 = vmatprep.subr.mxu0 0.0
        %1413 = vmatpush1.xpose.msra.mxu0 0.0
        %1414 = vmatprep.subr.mxu0 0.0
        %1415 = vmatpush1.xpose.msra.mxu0 0.0
        %1416 = vmatprep.subr.mxu0 0.0
        %1417 = vmatpush1.xpose.msra.mxu0 0.0
        %1418 = vmatprep.subr.mxu0 0.0
        %1419 = vmatpush1.xpose.msra.mxu0 0.0
        %1420 = vmatprep.subr.mxu0 0.0
        %1421 = vmatpush1.xpose.msra.mxu0 0.0
        %1422 = vmatprep.subr.mxu0 0.0
        %1423 = vmatpush1.xpose.msra.mxu0 0.0
        %1424 = vmatprep.subr.mxu0 0.0
        %1425 = vmatpush1.xpose.msra.mxu0 0.0
        %1426 = vmatprep.subr.mxu0 0.0
        %1427 = vmatpush1.xpose.msra.mxu0 0.0
        %1428 = vmatprep.subr.mxu0 0.0
        %1429 = vmatpush1.xpose.msra.mxu0 0.0
        %1430 = vmatprep.subr.mxu0 0.0
        %1431 = vmatpush1.xpose.msra.mxu0 0.0
        %1432 = vmatprep.subr.mxu0 0.0
        %1433 = vmatpush1.xpose.msra.mxu0 0.0
        %1434 = vmatprep.subr.mxu0 0.0
        %1435 = vmatpush1.xpose.msra.mxu0 0.0
        %1436 = vmatprep.subr.mxu0 0.0
        %1437 = vmatpush1.xpose.msra.mxu0 0.0
        %1438 = vmatprep.subr.mxu0 0.0
        %1439 = vmatpush1.xpose.msra.mxu0 0.0
        %1440 = vmatprep.subr.mxu0 0.0
        %1441 = vmatpush1.xpose.msra.mxu0 0.0
        %1442 = vmatprep.subr.mxu0 0.0
        %1443 = vmatpush1.xpose.msra.mxu0 0.0
        %1444 = vmatprep.subr.mxu0 0.0
        %1445 = vmatpush1.xpose.msra.mxu0 0.0
        %1446 = vmatprep.subr.mxu0 0.0
        %1447 = vmatpush1.xpose.msra.mxu0 0.0
        %1448 = vmatprep.mubr.f32.mxu0 0.0
        %1449 = vmatmul.mubr.f32.gmra.mrb[0].mxu0 %v1380
        %v1450 = vpop.f32.mrb[0].mxu0
        %v1451 = vadd.f32 0.0, %v1450
        %v1452 = vpop.f32.mrb[0].mxu0
        %1453 = vdwg.mxu0
        %v1454 = vmul.f32 %v1451, 0.5
        %v1455 = vadd.f32 %v1454, %v493
        %v1456 = vsel %vm716, %v1455, -inf
        %1457 = vmax.xlane.f32.xlu0 %v1456
        %v1458 = vpop.xlane.xlu0 %1457
        %v1459 = vsub.f32 %v1455, %v1458
        %v1460 = vmul.f32 %v1459, 1.442695
        %v1461 = vpow.pop %v1460
        %v1462 = vsel %vm716, %v1461, 0.0
        %1463 = vadd.xlane.f32.xlu0 %v1462
        %v1464 = vpop.xlane.xlu0 %1463
        %v1465 = vrcp.pop %v1464
        %v1466 = vmul.f32 %v1461, %v1465
        %1467 = vrot.lane.b32.xlu0 %v633, 52
        %v1468 = vpop.permute.xlu0 %1467
        %v1471 = vsel %vm716, %v1466, 0
        %1473 = vmatprep.subr.mxu0 0.0
        %1474 = vmatpush1.msra.mxu0 %v1468
        %1475 = vmatprep.subr.mxu0 0.0
        %1476 = vmatpush1.msra.mxu0 0.0
        %1477 = vmatprep.subr.mxu0 0.0
        %1478 = vmatpush1.msra.mxu0 0.0
        %1479 = vmatprep.subr.mxu0 0.0
        %1480 = vmatpush1.msra.mxu0 0.0
        %1481 = vmatprep.subr.mxu0 0.0
        %1482 = vmatpush1.msra.mxu0 0.0
        %1483 = vmatprep.subr.mxu0 0.0
        %1484 = vmatpush1.msra.mxu0 0.0
        %1485 = vmatprep.subr.mxu0 0.0
        %1486 = vmatpush1.msra.mxu0 0.0
        %1487 = vmatprep.subr.mxu0 0.0
        %1488 = vmatpush1.msra.mxu0 0.0
        %1489 = vmatprep.subr.mxu0 0.0
        %1490 = vmatpush1.msra.mxu0 0.0
        %1491 = vmatprep.subr.mxu0 0.0
        %1492 = vmatpush1.msra.mxu0 0.0
        %1493 = vmatprep.subr.mxu0 0.0
        %1494 = vmatpush1.msra.mxu0 0.0
        %1495 = vmatprep.subr.mxu0 0.0
        %1496 = vmatpush1.msra.mxu0 0.0
        %1497 = vmatprep.subr.mxu0 0.0
        %1498 = vmatpush1.msra.mxu0 0.0
        %1499 = vmatprep.subr.mxu0 0.0
        %1500 = vmatpush1.msra.mxu0 0.0
        %1501 = vmatprep.subr.mxu0 0.0
        %1502 = vmatpush1.msra.mxu0 0.0
        %1503 = vmatprep.subr.mxu0 0.0
        %1504 = vmatpush1.msra.mxu0 0.0
        %1505 = vmatprep.subr.mxu0 0.0
        %1506 = vmatpush1.msra.mxu0 0.0
        %1507 = vmatprep.subr.mxu0 0.0
        %1508 = vmatpush1.msra.mxu0 0.0
        %1509 = vmatprep.subr.mxu0 0.0
        %1510 = vmatpush1.msra.mxu0 0.0
        %1511 = vmatprep.subr.mxu0 0.0
        %1512 = vmatpush1.msra.mxu0 0.0
        %1513 = vmatprep.subr.mxu0 0.0
        %1514 = vmatpush1.msra.mxu0 0.0
        %1515 = vmatprep.subr.mxu0 0.0
        %1516 = vmatpush1.msra.mxu0 0.0
        %1517 = vmatprep.subr.mxu0 0.0
        %1518 = vmatpush1.msra.mxu0 0.0
        %1519 = vmatprep.subr.mxu0 0.0
        %1520 = vmatpush1.msra.mxu0 0.0
        %1521 = vmatprep.subr.mxu0 0.0
        %1522 = vmatpush1.msra.mxu0 0.0
        %1523 = vmatprep.subr.mxu0 0.0
        %1524 = vmatpush1.msra.mxu0 0.0
        %1525 = vmatprep.subr.mxu0 0.0
        %1526 = vmatpush1.msra.mxu0 0.0
        %1527 = vmatprep.subr.mxu0 0.0
        %1528 = vmatpush1.msra.mxu0 0.0
        %1529 = vmatprep.subr.mxu0 0.0
        %1530 = vmatpush1.msra.mxu0 0.0
        %1531 = vmatprep.subr.mxu0 0.0
        %1532 = vmatpush1.msra.mxu0 0.0
        %1533 = vmatprep.subr.mxu0 0.0
        %1534 = vmatpush1.msra.mxu0 0.0
        %1535 = vmatprep.subr.mxu0 0.0
        %1536 = vmatpush1.msra.mxu0 0.0
        %1537 = vmatprep.mubr.f32.mxu0 0.0
        %1538 = vmatmul.mubr.f32.gmra.mrb[0].mxu0 %v1471
        %v1539 = vpop.f32.mrb[0].mxu0
        %v1540 = vadd.f32 0.0, %v1539
        %v1541 = vpop.f32.mrb[0].mxu0
        %1542 = vdwg.mxu0
        %v1544 = vsel %vm639, %v1540, 0
        %v1547 = vsel %vm807, %v504, 0
        %1549 = vmatprep.subr.mxu0 0.0
        %1550 = vmatpush1.msra.mxu0 %v1547
        %1551 = vmatprep.subr.mxu0 0.0
        %1552 = vmatpush1.msra.mxu0 0.0
        %1553 = vmatprep.subr.mxu0 0.0
        %1554 = vmatpush1.msra.mxu0 0.0
        %1555 = vmatprep.subr.mxu0 0.0
        %1556 = vmatpush1.msra.mxu0 0.0
        %1557 = vmatprep.subr.mxu0 0.0
        %1558 = vmatpush1.msra.mxu0 0.0
        %1559 = vmatprep.subr.mxu0 0.0
        %1560 = vmatpush1.msra.mxu0 0.0
        %1561 = vmatprep.subr.mxu0 0.0
        %1562 = vmatpush1.msra.mxu0 0.0
        %1563 = vmatprep.subr.mxu0 0.0
        %1564 = vmatpush1.msra.mxu0 0.0
        %1565 = vmatprep.subr.mxu0 0.0
        %1566 = vmatpush1.msra.mxu0 0.0
        %1567 = vmatprep.subr.mxu0 0.0
        %1568 = vmatpush1.msra.mxu0 0.0
        %1569 = vmatprep.subr.mxu0 0.0
        %1570 = vmatpush1.msra.mxu0 0.0
        %1571 = vmatprep.subr.mxu0 0.0
        %1572 = vmatpush1.msra.mxu0 0.0
        %1573 = vmatprep.subr.mxu0 0.0
        %1574 = vmatpush1.msra.mxu0 0.0
        %1575 = vmatprep.subr.mxu0 0.0
        %1576 = vmatpush1.msra.mxu0 0.0
        %1577 = vmatprep.subr.mxu0 0.0
        %1578 = vmatpush1.msra.mxu0 0.0
        %1579 = vmatprep.subr.mxu0 0.0
        %1580 = vmatpush1.msra.mxu0 0.0
        %1581 = vmatprep.subr.mxu0 0.0
        %1582 = vmatpush1.msra.mxu0 0.0
        %1583 = vmatprep.subr.mxu0 0.0
        %1584 = vmatpush1.msra.mxu0 0.0
        %1585 = vmatprep.subr.mxu0 0.0
        %1586 = vmatpush1.msra.mxu0 0.0
        %1587 = vmatprep.subr.mxu0 0.0
        %1588 = vmatpush1.msra.mxu0 0.0
        %1589 = vmatprep.subr.mxu0 0.0
        %1590 = vmatpush1.msra.mxu0 0.0
        %1591 = vmatprep.subr.mxu0 0.0
        %1592 = vmatpush1.msra.mxu0 0.0
        %1593 = vmatprep.subr.mxu0 0.0
        %1594 = vmatpush1.msra.mxu0 0.0
        %1595 = vmatprep.subr.mxu0 0.0
        %1596 = vmatpush1.msra.mxu0 0.0
        %1597 = vmatprep.subr.mxu0 0.0
        %1598 = vmatpush1.msra.mxu0 0.0
        %1599 = vmatprep.subr.mxu0 0.0
        %1600 = vmatpush1.msra.mxu0 0.0
        %1601 = vmatprep.subr.mxu0 0.0
        %1602 = vmatpush1.msra.mxu0 0.0
        %1603 = vmatprep.subr.mxu0 0.0
        %1604 = vmatpush1.msra.mxu0 0.0
        %1605 = vmatprep.subr.mxu0 0.0
        %1606 = vmatpush1.msra.mxu0 0.0
        %1607 = vmatprep.subr.mxu0 0.0
        %1608 = vmatpush1.msra.mxu0 0.0
        %1609 = vmatprep.subr.mxu0 0.0
        %1610 = vmatpush1.msra.mxu0 0.0
        %1611 = vmatprep.subr.mxu0 0.0
        %1612 = vmatpush1.msra.mxu0 0.0
        %1613 = vmatprep.mubr.f32.mxu0 0.0
        %1614 = vmatmul.mubr.f32.gmra.mrb[0].mxu0 %v1544
        %v1615 = vpop.f32.mrb[0].mxu0
        %v1616 = vadd.f32 0.0, %v1615
        %v1617 = vpop.f32.mrb[0].mxu0
        %1618 = vdwg.mxu0
        %v1619 = vadd.f32 %v1375, %v1616
        %1620 = vrot.lane.b32.xlu0 %v633, 112
        %v1621 = vpop.permute.xlu0 %1620
        %1622 = vrot.lane.b32.xlu0 %v633, 80
        %v1623 = vpop.permute.xlu0 %1622
        %v1624 = vsel %vm639, %v1621, 0
        %v1626 = vsel %vm639, %v1623, 0
        %1628 = vmatprep.subr.mxu0 0.0
        %1629 = vmatpush1.xpose.msra.mxu0 %v1626
        %1630 = vmatprep.subr.mxu0 0.0
        %1631 = vmatpush1.xpose.msra.mxu0 0.0
        %1632 = vmatprep.subr.mxu0 0.0
        %1633 = vmatpush1.xpose.msra.mxu0 0.0
        %1634 = vmatprep.subr.mxu0 0.0
        %1635 = vmatpush1.xpose.msra.mxu0 0.0
        %1636 = vmatprep.subr.mxu0 0.0
        %1637 = vmatpush1.xpose.msra.mxu0 0.0
        %1638 = vmatprep.subr.mxu0 0.0
        %1639 = vmatpush1.xpose.msra.mxu0 0.0
        %1640 = vmatprep.subr.mxu0 0.0
        %1641 = vmatpush1.xpose.msra.mxu0 0.0
        %1642 = vmatprep.subr.mxu0 0.0
        %1643 = vmatpush1.xpose.msra.mxu0 0.0
        %1644 = vmatprep.subr.mxu0 0.0
        %1645 = vmatpush1.xpose.msra.mxu0 0.0
        %1646 = vmatprep.subr.mxu0 0.0
        %1647 = vmatpush1.xpose.msra.mxu0 0.0
        %1648 = vmatprep.subr.mxu0 0.0
        %1649 = vmatpush1.xpose.msra.mxu0 0.0
        %1650 = vmatprep.subr.mxu0 0.0
        %1651 = vmatpush1.xpose.msra.mxu0 0.0
        %1652 = vmatprep.subr.mxu0 0.0
        %1653 = vmatpush1.xpose.msra.mxu0 0.0
        %1654 = vmatprep.subr.mxu0 0.0
        %1655 = vmatpush1.xpose.msra.mxu0 0.0
        %1656 = vmatprep.subr.mxu0 0.0
        %1657 = vmatpush1.xpose.msra.mxu0 0.0
        %1658 = vmatprep.subr.mxu0 0.0
        %1659 = vmatpush1.xpose.msra.mxu0 0.0
        %1660 = vmatprep.subr.mxu0 0.0
        %1661 = vmatpush1.xpose.msra.mxu0 0.0
        %1662 = vmatprep.subr.mxu0 0.0
        %1663 = vmatpush1.xpose.msra.mxu0 0.0
        %1664 = vmatprep.subr.mxu0 0.0
        %1665 = vmatpush1.xpose.msra.mxu0 0.0
        %1666 = vmatprep.subr.mxu0 0.0
        %1667 = vmatpush1.xpose.msra.mxu0 0.0
        %1668 = vmatprep.subr.mxu0 0.0
        %1669 = vmatpush1.xpose.msra.mxu0 0.0
        %1670 = vmatprep.subr.mxu0 0.0
        %1671 = vmatpush1.xpose.msra.mxu0 0.0
        %1672 = vmatprep.subr.mxu0 0.0
        %1673 = vmatpush1.xpose.msra.mxu0 0.0
        %1674 = vmatprep.subr.mxu0 0.0
        %1675 = vmatpush1.xpose.msra.mxu0 0.0
        %1676 = vmatprep.subr.mxu0 0.0
        %1677 = vmatpush1.xpose.msra.mxu0 0.0
        %1678 = vmatprep.subr.mxu0 0.0
        %1679 = vmatpush1.xpose.msra.mxu0 0.0
        %1680 = vmatprep.subr.mxu0 0.0
        %1681 = vmatpush1.xpose.msra.mxu0 0.0
        %1682 = vmatprep.subr.mxu0 0.0
        %1683 = vmatpush1.xpose.msra.mxu0 0.0
        %1684 = vmatprep.subr.mxu0 0.0
        %1685 = vmatpush1.xpose.msra.mxu0 0.0
        %1686 = vmatprep.subr.mxu0 0.0
        %1687 = vmatpush1.xpose.msra.mxu0 0.0
        %1688 = vmatprep.subr.mxu0 0.0
        %1689 = vmatpush1.xpose.msra.mxu0 0.0
        %1690 = vmatprep.subr.mxu0 0.0
        %1691 = vmatpush1.xpose.msra.mxu0 0.0
        %1692 = vmatprep.mubr.f32.mxu0 0.0
        %1693 = vmatmul.mubr.f32.gmra.mrb[0].mxu0 %v1624
        %v1694 = vpop.f32.mrb[0].mxu0
        %v1695 = vadd.f32 0.0, %v1694
        %v1696 = vpop.f32.mrb[0].mxu0
        %1697 = vdwg.mxu0
        %v1698 = vmul.f32 %v1695, 0.5
        %v1699 = vadd.f32 %v1698, %v493
        %v1700 = vsel %vm716, %v1699, -inf
        %1701 = vmax.xlane.f32.xlu0 %v1700
        %v1702 = vpop.xlane.xlu0 %1701
        %v1703 = vsub.f32 %v1699, %v1702
        %v1704 = vmul.f32 %v1703, 1.442695
        %v1705 = vpow.pop %v1704
        %v1706 = vsel %vm716, %v1705, 0.0
        %1707 = vadd.xlane.f32.xlu0 %v1706
        %v1708 = vpop.xlane.xlu0 %1707
        %v1709 = vrcp.pop %v1708
        %v1710 = vmul.f32 %v1705, %v1709
        %1711 = vrot.lane.b32.xlu0 %v633, 48
        %v1712 = vpop.permute.xlu0 %1711
        %v1715 = vsel %vm716, %v1710, 0
        %1717 = vmatprep.subr.mxu0 0.0
        %1718 = vmatpush1.msra.mxu0 %v1712
        %1719 = vmatprep.subr.mxu0 0.0
        %1720 = vmatpush1.msra.mxu0 0.0
        %1721 = vmatprep.subr.mxu0 0.0
        %1722 = vmatpush1.msra.mxu0 0.0
        %1723 = vmatprep.subr.mxu0 0.0
        %1724 = vmatpush1.msra.mxu0 0.0
        %1725 = vmatprep.subr.mxu0 0.0
        %1726 = vmatpush1.msra.mxu0 0.0
        %1727 = vmatprep.subr.mxu0 0.0
        %1728 = vmatpush1.msra.mxu0 0.0
        %1729 = vmatprep.subr.mxu0 0.0
        %1730 = vmatpush1.msra.mxu0 0.0
        %1731 = vmatprep.subr.mxu0 0.0
        %1732 = vmatpush1.msra.mxu0 0.0
        %1733 = vmatprep.subr.mxu0 0.0
        %1734 = vmatpush1.msra.mxu0 0.0
        %1735 = vmatprep.subr.mxu0 0.0
        %1736 = vmatpush1.msra.mxu0 0.0
        %1737 = vmatprep.subr.mxu0 0.0
        %1738 = vmatpush1.msra.mxu0 0.0
        %1739 = vmatprep.subr.mxu0 0.0
        %1740 = vmatpush1.msra.mxu0 0.0
        %1741 = vmatprep.subr.mxu0 0.0
        %1742 = vmatpush1.msra.mxu0 0.0
        %1743 = vmatprep.subr.mxu0 0.0
        %1744 = vmatpush1.msra.mxu0 0.0
        %1745 = vmatprep.subr.mxu0 0.0
        %1746 = vmatpush1.msra.mxu0 0.0
        %1747 = vmatprep.subr.mxu0 0.0
        %1748 = vmatpush1.msra.mxu0 0.0
        %1749 = vmatprep.subr.mxu0 0.0
        %1750 = vmatpush1.msra.mxu0 0.0
        %1751 = vmatprep.subr.mxu0 0.0
        %1752 = vmatpush1.msra.mxu0 0.0
        %1753 = vmatprep.subr.mxu0 0.0
        %1754 = vmatpush1.msra.mxu0 0.0
        %1755 = vmatprep.subr.mxu0 0.0
        %1756 = vmatpush1.msra.mxu0 0.0
        %1757 = vmatprep.subr.mxu0 0.0
        %1758 = vmatpush1.msra.mxu0 0.0
        %1759 = vmatprep.subr.mxu0 0.0
        %1760 = vmatpush1.msra.mxu0 0.0
        %1761 = vmatprep.subr.mxu0 0.0
        %1762 = vmatpush1.msra.mxu0 0.0
        %1763 = vmatprep.subr.mxu0 0.0
        %1764 = vmatpush1.msra.mxu0 0.0
        %1765 = vmatprep.subr.mxu0 0.0
        %1766 = vmatpush1.msra.mxu0 0.0
        %1767 = vmatprep.subr.mxu0 0.0
        %1768 = vmatpush1.msra.mxu0 0.0
        %1769 = vmatprep.subr.mxu0 0.0
        %1770 = vmatpush1.msra.mxu0 0.0
        %1771 = vmatprep.subr.mxu0 0.0
        %1772 = vmatpush1.msra.mxu0 0.0
        %1773 = vmatprep.subr.mxu0 0.0
        %1774 = vmatpush1.msra.mxu0 0.0
        %1775 = vmatprep.subr.mxu0 0.0
        %1776 = vmatpush1.msra.mxu0 0.0
        %1777 = vmatprep.subr.mxu0 0.0
        %1778 = vmatpush1.msra.mxu0 0.0
        %1779 = vmatprep.subr.mxu0 0.0
        %1780 = vmatpush1.msra.mxu0 0.0
        %1781 = vmatprep.mubr.f32.mxu0 0.0
        %1782 = vmatmul.mubr.f32.gmra.mrb[0].mxu0 %v1715
        %v1783 = vpop.f32.mrb[0].mxu0
        %v1784 = vadd.f32 0.0, %v1783
        %v1785 = vpop.f32.mrb[0].mxu0
        %1786 = vdwg.mxu0
        %v1788 = vsel %vm639, %v1784, 0
        %v1791 = vsel %vm807, %v505, 0
        %1793 = vmatprep.subr.mxu0 0.0
        %1794 = vmatpush1.msra.mxu0 %v1791
        %1795 = vmatprep.subr.mxu0 0.0
        %1796 = vmatpush1.msra.mxu0 0.0
        %1797 = vmatprep.subr.mxu0 0.0
        %1798 = vmatpush1.msra.mxu0 0.0
        %1799 = vmatprep.subr.mxu0 0.0
        %1800 = vmatpush1.msra.mxu0 0.0
        %1801 = vmatprep.subr.mxu0 0.0
        %1802 = vmatpush1.msra.mxu0 0.0
        %1803 = vmatprep.subr.mxu0 0.0
        %1804 = vmatpush1.msra.mxu0 0.0
        %1805 = vmatprep.subr.mxu0 0.0
        %1806 = vmatpush1.msra.mxu0 0.0
        %1807 = vmatprep.subr.mxu0 0.0
        %1808 = vmatpush1.msra.mxu0 0.0
        %1809 = vmatprep.subr.mxu0 0.0
        %1810 = vmatpush1.msra.mxu0 0.0
        %1811 = vmatprep.subr.mxu0 0.0
        %1812 = vmatpush1.msra.mxu0 0.0
        %1813 = vmatprep.subr.mxu0 0.0
        %1814 = vmatpush1.msra.mxu0 0.0
        %1815 = vmatprep.subr.mxu0 0.0
        %1816 = vmatpush1.msra.mxu0 0.0
        %1817 = vmatprep.subr.mxu0 0.0
        %1818 = vmatpush1.msra.mxu0 0.0
        %1819 = vmatprep.subr.mxu0 0.0
        %1820 = vmatpush1.msra.mxu0 0.0
        %1821 = vmatprep.subr.mxu0 0.0
        %1822 = vmatpush1.msra.mxu0 0.0
        %1823 = vmatprep.subr.mxu0 0.0
        %1824 = vmatpush1.msra.mxu0 0.0
        %1825 = vmatprep.subr.mxu0 0.0
        %1826 = vmatpush1.msra.mxu0 0.0
        %1827 = vmatprep.subr.mxu0 0.0
        %1828 = vmatpush1.msra.mxu0 0.0
        %1829 = vmatprep.subr.mxu0 0.0
        %1830 = vmatpush1.msra.mxu0 0.0
        %1831 = vmatprep.subr.mxu0 0.0
        %1832 = vmatpush1.msra.mxu0 0.0
        %1833 = vmatprep.subr.mxu0 0.0
        %1834 = vmatpush1.msra.mxu0 0.0
        %1835 = vmatprep.subr.mxu0 0.0
        %1836 = vmatpush1.msra.mxu0 0.0
        %1837 = vmatprep.subr.mxu0 0.0
        %1838 = vmatpush1.msra.mxu0 0.0
        %1839 = vmatprep.subr.mxu0 0.0
        %1840 = vmatpush1.msra.mxu0 0.0
        %1841 = vmatprep.subr.mxu0 0.0
        %1842 = vmatpush1.msra.mxu0 0.0
        %1843 = vmatprep.subr.mxu0 0.0
        %1844 = vmatpush1.msra.mxu0 0.0
        %1845 = vmatprep.subr.mxu0 0.0
        %1846 = vmatpush1.msra.mxu0 0.0
        %1847 = vmatprep.subr.mxu0 0.0
        %1848 = vmatpush1.msra.mxu0 0.0
        %1849 = vmatprep.subr.mxu0 0.0
        %1850 = vmatpush1.msra.mxu0 0.0
        %1851 = vmatprep.subr.mxu0 0.0
        %1852 = vmatpush1.msra.mxu0 0.0
        %1853 = vmatprep.subr.mxu0 0.0
        %1854 = vmatpush1.msra.mxu0 0.0
        %1855 = vmatprep.subr.mxu0 0.0
        %1856 = vmatpush1.msra.mxu0 0.0
        %1857 = vmatprep.mubr.f32.mxu0 0.0
        %1858 = vmatmul.mubr.f32.gmra.mrb[0].mxu0 %v1788
        %v1859 = vpop.f32.mrb[0].mxu0
        %v1860 = vadd.f32 0.0, %v1859
        %v1861 = vpop.f32.mrb[0].mxu0
        %1862 = vdwg.mxu0
        %v1863 = vadd.f32 %v1619, %v1860
        %1864 = vrot.lane.b32.xlu0 %v633, 108
        %v1865 = vpop.permute.xlu0 %1864
        %1866 = vrot.lane.b32.xlu0 %v633, 76
        %v1867 = vpop.permute.xlu0 %1866
        %v1868 = vsel %vm639, %v1865, 0
        %v1870 = vsel %vm639, %v1867, 0
        %1872 = vmatprep.subr.mxu0 0.0
        %1873 = vmatpush1.xpose.msra.mxu0 %v1870
        %1874 = vmatprep.subr.mxu0 0.0
        %1875 = vmatpush1.xpose.msra.mxu0 0.0
        %1876 = vmatprep.subr.mxu0 0.0
        %1877 = vmatpush1.xpose.msra.mxu0 0.0
        %1878 = vmatprep.subr.mxu0 0.0
        %1879 = vmatpush1.xpose.msra.mxu0 0.0
        %1880 = vmatprep.subr.mxu0 0.0
        %1881 = vmatpush1.xpose.msra.mxu0 0.0
        %1882 = vmatprep.subr.mxu0 0.0
        %1883 = vmatpush1.xpose.msra.mxu0 0.0
        %1884 = vmatprep.subr.mxu0 0.0
        %1885 = vmatpush1.xpose.msra.mxu0 0.0
        %1886 = vmatprep.subr.mxu0 0.0
        %1887 = vmatpush1.xpose.msra.mxu0 0.0
        %1888 = vmatprep.subr.mxu0 0.0
        %1889 = vmatpush1.xpose.msra.mxu0 0.0
        %1890 = vmatprep.subr.mxu0 0.0
        %1891 = vmatpush1.xpose.msra.mxu0 0.0
        %1892 = vmatprep.subr.mxu0 0.0
        %1893 = vmatpush1.xpose.msra.mxu0 0.0
        %1894 = vmatprep.subr.mxu0 0.0
        %1895 = vmatpush1.xpose.msra.mxu0 0.0
        %1896 = vmatprep.subr.mxu0 0.0
        %1897 = vmatpush1.xpose.msra.mxu0 0.0
        %1898 = vmatprep.subr.mxu0 0.0
        %1899 = vmatpush1.xpose.msra.mxu0 0.0
        %1900 = vmatprep.subr.mxu0 0.0
        %1901 = vmatpush1.xpose.msra.mxu0 0.0
        %1902 = vmatprep.subr.mxu0 0.0
        %1903 = vmatpush1.xpose.msra.mxu0 0.0
        %1904 = vmatprep.subr.mxu0 0.0
        %1905 = vmatpush1.xpose.msra.mxu0 0.0
        %1906 = vmatprep.subr.mxu0 0.0
        %1907 = vmatpush1.xpose.msra.mxu0 0.0
        %1908 = vmatprep.subr.mxu0 0.0
        %1909 = vmatpush1.xpose.msra.mxu0 0.0
        %1910 = vmatprep.subr.mxu0 0.0
        %1911 = vmatpush1.xpose.msra.mxu0 0.0
        %1912 = vmatprep.subr.mxu0 0.0
        %1913 = vmatpush1.xpose.msra.mxu0 0.0
        %1914 = vmatprep.subr.mxu0 0.0
        %1915 = vmatpush1.xpose.msra.mxu0 0.0
        %1916 = vmatprep.subr.mxu0 0.0
        %1917 = vmatpush1.xpose.msra.mxu0 0.0
        %1918 = vmatprep.subr.mxu0 0.0
        %1919 = vmatpush1.xpose.msra.mxu0 0.0
        %1920 = vmatprep.subr.mxu0 0.0
        %1921 = vmatpush1.xpose.msra.mxu0 0.0
        %1922 = vmatprep.subr.mxu0 0.0
        %1923 = vmatpush1.xpose.msra.mxu0 0.0
        %1924 = vmatprep.subr.mxu0 0.0
        %1925 = vmatpush1.xpose.msra.mxu0 0.0
        %1926 = vmatprep.subr.mxu0 0.0
        %1927 = vmatpush1.xpose.msra.mxu0 0.0
        %1928 = vmatprep.subr.mxu0 0.0
        %1929 = vmatpush1.xpose.msra.mxu0 0.0
        %1930 = vmatprep.subr.mxu0 0.0
        %1931 = vmatpush1.xpose.msra.mxu0 0.0
        %1932 = vmatprep.subr.mxu0 0.0
        %1933 = vmatpush1.xpose.msra.mxu0 0.0
        %1934 = vmatprep.subr.mxu0 0.0
        %1935 = vmatpush1.xpose.msra.mxu0 0.0
        %1936 = vmatprep.mubr.f32.mxu0 0.0
        %1937 = vmatmul.mubr.f32.gmra.mrb[0].mxu0 %v1868
        %v1938 = vpop.f32.mrb[0].mxu0
        %v1939 = vadd.f32 0.0, %v1938
        %v1940 = vpop.f32.mrb[0].mxu0
        %1941 = vdwg.mxu0
        %v1942 = vmul.f32 %v1939, 0.5
        %v1943 = vadd.f32 %v1942, %v493
        %v1944 = vsel %vm716, %v1943, -inf
        %1945 = vmax.xlane.f32.xlu0 %v1944
        %v1946 = vpop.xlane.xlu0 %1945
        %v1947 = vsub.f32 %v1943, %v1946
        %v1948 = vmul.f32 %v1947, 1.442695
        %v1949 = vpow.pop %v1948
        %v1950 = vsel %vm716, %v1949, 0.0
        %1951 = vadd.xlane.f32.xlu0 %v1950
        %v1952 = vpop.xlane.xlu0 %1951
        %v1953 = vrcp.pop %v1952
        %v1954 = vmul.f32 %v1949, %v1953
        %1955 = vrot.lane.b32.xlu0 %v633, 44
        %v1956 = vpop.permute.xlu0 %1955
        %v1959 = vsel %vm716, %v1954, 0
        %1961 = vmatprep.subr.mxu0 0.0
        %1962 = vmatpush1.msra.mxu0 %v1956
        %1963 = vmatprep.subr.mxu0 0.0
        %1964 = vmatpush1.msra.mxu0 0.0
        %1965 = vmatprep.subr.mxu0 0.0
        %1966 = vmatpush1.msra.mxu0 0.0
        %1967 = vmatprep.subr.mxu0 0.0
        %1968 = vmatpush1.msra.mxu0 0.0
        %1969 = vmatprep.subr.mxu0 0.0
        %1970 = vmatpush1.msra.mxu0 0.0
        %1971 = vmatprep.subr.mxu0 0.0
        %1972 = vmatpush1.msra.mxu0 0.0
        %1973 = vmatprep.subr.mxu0 0.0
        %1974 = vmatpush1.msra.mxu0 0.0
        %1975 = vmatprep.subr.mxu0 0.0
        %1976 = vmatpush1.msra.mxu0 0.0
        %1977 = vmatprep.subr.mxu0 0.0
        %1978 = vmatpush1.msra.mxu0 0.0
        %1979 = vmatprep.subr.mxu0 0.0
        %1980 = vmatpush1.msra.mxu0 0.0
        %1981 = vmatprep.subr.mxu0 0.0
        %1982 = vmatpush1.msra.mxu0 0.0
        %1983 = vmatprep.subr.mxu0 0.0
        %1984 = vmatpush1.msra.mxu0 0.0
        %1985 = vmatprep.subr.mxu0 0.0
        %1986 = vmatpush1.msra.mxu0 0.0
        %1987 = vmatprep.subr.mxu0 0.0
        %1988 = vmatpush1.msra.mxu0 0.0
        %1989 = vmatprep.subr.mxu0 0.0
        %1990 = vmatpush1.msra.mxu0 0.0
        %1991 = vmatprep.subr.mxu0 0.0
        %1992 = vmatpush1.msra.mxu0 0.0
        %1993 = vmatprep.subr.mxu0 0.0
        %1994 = vmatpush1.msra.mxu0 0.0
        %1995 = vmatprep.subr.mxu0 0.0
        %1996 = vmatpush1.msra.mxu0 0.0
        %1997 = vmatprep.subr.mxu0 0.0
        %1998 = vmatpush1.msra.mxu0 0.0
        %1999 = vmatprep.subr.mxu0 0.0
        %2000 = vmatpush1.msra.mxu0 0.0
        %2001 = vmatprep.subr.mxu0 0.0
        %2002 = vmatpush1.msra.mxu0 0.0
        %2003 = vmatprep.subr.mxu0 0.0
        %2004 = vmatpush1.msra.mxu0 0.0
        %2005 = vmatprep.subr.mxu0 0.0
        %2006 = vmatpush1.msra.mxu0 0.0
        %2007 = vmatprep.subr.mxu0 0.0
        %2008 = vmatpush1.msra.mxu0 0.0
        %2009 = vmatprep.subr.mxu0 0.0
        %2010 = vmatpush1.msra.mxu0 0.0
        %2011 = vmatprep.subr.mxu0 0.0
        %2012 = vmatpush1.msra.mxu0 0.0
        %2013 = vmatprep.subr.mxu0 0.0
        %2014 = vmatpush1.msra.mxu0 0.0
        %2015 = vmatprep.subr.mxu0 0.0
        %2016 = vmatpush1.msra.mxu0 0.0
        %2017 = vmatprep.subr.mxu0 0.0
        %2018 = vmatpush1.msra.mxu0 0.0
        %2019 = vmatprep.subr.mxu0 0.0
        %2020 = vmatpush1.msra.mxu0 0.0
        %2021 = vmatprep.subr.mxu0 0.0
        %2022 = vmatpush1.msra.mxu0 0.0
        %2023 = vmatprep.subr.mxu0 0.0
        %2024 = vmatpush1.msra.mxu0 0.0
        %2025 = vmatprep.mubr.f32.mxu0 0.0
        %2026 = vmatmul.mubr.f32.gmra.mrb[0].mxu0 %v1959
        %v2027 = vpop.f32.mrb[0].mxu0
        %v2028 = vadd.f32 0.0, %v2027
        %v2029 = vpop.f32.mrb[0].mxu0
        %2030 = vdwg.mxu0
        %v2032 = vsel %vm639, %v2028, 0
        %v2035 = vsel %vm807, %v506, 0
        %2037 = vmatprep.subr.mxu0 0.0
        %2038 = vmatpush1.msra.mxu0 %v2035
        %2039 = vmatprep.subr.mxu0 0.0
        %2040 = vmatpush1.msra.mxu0 0.0
        %2041 = vmatprep.subr.mxu0 0.0
        %2042 = vmatpush1.msra.mxu0 0.0
        %2043 = vmatprep.subr.mxu0 0.0
        %2044 = vmatpush1.msra.mxu0 0.0
        %2045 = vmatprep.subr.mxu0 0.0
        %2046 = vmatpush1.msra.mxu0 0.0
        %2047 = vmatprep.subr.mxu0 0.0
        %2048 = vmatpush1.msra.mxu0 0.0
        %2049 = vmatprep.subr.mxu0 0.0
        %2050 = vmatpush1.msra.mxu0 0.0
        %2051 = vmatprep.subr.mxu0 0.0
        %2052 = vmatpush1.msra.mxu0 0.0
        %2053 = vmatprep.subr.mxu0 0.0
        %2054 = vmatpush1.msra.mxu0 0.0
        %2055 = vmatprep.subr.mxu0 0.0
        %2056 = vmatpush1.msra.mxu0 0.0
        %2057 = vmatprep.subr.mxu0 0.0
        %2058 = vmatpush1.msra.mxu0 0.0
        %2059 = vmatprep.subr.mxu0 0.0
        %2060 = vmatpush1.msra.mxu0 0.0
        %2061 = vmatprep.subr.mxu0 0.0
        %2062 = vmatpush1.msra.mxu0 0.0
        %2063 = vmatprep.subr.mxu0 0.0
        %2064 = vmatpush1.msra.mxu0 0.0
        %2065 = vmatprep.subr.mxu0 0.0
        %2066 = vmatpush1.msra.mxu0 0.0
        %2067 = vmatprep.subr.mxu0 0.0
        %2068 = vmatpush1.msra.mxu0 0.0
        %2069 = vmatprep.subr.mxu0 0.0
        %2070 = vmatpush1.msra.mxu0 0.0
        %2071 = vmatprep.subr.mxu0 0.0
        %2072 = vmatpush1.msra.mxu0 0.0
        %2073 = vmatprep.subr.mxu0 0.0
        %2074 = vmatpush1.msra.mxu0 0.0
        %2075 = vmatprep.subr.mxu0 0.0
        %2076 = vmatpush1.msra.mxu0 0.0
        %2077 = vmatprep.subr.mxu0 0.0
        %2078 = vmatpush1.msra.mxu0 0.0
        %2079 = vmatprep.subr.mxu0 0.0
        %2080 = vmatpush1.msra.mxu0 0.0
        %2081 = vmatprep.subr.mxu0 0.0
        %2082 = vmatpush1.msra.mxu0 0.0
        %2083 = vmatprep.subr.mxu0 0.0
        %2084 = vmatpush1.msra.mxu0 0.0
        %2085 = vmatprep.subr.mxu0 0.0
        %2086 = vmatpush1.msra.mxu0 0.0
        %2087 = vmatprep.subr.mxu0 0.0
        %2088 = vmatpush1.msra.mxu0 0.0
        %2089 = vmatprep.subr.mxu0 0.0
        %2090 = vmatpush1.msra.mxu0 0.0
        %2091 = vmatprep.subr.mxu0 0.0
        %2092 = vmatpush1.msra.mxu0 0.0
        %2093 = vmatprep.subr.mxu0 0.0
        %2094 = vmatpush1.msra.mxu0 0.0
        %2095 = vmatprep.subr.mxu0 0.0
        %2096 = vmatpush1.msra.mxu0 0.0
        %2097 = vmatprep.subr.mxu0 0.0
        %2098 = vmatpush1.msra.mxu0 0.0
        %2099 = vmatprep.subr.mxu0 0.0
        %2100 = vmatpush1.msra.mxu0 0.0
        %2101 = vmatprep.mubr.f32.mxu0 0.0
        %2102 = vmatmul.mubr.f32.gmra.mrb[0].mxu0 %v2032
        %v2103 = vpop.f32.mrb[0].mxu0
        %v2104 = vadd.f32 0.0, %v2103
        %v2105 = vpop.f32.mrb[0].mxu0
        %2106 = vdwg.mxu0
        %v2107 = vadd.f32 %v1863, %v2104
        %2108 = vrot.lane.b32.xlu0 %v633, 104
        %v2109 = vpop.permute.xlu0 %2108
        %2110 = vrot.lane.b32.xlu0 %v633, 72
        %v2111 = vpop.permute.xlu0 %2110
        %v2112 = vsel %vm639, %v2109, 0
        %v2114 = vsel %vm639, %v2111, 0
        %2116 = vmatprep.subr.mxu0 0.0
        %2117 = vmatpush1.xpose.msra.mxu0 %v2114
        %2118 = vmatprep.subr.mxu0 0.0
        %2119 = vmatpush1.xpose.msra.mxu0 0.0
        %2120 = vmatprep.subr.mxu0 0.0
        %2121 = vmatpush1.xpose.msra.mxu0 0.0
        %2122 = vmatprep.subr.mxu0 0.0
        %2123 = vmatpush1.xpose.msra.mxu0 0.0
        %2124 = vmatprep.subr.mxu0 0.0
        %2125 = vmatpush1.xpose.msra.mxu0 0.0
        %2126 = vmatprep.subr.mxu0 0.0
        %2127 = vmatpush1.xpose.msra.mxu0 0.0
        %2128 = vmatprep.subr.mxu0 0.0
        %2129 = vmatpush1.xpose.msra.mxu0 0.0
        %2130 = vmatprep.subr.mxu0 0.0
        %2131 = vmatpush1.xpose.msra.mxu0 0.0
        %2132 = vmatprep.subr.mxu0 0.0
        %2133 = vmatpush1.xpose.msra.mxu0 0.0
        %2134 = vmatprep.subr.mxu0 0.0
        %2135 = vmatpush1.xpose.msra.mxu0 0.0
        %2136 = vmatprep.subr.mxu0 0.0
        %2137 = vmatpush1.xpose.msra.mxu0 0.0
        %2138 = vmatprep.subr.mxu0 0.0
        %2139 = vmatpush1.xpose.msra.mxu0 0.0
        %2140 = vmatprep.subr.mxu0 0.0
        %2141 = vmatpush1.xpose.msra.mxu0 0.0
        %2142 = vmatprep.subr.mxu0 0.0
        %2143 = vmatpush1.xpose.msra.mxu0 0.0
        %2144 = vmatprep.subr.mxu0 0.0
        %2145 = vmatpush1.xpose.msra.mxu0 0.0
        %2146 = vmatprep.subr.mxu0 0.0
        %2147 = vmatpush1.xpose.msra.mxu0 0.0
        %2148 = vmatprep.subr.mxu0 0.0
        %2149 = vmatpush1.xpose.msra.mxu0 0.0
        %2150 = vmatprep.subr.mxu0 0.0
        %2151 = vmatpush1.xpose.msra.mxu0 0.0
        %2152 = vmatprep.subr.mxu0 0.0
        %2153 = vmatpush1.xpose.msra.mxu0 0.0
        %2154 = vmatprep.subr.mxu0 0.0
        %2155 = vmatpush1.xpose.msra.mxu0 0.0
        %2156 = vmatprep.subr.mxu0 0.0
        %2157 = vmatpush1.xpose.msra.mxu0 0.0
        %2158 = vmatprep.subr.mxu0 0.0
        %2159 = vmatpush1.xpose.msra.mxu0 0.0
        %2160 = vmatprep.subr.mxu0 0.0
        %2161 = vmatpush1.xpose.msra.mxu0 0.0
        %2162 = vmatprep.subr.mxu0 0.0
        %2163 = vmatpush1.xpose.msra.mxu0 0.0
        %2164 = vmatprep.subr.mxu0 0.0
        %2165 = vmatpush1.xpose.msra.mxu0 0.0
        %2166 = vmatprep.subr.mxu0 0.0
        %2167 = vmatpush1.xpose.msra.mxu0 0.0
        %2168 = vmatprep.subr.mxu0 0.0
        %2169 = vmatpush1.xpose.msra.mxu0 0.0
        %2170 = vmatprep.subr.mxu0 0.0
        %2171 = vmatpush1.xpose.msra.mxu0 0.0
        %2172 = vmatprep.subr.mxu0 0.0
        %2173 = vmatpush1.xpose.msra.mxu0 0.0
        %2174 = vmatprep.subr.mxu0 0.0
        %2175 = vmatpush1.xpose.msra.mxu0 0.0
        %2176 = vmatprep.subr.mxu0 0.0
        %2177 = vmatpush1.xpose.msra.mxu0 0.0
        %2178 = vmatprep.subr.mxu0 0.0
        %2179 = vmatpush1.xpose.msra.mxu0 0.0
        %2180 = vmatprep.mubr.f32.mxu0 0.0
        %2181 = vmatmul.mubr.f32.gmra.mrb[0].mxu0 %v2112
        %v2182 = vpop.f32.mrb[0].mxu0
        %v2183 = vadd.f32 0.0, %v2182
        %v2184 = vpop.f32.mrb[0].mxu0
        %2185 = vdwg.mxu0
        %v2186 = vmul.f32 %v2183, 0.5
        %v2187 = vadd.f32 %v2186, %v493
        %v2188 = vsel %vm716, %v2187, -inf
        %2189 = vmax.xlane.f32.xlu0 %v2188
        %v2190 = vpop.xlane.xlu0 %2189
        %v2191 = vsub.f32 %v2187, %v2190
        %v2192 = vmul.f32 %v2191, 1.442695
        %v2193 = vpow.pop %v2192
        %v2194 = vsel %vm716, %v2193, 0.0
        %2195 = vadd.xlane.f32.xlu0 %v2194
        %v2196 = vpop.xlane.xlu0 %2195
        %v2197 = vrcp.pop %v2196
        %v2198 = vmul.f32 %v2193, %v2197
        %2199 = vrot.lane.b32.xlu0 %v633, 40
        %v2200 = vpop.permute.xlu0 %2199
        %v2203 = vsel %vm716, %v2198, 0
        %2205 = vmatprep.subr.mxu0 0.0
        %2206 = vmatpush1.msra.mxu0 %v2200
        %2207 = vmatprep.subr.mxu0 0.0
        %2208 = vmatpush1.msra.mxu0 0.0
        %2209 = vmatprep.subr.mxu0 0.0
        %2210 = vmatpush1.msra.mxu0 0.0
        %2211 = vmatprep.subr.mxu0 0.0
        %2212 = vmatpush1.msra.mxu0 0.0
        %2213 = vmatprep.subr.mxu0 0.0
        %2214 = vmatpush1.msra.mxu0 0.0
        %2215 = vmatprep.subr.mxu0 0.0
        %2216 = vmatpush1.msra.mxu0 0.0
        %2217 = vmatprep.subr.mxu0 0.0
        %2218 = vmatpush1.msra.mxu0 0.0
        %2219 = vmatprep.subr.mxu0 0.0
        %2220 = vmatpush1.msra.mxu0 0.0
        %2221 = vmatprep.subr.mxu0 0.0
        %2222 = vmatpush1.msra.mxu0 0.0
        %2223 = vmatprep.subr.mxu0 0.0
        %2224 = vmatpush1.msra.mxu0 0.0
        %2225 = vmatprep.subr.mxu0 0.0
        %2226 = vmatpush1.msra.mxu0 0.0
        %2227 = vmatprep.subr.mxu0 0.0
        %2228 = vmatpush1.msra.mxu0 0.0
        %2229 = vmatprep.subr.mxu0 0.0
        %2230 = vmatpush1.msra.mxu0 0.0
        %2231 = vmatprep.subr.mxu0 0.0
        %2232 = vmatpush1.msra.mxu0 0.0
        %2233 = vmatprep.subr.mxu0 0.0
        %2234 = vmatpush1.msra.mxu0 0.0
        %2235 = vmatprep.subr.mxu0 0.0
        %2236 = vmatpush1.msra.mxu0 0.0
        %2237 = vmatprep.subr.mxu0 0.0
        %2238 = vmatpush1.msra.mxu0 0.0
        %2239 = vmatprep.subr.mxu0 0.0
        %2240 = vmatpush1.msra.mxu0 0.0
        %2241 = vmatprep.subr.mxu0 0.0
        %2242 = vmatpush1.msra.mxu0 0.0
        %2243 = vmatprep.subr.mxu0 0.0
        %2244 = vmatpush1.msra.mxu0 0.0
        %2245 = vmatprep.subr.mxu0 0.0
        %2246 = vmatpush1.msra.mxu0 0.0
        %2247 = vmatprep.subr.mxu0 0.0
        %2248 = vmatpush1.msra.mxu0 0.0
        %2249 = vmatprep.subr.mxu0 0.0
        %2250 = vmatpush1.msra.mxu0 0.0
        %2251 = vmatprep.subr.mxu0 0.0
        %2252 = vmatpush1.msra.mxu0 0.0
        %2253 = vmatprep.subr.mxu0 0.0
        %2254 = vmatpush1.msra.mxu0 0.0
        %2255 = vmatprep.subr.mxu0 0.0
        %2256 = vmatpush1.msra.mxu0 0.0
        %2257 = vmatprep.subr.mxu0 0.0
        %2258 = vmatpush1.msra.mxu0 0.0
        %2259 = vmatprep.subr.mxu0 0.0
        %2260 = vmatpush1.msra.mxu0 0.0
        %2261 = vmatprep.subr.mxu0 0.0
        %2262 = vmatpush1.msra.mxu0 0.0
        %2263 = vmatprep.subr.mxu0 0.0
        %2264 = vmatpush1.msra.mxu0 0.0
        %2265 = vmatprep.subr.mxu0 0.0
        %2266 = vmatpush1.msra.mxu0 0.0
        %2267 = vmatprep.subr.mxu0 0.0
        %2268 = vmatpush1.msra.mxu0 0.0
        %2269 = vmatprep.mubr.f32.mxu0 0.0
        %2270 = vmatmul.mubr.f32.gmra.mrb[0].mxu0 %v2203
        %v2271 = vpop.f32.mrb[0].mxu0
        %v2272 = vadd.f32 0.0, %v2271
        %v2273 = vpop.f32.mrb[0].mxu0
        %2274 = vdwg.mxu0
        %v2276 = vsel %vm639, %v2272, 0
        %v2279 = vsel %vm807, %v507, 0
        %2281 = vmatprep.subr.mxu0 0.0
        %2282 = vmatpush1.msra.mxu0 %v2279
        %2283 = vmatprep.subr.mxu0 0.0
        %2284 = vmatpush1.msra.mxu0 0.0
        %2285 = vmatprep.subr.mxu0 0.0
        %2286 = vmatpush1.msra.mxu0 0.0
        %2287 = vmatprep.subr.mxu0 0.0
        %2288 = vmatpush1.msra.mxu0 0.0
        %2289 = vmatprep.subr.mxu0 0.0
        %2290 = vmatpush1.msra.mxu0 0.0
        %2291 = vmatprep.subr.mxu0 0.0
        %2292 = vmatpush1.msra.mxu0 0.0
        %2293 = vmatprep.subr.mxu0 0.0
        %2294 = vmatpush1.msra.mxu0 0.0
        %2295 = vmatprep.subr.mxu0 0.0
        %2296 = vmatpush1.msra.mxu0 0.0
        %2297 = vmatprep.subr.mxu0 0.0
        %2298 = vmatpush1.msra.mxu0 0.0
        %2299 = vmatprep.subr.mxu0 0.0
        %2300 = vmatpush1.msra.mxu0 0.0
        %2301 = vmatprep.subr.mxu0 0.0
        %2302 = vmatpush1.msra.mxu0 0.0
        %2303 = vmatprep.subr.mxu0 0.0
        %2304 = vmatpush1.msra.mxu0 0.0
        %2305 = vmatprep.subr.mxu0 0.0
        %2306 = vmatpush1.msra.mxu0 0.0
        %2307 = vmatprep.subr.mxu0 0.0
        %2308 = vmatpush1.msra.mxu0 0.0
        %2309 = vmatprep.subr.mxu0 0.0
        %2310 = vmatpush1.msra.mxu0 0.0
        %2311 = vmatprep.subr.mxu0 0.0
        %2312 = vmatpush1.msra.mxu0 0.0
        %2313 = vmatprep.subr.mxu0 0.0
        %2314 = vmatpush1.msra.mxu0 0.0
        %2315 = vmatprep.subr.mxu0 0.0
        %2316 = vmatpush1.msra.mxu0 0.0
        %2317 = vmatprep.subr.mxu0 0.0
        %2318 = vmatpush1.msra.mxu0 0.0
        %2319 = vmatprep.subr.mxu0 0.0
        %2320 = vmatpush1.msra.mxu0 0.0
        %2321 = vmatprep.subr.mxu0 0.0
        %2322 = vmatpush1.msra.mxu0 0.0
        %2323 = vmatprep.subr.mxu0 0.0
        %2324 = vmatpush1.msra.mxu0 0.0
        %2325 = vmatprep.subr.mxu0 0.0
        %2326 = vmatpush1.msra.mxu0 0.0
        %2327 = vmatprep.subr.mxu0 0.0
        %2328 = vmatpush1.msra.mxu0 0.0
        %2329 = vmatprep.subr.mxu0 0.0
        %2330 = vmatpush1.msra.mxu0 0.0
        %2331 = vmatprep.subr.mxu0 0.0
        %2332 = vmatpush1.msra.mxu0 0.0
        %2333 = vmatprep.subr.mxu0 0.0
        %2334 = vmatpush1.msra.mxu0 0.0
        %2335 = vmatprep.subr.mxu0 0.0
        %2336 = vmatpush1.msra.mxu0 0.0
        %2337 = vmatprep.subr.mxu0 0.0
        %2338 = vmatpush1.msra.mxu0 0.0
        %2339 = vmatprep.subr.mxu0 0.0
        %2340 = vmatpush1.msra.mxu0 0.0
        %2341 = vmatprep.subr.mxu0 0.0
        %2342 = vmatpush1.msra.mxu0 0.0
        %2343 = vmatprep.subr.mxu0 0.0
        %2344 = vmatpush1.msra.mxu0 0.0
        %2345 = vmatprep.mubr.f32.mxu0 0.0
        %2346 = vmatmul.mubr.f32.gmra.mrb[0].mxu0 %v2276
        %v2347 = vpop.f32.mrb[0].mxu0
        %v2348 = vadd.f32 0.0, %v2347
        %v2349 = vpop.f32.mrb[0].mxu0
        %2350 = vdwg.mxu0
        %v2351 = vadd.f32 %v2107, %v2348
        %2352 = vrot.lane.b32.xlu0 %v633, 100
        %v2353 = vpop.permute.xlu0 %2352
        %2354 = vrot.lane.b32.xlu0 %v633, 68
        %v2355 = vpop.permute.xlu0 %2354
        %v2356 = vsel %vm639, %v2353, 0
        %v2358 = vsel %vm639, %v2355, 0
        %2360 = vmatprep.subr.mxu0 0.0
        %2361 = vmatpush1.xpose.msra.mxu0 %v2358
        %2362 = vmatprep.subr.mxu0 0.0
        %2363 = vmatpush1.xpose.msra.mxu0 0.0
        %2364 = vmatprep.subr.mxu0 0.0
        %2365 = vmatpush1.xpose.msra.mxu0 0.0
        %2366 = vmatprep.subr.mxu0 0.0
        %2367 = vmatpush1.xpose.msra.mxu0 0.0
        %2368 = vmatprep.subr.mxu0 0.0
        %2369 = vmatpush1.xpose.msra.mxu0 0.0
        %2370 = vmatprep.subr.mxu0 0.0
        %2371 = vmatpush1.xpose.msra.mxu0 0.0
        %2372 = vmatprep.subr.mxu0 0.0
        %2373 = vmatpush1.xpose.msra.mxu0 0.0
        %2374 = vmatprep.subr.mxu0 0.0
        %2375 = vmatpush1.xpose.msra.mxu0 0.0
        %2376 = vmatprep.subr.mxu0 0.0
        %2377 = vmatpush1.xpose.msra.mxu0 0.0
        %2378 = vmatprep.subr.mxu0 0.0
        %2379 = vmatpush1.xpose.msra.mxu0 0.0
        %2380 = vmatprep.subr.mxu0 0.0
        %2381 = vmatpush1.xpose.msra.mxu0 0.0
        %2382 = vmatprep.subr.mxu0 0.0
        %2383 = vmatpush1.xpose.msra.mxu0 0.0
        %2384 = vmatprep.subr.mxu0 0.0
        %2385 = vmatpush1.xpose.msra.mxu0 0.0
        %2386 = vmatprep.subr.mxu0 0.0
        %2387 = vmatpush1.xpose.msra.mxu0 0.0
        %2388 = vmatprep.subr.mxu0 0.0
        %2389 = vmatpush1.xpose.msra.mxu0 0.0
        %2390 = vmatprep.subr.mxu0 0.0
        %2391 = vmatpush1.xpose.msra.mxu0 0.0
        %2392 = vmatprep.subr.mxu0 0.0
        %2393 = vmatpush1.xpose.msra.mxu0 0.0
        %2394 = vmatprep.subr.mxu0 0.0
        %2395 = vmatpush1.xpose.msra.mxu0 0.0
        %2396 = vmatprep.subr.mxu0 0.0
        %2397 = vmatpush1.xpose.msra.mxu0 0.0
        %2398 = vmatprep.subr.mxu0 0.0
        %2399 = vmatpush1.xpose.msra.mxu0 0.0
        %2400 = vmatprep.subr.mxu0 0.0
        %2401 = vmatpush1.xpose.msra.mxu0 0.0
        %2402 = vmatprep.subr.mxu0 0.0
        %2403 = vmatpush1.xpose.msra.mxu0 0.0
        %2404 = vmatprep.subr.mxu0 0.0
        %2405 = vmatpush1.xpose.msra.mxu0 0.0
        %2406 = vmatprep.subr.mxu0 0.0
        %2407 = vmatpush1.xpose.msra.mxu0 0.0
        %2408 = vmatprep.subr.mxu0 0.0
        %2409 = vmatpush1.xpose.msra.mxu0 0.0
        %2410 = vmatprep.subr.mxu0 0.0
        %2411 = vmatpush1.xpose.msra.mxu0 0.0
        %2412 = vmatprep.subr.mxu0 0.0
        %2413 = vmatpush1.xpose.msra.mxu0 0.0
        %2414 = vmatprep.subr.mxu0 0.0
        %2415 = vmatpush1.xpose.msra.mxu0 0.0
        %2416 = vmatprep.subr.mxu0 0.0
        %2417 = vmatpush1.xpose.msra.mxu0 0.0
        %2418 = vmatprep.subr.mxu0 0.0
        %2419 = vmatpush1.xpose.msra.mxu0 0.0
        %2420 = vmatprep.subr.mxu0 0.0
        %2421 = vmatpush1.xpose.msra.mxu0 0.0
        %2422 = vmatprep.subr.mxu0 0.0
        %2423 = vmatpush1.xpose.msra.mxu0 0.0
        %2424 = vmatprep.mubr.f32.mxu0 0.0
        %2425 = vmatmul.mubr.f32.gmra.mrb[0].mxu0 %v2356
        %v2426 = vpop.f32.mrb[0].mxu0
        %v2427 = vadd.f32 0.0, %v2426
        %v2428 = vpop.f32.mrb[0].mxu0
        %2429 = vdwg.mxu0
        %v2430 = vmul.f32 %v2427, 0.5
        %v2431 = vadd.f32 %v2430, %v493
        %v2432 = vsel %vm716, %v2431, -inf
        %2433 = vmax.xlane.f32.xlu0 %v2432
        %v2434 = vpop.xlane.xlu0 %2433
        %v2435 = vsub.f32 %v2431, %v2434
        %v2436 = vmul.f32 %v2435, 1.442695
        %v2437 = vpow.pop %v2436
        %v2438 = vsel %vm716, %v2437, 0.0
        %2439 = vadd.xlane.f32.xlu0 %v2438
        %v2440 = vpop.xlane.xlu0 %2439
        %v2441 = vrcp.pop %v2440
        %v2442 = vmul.f32 %v2437, %v2441
        %2443 = vrot.lane.b32.xlu0 %v633, 36
        %v2444 = vpop.permute.xlu0 %2443
        %v2447 = vsel %vm716, %v2442, 0
        %2449 = vmatprep.subr.mxu0 0.0
        %2450 = vmatpush1.msra.mxu0 %v2444
        %2451 = vmatprep.subr.mxu0 0.0
        %2452 = vmatpush1.msra.mxu0 0.0
        %2453 = vmatprep.subr.mxu0 0.0
        %2454 = vmatpush1.msra.mxu0 0.0
        %2455 = vmatprep.subr.mxu0 0.0
        %2456 = vmatpush1.msra.mxu0 0.0
        %2457 = vmatprep.subr.mxu0 0.0
        %2458 = vmatpush1.msra.mxu0 0.0
        %2459 = vmatprep.subr.mxu0 0.0
        %2460 = vmatpush1.msra.mxu0 0.0
        %2461 = vmatprep.subr.mxu0 0.0
        %2462 = vmatpush1.msra.mxu0 0.0
        %2463 = vmatprep.subr.mxu0 0.0
        %2464 = vmatpush1.msra.mxu0 0.0
        %2465 = vmatprep.subr.mxu0 0.0
        %2466 = vmatpush1.msra.mxu0 0.0
        %2467 = vmatprep.subr.mxu0 0.0
        %2468 = vmatpush1.msra.mxu0 0.0
        %2469 = vmatprep.subr.mxu0 0.0
        %2470 = vmatpush1.msra.mxu0 0.0
        %2471 = vmatprep.subr.mxu0 0.0
        %2472 = vmatpush1.msra.mxu0 0.0
        %2473 = vmatprep.subr.mxu0 0.0
        %2474 = vmatpush1.msra.mxu0 0.0
        %2475 = vmatprep.subr.mxu0 0.0
        %2476 = vmatpush1.msra.mxu0 0.0
        %2477 = vmatprep.subr.mxu0 0.0
        %2478 = vmatpush1.msra.mxu0 0.0
        %2479 = vmatprep.subr.mxu0 0.0
        %2480 = vmatpush1.msra.mxu0 0.0
        %2481 = vmatprep.subr.mxu0 0.0
        %2482 = vmatpush1.msra.mxu0 0.0
        %2483 = vmatprep.subr.mxu0 0.0
        %2484 = vmatpush1.msra.mxu0 0.0
        %2485 = vmatprep.subr.mxu0 0.0
        %2486 = vmatpush1.msra.mxu0 0.0
        %2487 = vmatprep.subr.mxu0 0.0
        %2488 = vmatpush1.msra.mxu0 0.0
        %2489 = vmatprep.subr.mxu0 0.0
        %2490 = vmatpush1.msra.mxu0 0.0
        %2491 = vmatprep.subr.mxu0 0.0
        %2492 = vmatpush1.msra.mxu0 0.0
        %2493 = vmatprep.subr.mxu0 0.0
        %2494 = vmatpush1.msra.mxu0 0.0
        %2495 = vmatprep.subr.mxu0 0.0
        %2496 = vmatpush1.msra.mxu0 0.0
        %2497 = vmatprep.subr.mxu0 0.0
        %2498 = vmatpush1.msra.mxu0 0.0
        %2499 = vmatprep.subr.mxu0 0.0
        %2500 = vmatpush1.msra.mxu0 0.0
        %2501 = vmatprep.subr.mxu0 0.0
        %2502 = vmatpush1.msra.mxu0 0.0
        %2503 = vmatprep.subr.mxu0 0.0
        %2504 = vmatpush1.msra.mxu0 0.0
        %2505 = vmatprep.subr.mxu0 0.0
        %2506 = vmatpush1.msra.mxu0 0.0
        %2507 = vmatprep.subr.mxu0 0.0
        %2508 = vmatpush1.msra.mxu0 0.0
        %2509 = vmatprep.subr.mxu0 0.0
        %2510 = vmatpush1.msra.mxu0 0.0
        %2511 = vmatprep.subr.mxu0 0.0
        %2512 = vmatpush1.msra.mxu0 0.0
        %2513 = vmatprep.mubr.f32.mxu0 0.0
        %2514 = vmatmul.mubr.f32.gmra.mrb[0].mxu0 %v2447
        %v2515 = vpop.f32.mrb[0].mxu0
        %v2516 = vadd.f32 0.0, %v2515
        %v2517 = vpop.f32.mrb[0].mxu0
        %2518 = vdwg.mxu0
        %v2520 = vsel %vm639, %v2516, 0
        %v2523 = vsel %vm807, %v508, 0
        %2525 = vmatprep.subr.mxu0 0.0
        %2526 = vmatpush1.msra.mxu0 %v2523
        %2527 = vmatprep.subr.mxu0 0.0
        %2528 = vmatpush1.msra.mxu0 0.0
        %2529 = vmatprep.subr.mxu0 0.0
        %2530 = vmatpush1.msra.mxu0 0.0
        %2531 = vmatprep.subr.mxu0 0.0
        %2532 = vmatpush1.msra.mxu0 0.0
        %2533 = vmatprep.subr.mxu0 0.0
        %2534 = vmatpush1.msra.mxu0 0.0
        %2535 = vmatprep.subr.mxu0 0.0
        %2536 = vmatpush1.msra.mxu0 0.0
        %2537 = vmatprep.subr.mxu0 0.0
        %2538 = vmatpush1.msra.mxu0 0.0
        %2539 = vmatprep.subr.mxu0 0.0
        %2540 = vmatpush1.msra.mxu0 0.0
        %2541 = vmatprep.subr.mxu0 0.0
        %2542 = vmatpush1.msra.mxu0 0.0
        %2543 = vmatprep.subr.mxu0 0.0
        %2544 = vmatpush1.msra.mxu0 0.0
        %2545 = vmatprep.subr.mxu0 0.0
        %2546 = vmatpush1.msra.mxu0 0.0
        %2547 = vmatprep.subr.mxu0 0.0
        %2548 = vmatpush1.msra.mxu0 0.0
        %2549 = vmatprep.subr.mxu0 0.0
        %2550 = vmatpush1.msra.mxu0 0.0
        %2551 = vmatprep.subr.mxu0 0.0
        %2552 = vmatpush1.msra.mxu0 0.0
        %2553 = vmatprep.subr.mxu0 0.0
        %2554 = vmatpush1.msra.mxu0 0.0
        %2555 = vmatprep.subr.mxu0 0.0
        %2556 = vmatpush1.msra.mxu0 0.0
        %2557 = vmatprep.subr.mxu0 0.0
        %2558 = vmatpush1.msra.mxu0 0.0
        %2559 = vmatprep.subr.mxu0 0.0
        %2560 = vmatpush1.msra.mxu0 0.0
        %2561 = vmatprep.subr.mxu0 0.0
        %2562 = vmatpush1.msra.mxu0 0.0
        %2563 = vmatprep.subr.mxu0 0.0
        %2564 = vmatpush1.msra.mxu0 0.0
        %2565 = vmatprep.subr.mxu0 0.0
        %2566 = vmatpush1.msra.mxu0 0.0
        %2567 = vmatprep.subr.mxu0 0.0
        %2568 = vmatpush1.msra.mxu0 0.0
        %2569 = vmatprep.subr.mxu0 0.0
        %2570 = vmatpush1.msra.mxu0 0.0
        %2571 = vmatprep.subr.mxu0 0.0
        %2572 = vmatpush1.msra.mxu0 0.0
        %2573 = vmatprep.subr.mxu0 0.0
        %2574 = vmatpush1.msra.mxu0 0.0
        %2575 = vmatprep.subr.mxu0 0.0
        %2576 = vmatpush1.msra.mxu0 0.0
        %2577 = vmatprep.subr.mxu0 0.0
        %2578 = vmatpush1.msra.mxu0 0.0
        %2579 = vmatprep.subr.mxu0 0.0
        %2580 = vmatpush1.msra.mxu0 0.0
        %2581 = vmatprep.subr.mxu0 0.0
        %2582 = vmatpush1.msra.mxu0 0.0
        %2583 = vmatprep.subr.mxu0 0.0
        %2584 = vmatpush1.msra.mxu0 0.0
        %2585 = vmatprep.subr.mxu0 0.0
        %2586 = vmatpush1.msra.mxu0 0.0
        %2587 = vmatprep.subr.mxu0 0.0
        %2588 = vmatpush1.msra.mxu0 0.0
        %2589 = vmatprep.mubr.f32.mxu0 0.0
        %2590 = vmatmul.mubr.f32.gmra.mrb[0].mxu0 %v2520
        %v2591 = vpop.f32.mrb[0].mxu0
        %v2592 = vadd.f32 0.0, %v2591
        %v2593 = vpop.f32.mrb[0].mxu0
        %2594 = vdwg.mxu0
        %v2595 = vadd.f32 %v2351, %v2592
        %v2596 = vadd.f32 %v2595, %v490
        %v2597 = vsel %vm532, %v2596, 0.0
        %2598 = vadd.xlane.f32.xlu0 %v2597
        %v2599 = vpop.xlane.xlu0 %2598
        %v2600 = vmul.f32 %v2599, %v536
        %v2601 = vsub.f32 %v2596, %v2600
        %v2602 = vmul.f32 %v2601, %v2601
        %v2603 = vsel %vm532, %v2602, 0.0
        %2604 = vadd.xlane.f32.xlu0 %v2603
        %v2605 = vpop.xlane.xlu0 %2604
        %v2606 = vmul.f32 %v2605, %v536
        %v2607 = vadd.f32 %v2606, 1e-05
        %v2608 = vrsqrt.pop %v2607
        %v2609 = vmul.f32 %v2601, %v2608
        %v2610 = vlaneseq
        %v2611 = vshrl.u32 %v2610, 7
        %v2612 = vsub.s32 2, %v2611
        %v2613 = vrot.slane %v495, %v2612
        %v2614 = vmul.f32 %v2609, %v2613
        %v2615 = vlaneseq
        %v2616 = vshrl.u32 %v2615, 7
        %v2617 = vsub.s32 3, %v2616
        %v2618 = vrot.slane %v495, %v2617
        %v2619 = vadd.f32 %v2614, %v2618
        %v2621 = vsel %vm532, %v2619, 0
        %2623 = vmatprep.subr.mxu0 0.0
        %2624 = vmatpush1.msra.mxu0 %v496
        %2625 = vmatprep.subr.mxu0 0.0
        %2626 = vmatpush1.msra.mxu0 %v497
        %2627 = vmatprep.subr.mxu0 0.0
        %2628 = vmatpush1.msra.mxu0 %v498
        %2629 = vmatprep.subr.mxu0 0.0
        %2630 = vmatpush1.msra.mxu0 %v499
        %2631 = vmatprep.subr.mxu0 0.0
        %2632 = vmatpush1.msra.mxu0 0.0
        %2633 = vmatprep.subr.mxu0 0.0
        %2634 = vmatpush1.msra.mxu0 0.0
        %2635 = vmatprep.subr.mxu0 0.0
        %2636 = vmatpush1.msra.mxu0 0.0
        %2637 = vmatprep.subr.mxu0 0.0
        %2638 = vmatpush1.msra.mxu0 0.0
        %2639 = vmatprep.subr.mxu0 0.0
        %2640 = vmatpush1.msra.mxu0 0.0
        %2641 = vmatprep.subr.mxu0 0.0
        %2642 = vmatpush1.msra.mxu0 0.0
        %2643 = vmatprep.subr.mxu0 0.0
        %2644 = vmatpush1.msra.mxu0 0.0
        %2645 = vmatprep.subr.mxu0 0.0
        %2646 = vmatpush1.msra.mxu0 0.0
        %2647 = vmatprep.subr.mxu0 0.0
        %2648 = vmatpush1.msra.mxu0 0.0
        %2649 = vmatprep.subr.mxu0 0.0
        %2650 = vmatpush1.msra.mxu0 0.0
        %2651 = vmatprep.subr.mxu0 0.0
        %2652 = vmatpush1.msra.mxu0 0.0
        %2653 = vmatprep.subr.mxu0 0.0
        %2654 = vmatpush1.msra.mxu0 0.0
        %2655 = vmatprep.subr.mxu0 0.0
        %2656 = vmatpush1.msra.mxu0 0.0
        %2657 = vmatprep.subr.mxu0 0.0
        %2658 = vmatpush1.msra.mxu0 0.0
        %2659 = vmatprep.subr.mxu0 0.0
        %2660 = vmatpush1.msra.mxu0 0.0
        %2661 = vmatprep.subr.mxu0 0.0
        %2662 = vmatpush1.msra.mxu0 0.0
        %2663 = vmatprep.subr.mxu0 0.0
        %2664 = vmatpush1.msra.mxu0 0.0
        %2665 = vmatprep.subr.mxu0 0.0
        %2666 = vmatpush1.msra.mxu0 0.0
        %2667 = vmatprep.subr.mxu0 0.0
        %2668 = vmatpush1.msra.mxu0 0.0
        %2669 = vmatprep.subr.mxu0 0.0
        %2670 = vmatpush1.msra.mxu0 0.0
        %2671 = vmatprep.subr.mxu0 0.0
        %2672 = vmatpush1.msra.mxu0 0.0
        %2673 = vmatprep.subr.mxu0 0.0
        %2674 = vmatpush1.msra.mxu0 0.0
        %2675 = vmatprep.subr.mxu0 0.0
        %2676 = vmatpush1.msra.mxu0 0.0
        %2677 = vmatprep.subr.mxu0 0.0
        %2678 = vmatpush1.msra.mxu0 0.0
        %2679 = vmatprep.subr.mxu0 0.0
        %2680 = vmatpush1.msra.mxu0 0.0
        %2681 = vmatprep.subr.mxu0 0.0
        %2682 = vmatpush1.msra.mxu0 0.0
        %2683 = vmatprep.subr.mxu0 0.0
        %2684 = vmatpush1.msra.mxu0 0.0
        %2685 = vmatprep.subr.mxu0 0.0
        %2686 = vmatpush1.msra.mxu0 0.0
        %2687 = vmatprep.mubr.f32.mxu0 0.0
        %2688 = vmatmul.mubr.f32.gmra.mrb[0].mxu0 %v2621
        %v2689 = vpop.f32.mrb[0].mxu0
        %v2690 = vadd.f32 %v561, %v2689
        %v2691 = vpop.f32.mrb[0].mxu0
        %2692 = vdwg.mxu0
        %2697 = vrot.lane.b32.xlu0 %v496, 96
        %v2698 = vpop.permute.xlu0 %2697
        %2699 = vrot.lane.b32.xlu0 %v497, 96
        %v2700 = vpop.permute.xlu0 %2699
        %2701 = vrot.lane.b32.xlu0 %v498, 96
        %v2702 = vpop.permute.xlu0 %2701
        %2703 = vrot.lane.b32.xlu0 %v499, 96
        %v2704 = vpop.permute.xlu0 %2703
        %2709 = vrot.lane.b32.xlu0 %v561, 96
        %v2710 = vpop.permute.xlu0 %2709
        %v2713 = vsel %vm532, %v491, 0
        %v2716 = vsel %vm532, %v492, 0
        %2718 = vmatprep.subr.mxu0 0.0
        %2719 = vmatpush1.msra.mxu0 %v2698
        %2720 = vmatprep.subr.mxu0 0.0
        %2721 = vmatpush1.msra.mxu0 %v2700
        %2722 = vmatprep.subr.mxu0 0.0
        %2723 = vmatpush1.msra.mxu0 %v2702
        %2724 = vmatprep.subr.mxu0 0.0
        %2725 = vmatpush1.msra.mxu0 %v2704
        %2726 = vmatprep.subr.mxu0 0.0
        %2727 = vmatpush1.msra.mxu0 0.0
        %2728 = vmatprep.subr.mxu0 0.0
        %2729 = vmatpush1.msra.mxu0 0.0
        %2730 = vmatprep.subr.mxu0 0.0
        %2731 = vmatpush1.msra.mxu0 0.0
        %2732 = vmatprep.subr.mxu0 0.0
        %2733 = vmatpush1.msra.mxu0 0.0
        %2734 = vmatprep.subr.mxu0 0.0
        %2735 = vmatpush1.msra.mxu0 0.0
        %2736 = vmatprep.subr.mxu0 0.0
        %2737 = vmatpush1.msra.mxu0 0.0
        %2738 = vmatprep.subr.mxu0 0.0
        %2739 = vmatpush1.msra.mxu0 0.0
        %2740 = vmatprep.subr.mxu0 0.0
        %2741 = vmatpush1.msra.mxu0 0.0
        %2742 = vmatprep.subr.mxu0 0.0
        %2743 = vmatpush1.msra.mxu0 0.0
        %2744 = vmatprep.subr.mxu0 0.0
        %2745 = vmatpush1.msra.mxu0 0.0
        %2746 = vmatprep.subr.mxu0 0.0
        %2747 = vmatpush1.msra.mxu0 0.0
        %2748 = vmatprep.subr.mxu0 0.0
        %2749 = vmatpush1.msra.mxu0 0.0
        %2750 = vmatprep.subr.mxu0 0.0
        %2751 = vmatpush1.msra.mxu0 0.0
        %2752 = vmatprep.subr.mxu0 0.0
        %2753 = vmatpush1.msra.mxu0 0.0
        %2754 = vmatprep.subr.mxu0 0.0
        %2755 = vmatpush1.msra.mxu0 0.0
        %2756 = vmatprep.subr.mxu0 0.0
        %2757 = vmatpush1.msra.mxu0 0.0
        %2758 = vmatprep.subr.mxu0 0.0
        %2759 = vmatpush1.msra.mxu0 0.0
        %2760 = vmatprep.subr.mxu0 0.0
        %2761 = vmatpush1.msra.mxu0 0.0
        %2762 = vmatprep.subr.mxu0 0.0
        %2763 = vmatpush1.msra.mxu0 0.0
        %2764 = vmatprep.subr.mxu0 0.0
        %2765 = vmatpush1.msra.mxu0 0.0
        %2766 = vmatprep.subr.mxu0 0.0
        %2767 = vmatpush1.msra.mxu0 0.0
        %2768 = vmatprep.subr.mxu0 0.0
        %2769 = vmatpush1.msra.mxu0 0.0
        %2770 = vmatprep.subr.mxu0 0.0
        %2771 = vmatpush1.msra.mxu0 0.0
        %2772 = vmatprep.subr.mxu0 0.0
        %2773 = vmatpush1.msra.mxu0 0.0
        %2774 = vmatprep.subr.mxu0 0.0
        %2775 = vmatpush1.msra.mxu0 0.0
        %2776 = vmatprep.subr.mxu0 0.0
        %2777 = vmatpush1.msra.mxu0 0.0
        %2778 = vmatprep.subr.mxu0 0.0
        %2779 = vmatpush1.msra.mxu0 0.0
        %2780 = vmatprep.subr.mxu0 0.0
        %2781 = vmatpush1.msra.mxu0 0.0
        %2782 = vmatprep.mubr.f32.mxu0 0.0
        %2783 = vmatmul.mubr.f32.gmra.mrb[0].mxu0 %v2713
        %v2784 = vpop.f32.mrb[0].mxu0
        %v2785 = vadd.f32 %v2710, %v2784
        %v2786 = vpop.f32.mrb[0].mxu0
        %2787 = vmatprep.mubr.f32.mxu0 0.0
        %2788 = vmatmul.mubr.f32.gmra.mrb[0].mxu0 %v2716
        %v2789 = vpop.f32.mrb[0].mxu0
        %v2790 = vadd.f32 %v2710, %v2789
        %v2791 = vpop.f32.mrb[0].mxu0
        %2792 = vdwg.mxu0
        %v2794 = vsel %vm639, %v2690, 0
        %v2797 = vsel %vm639, %v2785, 0
        %v2800 = vsel %vm639, %v2790, 0
        %2802 = vmatprep.subr.mxu0 0.0
        %2803 = vmatpush1.xpose.msra.mxu0 %v2797
        %2804 = vmatprep.subr.mxu0 0.0
        %2805 = vmatpush1.xpose.msra.mxu0 %v2800
        %2806 = vmatprep.subr.mxu0 0.0
        %2807 = vmatpush1.xpose.msra.mxu0 0.0
        %2808 = vmatprep.subr.mxu0 0.0
        %2809 = vmatpush1.xpose.msra.mxu0 0.0
        %2810 = vmatprep.subr.mxu0 0.0
        %2811 = vmatpush1.xpose.msra.mxu0 0.0
        %2812 = vmatprep.subr.mxu0 0.0
        %2813 = vmatpush1.xpose.msra.mxu0 0.0
        %2814 = vmatprep.subr.mxu0 0.0
        %2815 = vmatpush1.xpose.msra.mxu0 0.0
        %2816 = vmatprep.subr.mxu0 0.0
        %2817 = vmatpush1.xpose.msra.mxu0 0.0
        %2818 = vmatprep.subr.mxu0 0.0
        %2819 = vmatpush1.xpose.msra.mxu0 0.0
        %2820 = vmatprep.subr.mxu0 0.0
        %2821 = vmatpush1.xpose.msra.mxu0 0.0
        %2822 = vmatprep.subr.mxu0 0.0
        %2823 = vmatpush1.xpose.msra.mxu0 0.0
        %2824 = vmatprep.subr.mxu0 0.0
        %2825 = vmatpush1.xpose.msra.mxu0 0.0
        %2826 = vmatprep.subr.mxu0 0.0
        %2827 = vmatpush1.xpose.msra.mxu0 0.0
        %2828 = vmatprep.subr.mxu0 0.0
        %2829 = vmatpush1.xpose.msra.mxu0 0.0
        %2830 = vmatprep.subr.mxu0 0.0
        %2831 = vmatpush1.xpose.msra.mxu0 0.0
        %2832 = vmatprep.subr.mxu0 0.0
        %2833 = vmatpush1.xpose.msra.mxu0 0.0
        %2834 = vmatprep.subr.mxu0 0.0
        %2835 = vmatpush1.xpose.msra.mxu0 0.0
        %2836 = vmatprep.subr.mxu0 0.0
        %2837 = vmatpush1.xpose.msra.mxu0 0.0
        %2838 = vmatprep.subr.mxu0 0.0
        %2839 = vmatpush1.xpose.msra.mxu0 0.0
        %2840 = vmatprep.subr.mxu0 0.0
        %2841 = vmatpush1.xpose.msra.mxu0 0.0
        %2842 = vmatprep.subr.mxu0 0.0
        %2843 = vmatpush1.xpose.msra.mxu0 0.0
        %2844 = vmatprep.subr.mxu0 0.0
        %2845 = vmatpush1.xpose.msra.mxu0 0.0
        %2846 = vmatprep.subr.mxu0 0.0
        %2847 = vmatpush1.xpose.msra.mxu0 0.0
        %2848 = vmatprep.subr.mxu0 0.0
        %2849 = vmatpush1.xpose.msra.mxu0 0.0
        %2850 = vmatprep.subr.mxu0 0.0
        %2851 = vmatpush1.xpose.msra.mxu0 0.0
        %2852 = vmatprep.subr.mxu0 0.0
        %2853 = vmatpush1.xpose.msra.mxu0 0.0
        %2854 = vmatprep.subr.mxu0 0.0
        %2855 = vmatpush1.xpose.msra.mxu0 0.0
        %2856 = vmatprep.subr.mxu0 0.0
        %2857 = vmatpush1.xpose.msra.mxu0 0.0
        %2858 = vmatprep.subr.mxu0 0.0
        %2859 = vmatpush1.xpose.msra.mxu0 0.0
        %2860 = vmatprep.subr.mxu0 0.0
        %2861 = vmatpush1.xpose.msra.mxu0 0.0
        %2862 = vmatprep.subr.mxu0 0.0
        %2863 = vmatpush1.xpose.msra.mxu0 0.0
        %2864 = vmatprep.subr.mxu0 0.0
        %2865 = vmatpush1.xpose.msra.mxu0 0.0
        %2866 = vmatprep.mubr.f32.mxu0 0.0
        %2867 = vmatmul.mubr.f32.gmra.mrb[0].mxu0 %v2794
        %v2868 = vpop.f32.mrb[0].mxu0
        %v2869 = vadd.f32 0.0, %v2868
        %v2870 = vpop.f32.mrb[0].mxu0
        %2871 = vdwg.mxu0
        %v2872 = vmul.f32 %v2869, 0.5
        %v2873 = vadd.f32 %v2872, %v494
        %vm2874 = vcmask 97280
        %v2875 = vsel %vm2874, %v2873, -inf
        %2876 = vmax.xlane.f32.xlu0 %v2875
        %v2877 = vpop.xlane.xlu0 %2876
        %v2878 = vsub.f32 %v2873, %v2877
        %v2879 = vmul.f32 %v2878, 1.442695
        %v2880 = vpow.pop %v2879
        %v2881 = vsel %vm2874, %v2880, 0.0
        %2882 = vadd.xlane.f32.xlu0 %v2881
        %v2883 = vpop.xlane.xlu0 %2882
        %v2884 = vrcp.pop %v2883
        %v2885 = vmul.f32 %v2880, %v2884
        %2886 = vrot.lane.b32.xlu0 %v2785, 96
        %v2887 = vpop.permute.xlu0 %2886
        %2888 = vrot.lane.b32.xlu0 %v2790, 96
        %v2889 = vpop.permute.xlu0 %2888
        %v2892 = vsel %vm2874, %v2885, 0
        %v2894 = vsel %vm807, %v2889, 0
        %2896 = vmatprep.subr.mxu0 0.0
        %2897 = vmatpush1.msra.mxu0 %v2887
        %2898 = vmatprep.subr.mxu0 0.0
        %2899 = vmatpush1.msra.mxu0 %v2894
        %2900 = vmatprep.subr.mxu0 0.0
        %2901 = vmatpush1.msra.mxu0 0.0
        %2902 = vmatprep.subr.mxu0 0.0
        %2903 = vmatpush1.msra.mxu0 0.0
        %2904 = vmatprep.subr.mxu0 0.0
        %2905 = vmatpush1.msra.mxu0 0.0
        %2906 = vmatprep.subr.mxu0 0.0
        %2907 = vmatpush1.msra.mxu0 0.0
        %2908 = vmatprep.subr.mxu0 0.0
        %2909 = vmatpush1.msra.mxu0 0.0
        %2910 = vmatprep.subr.mxu0 0.0
        %2911 = vmatpush1.msra.mxu0 0.0
        %2912 = vmatprep.subr.mxu0 0.0
        %2913 = vmatpush1.msra.mxu0 0.0
        %2914 = vmatprep.subr.mxu0 0.0
        %2915 = vmatpush1.msra.mxu0 0.0
        %2916 = vmatprep.subr.mxu0 0.0
        %2917 = vmatpush1.msra.mxu0 0.0
        %2918 = vmatprep.subr.mxu0 0.0
        %2919 = vmatpush1.msra.mxu0 0.0
        %2920 = vmatprep.subr.mxu0 0.0
        %2921 = vmatpush1.msra.mxu0 0.0
        %2922 = vmatprep.subr.mxu0 0.0
        %2923 = vmatpush1.msra.mxu0 0.0
        %2924 = vmatprep.subr.mxu0 0.0
        %2925 = vmatpush1.msra.mxu0 0.0
        %2926 = vmatprep.subr.mxu0 0.0
        %2927 = vmatpush1.msra.mxu0 0.0
        %2928 = vmatprep.subr.mxu0 0.0
        %2929 = vmatpush1.msra.mxu0 0.0
        %2930 = vmatprep.subr.mxu0 0.0
        %2931 = vmatpush1.msra.mxu0 0.0
        %2932 = vmatprep.subr.mxu0 0.0
        %2933 = vmatpush1.msra.mxu0 0.0
        %2934 = vmatprep.subr.mxu0 0.0
        %2935 = vmatpush1.msra.mxu0 0.0
        %2936 = vmatprep.subr.mxu0 0.0
        %2937 = vmatpush1.msra.mxu0 0.0
        %2938 = vmatprep.subr.mxu0 0.0
        %2939 = vmatpush1.msra.mxu0 0.0
        %2940 = vmatprep.subr.mxu0 0.0
        %2941 = vmatpush1.msra.mxu0 0.0
        %2942 = vmatprep.subr.mxu0 0.0
        %2943 = vmatpush1.msra.mxu0 0.0
        %2944 = vmatprep.subr.mxu0 0.0
        %2945 = vmatpush1.msra.mxu0 0.0
        %2946 = vmatprep.subr.mxu0 0.0
        %2947 = vmatpush1.msra.mxu0 0.0
        %2948 = vmatprep.subr.mxu0 0.0
        %2949 = vmatpush1.msra.mxu0 0.0
        %2950 = vmatprep.subr.mxu0 0.0
        %2951 = vmatpush1.msra.mxu0 0.0
        %2952 = vmatprep.subr.mxu0 0.0
        %2953 = vmatpush1.msra.mxu0 0.0
        %2954 = vmatprep.subr.mxu0 0.0
        %2955 = vmatpush1.msra.mxu0 0.0
        %2956 = vmatprep.subr.mxu0 0.0
        %2957 = vmatpush1.msra.mxu0 0.0
        %2958 = vmatprep.subr.mxu0 0.0
        %2959 = vmatpush1.msra.mxu0 0.0
        %2960 = vmatprep.mubr.f32.mxu0 0.0
        %2961 = vmatmul.mubr.f32.gmra.mrb[0].mxu0 %v2892
        %v2962 = vpop.f32.mrb[0].mxu0
        %v2963 = vadd.f32 0.0, %v2962
        %v2964 = vpop.f32.mrb[0].mxu0
        %2965 = vdwg.mxu0
        %v2967 = vsel %vm639, %v2963, 0
        %2969 = vmatprep.subr.mxu0 0.0
        %2970 = vmatpush1.msra.mxu0 %v809
        %2971 = vmatprep.subr.mxu0 0.0
        %2972 = vmatpush1.msra.mxu0 0.0
        %2973 = vmatprep.subr.mxu0 0.0
        %2974 = vmatpush1.msra.mxu0 0.0
        %2975 = vmatprep.subr.mxu0 0.0
        %2976 = vmatpush1.msra.mxu0 0.0
        %2977 = vmatprep.subr.mxu0 0.0
        %2978 = vmatpush1.msra.mxu0 0.0
        %2979 = vmatprep.subr.mxu0 0.0
        %2980 = vmatpush1.msra.mxu0 0.0
        %2981 = vmatprep.subr.mxu0 0.0
        %2982 = vmatpush1.msra.mxu0 0.0
        %2983 = vmatprep.subr.mxu0 0.0
        %2984 = vmatpush1.msra.mxu0 0.0
        %2985 = vmatprep.subr.mxu0 0.0
        %2986 = vmatpush1.msra.mxu0 0.0
        %2987 = vmatprep.subr.mxu0 0.0
        %2988 = vmatpush1.msra.mxu0 0.0
        %2989 = vmatprep.subr.mxu0 0.0
        %2990 = vmatpush1.msra.mxu0 0.0
        %2991 = vmatprep.subr.mxu0 0.0
        %2992 = vmatpush1.msra.mxu0 0.0
        %2993 = vmatprep.subr.mxu0 0.0
        %2994 = vmatpush1.msra.mxu0 0.0
        %2995 = vmatprep.subr.mxu0 0.0
        %2996 = vmatpush1.msra.mxu0 0.0
        %2997 = vmatprep.subr.mxu0 0.0
        %2998 = vmatpush1.msra.mxu0 0.0
        %2999 = vmatprep.subr.mxu0 0.0
        %3000 = vmatpush1.msra.mxu0 0.0
        %3001 = vmatprep.subr.mxu0 0.0
        %3002 = vmatpush1.msra.mxu0 0.0
        %3003 = vmatprep.subr.mxu0 0.0
        %3004 = vmatpush1.msra.mxu0 0.0
        %3005 = vmatprep.subr.mxu0 0.0
        %3006 = vmatpush1.msra.mxu0 0.0
        %3007 = vmatprep.subr.mxu0 0.0
        %3008 = vmatpush1.msra.mxu0 0.0
        %3009 = vmatprep.subr.mxu0 0.0
        %3010 = vmatpush1.msra.mxu0 0.0
        %3011 = vmatprep.subr.mxu0 0.0
        %3012 = vmatpush1.msra.mxu0 0.0
        %3013 = vmatprep.subr.mxu0 0.0
        %3014 = vmatpush1.msra.mxu0 0.0
        %3015 = vmatprep.subr.mxu0 0.0
        %3016 = vmatpush1.msra.mxu0 0.0
        %3017 = vmatprep.subr.mxu0 0.0
        %3018 = vmatpush1.msra.mxu0 0.0
        %3019 = vmatprep.subr.mxu0 0.0
        %3020 = vmatpush1.msra.mxu0 0.0
        %3021 = vmatprep.subr.mxu0 0.0
        %3022 = vmatpush1.msra.mxu0 0.0
        %3023 = vmatprep.subr.mxu0 0.0
        %3024 = vmatpush1.msra.mxu0 0.0
        %3025 = vmatprep.subr.mxu0 0.0
        %3026 = vmatpush1.msra.mxu0 0.0
        %3027 = vmatprep.subr.mxu0 0.0
        %3028 = vmatpush1.msra.mxu0 0.0
        %3029 = vmatprep.subr.mxu0 0.0
        %3030 = vmatpush1.msra.mxu0 0.0
        %3031 = vmatprep.subr.mxu0 0.0
        %3032 = vmatpush1.msra.mxu0 0.0
        %3033 = vmatprep.mubr.f32.mxu0 0.0
        %3034 = vmatmul.mubr.f32.gmra.mrb[0].mxu0 %v2967
        %v3035 = vpop.f32.mrb[0].mxu0
        %v3036 = vadd.f32 0.0, %v3035
        %v3037 = vpop.f32.mrb[0].mxu0
        %3038 = vdwg.mxu0
        %v3039 = vadd.f32 %v885, %v3036
        %3040 = vrot.lane.b32.xlu0 %v2690, 124
        %v3041 = vpop.permute.xlu0 %3040
        %3042 = vrot.lane.b32.xlu0 %v2785, 124
        %v3043 = vpop.permute.xlu0 %3042
        %3044 = vrot.lane.b32.xlu0 %v2790, 124
        %v3045 = vpop.permute.xlu0 %3044
        %v3046 = vsel %vm639, %v3041, 0
        %v3048 = vsel %vm639, %v3043, 0
        %v3050 = vsel %vm639, %v3045, 0
        %3052 = vmatprep.subr.mxu0 0.0
        %3053 = vmatpush1.xpose.msra.mxu0 %v3048
        %3054 = vmatprep.subr.mxu0 0.0
        %3055 = vmatpush1.xpose.msra.mxu0 %v3050
        %3056 = vmatprep.subr.mxu0 0.0
        %3057 = vmatpush1.xpose.msra.mxu0 0.0
        %3058 = vmatprep.subr.mxu0 0.0
        %3059 = vmatpush1.xpose.msra.mxu0 0.0
        %3060 = vmatprep.subr.mxu0 0.0
        %3061 = vmatpush1.xpose.msra.mxu0 0.0
        %3062 = vmatprep.subr.mxu0 0.0
        %3063 = vmatpush1.xpose.msra.mxu0 0.0
        %3064 = vmatprep.subr.mxu0 0.0
        %3065 = vmatpush1.xpose.msra.mxu0 0.0
        %3066 = vmatprep.subr.mxu0 0.0
        %3067 = vmatpush1.xpose.msra.mxu0 0.0
        %3068 = vmatprep.subr.mxu0 0.0
        %3069 = vmatpush1.xpose.msra.mxu0 0.0
        %3070 = vmatprep.subr.mxu0 0.0
        %3071 = vmatpush1.xpose.msra.mxu0 0.0
        %3072 = vmatprep.subr.mxu0 0.0
        %3073 = vmatpush1.xpose.msra.mxu0 0.0
        %3074 = vmatprep.subr.mxu0 0.0
        %3075 = vmatpush1.xpose.msra.mxu0 0.0
        %3076 = vmatprep.subr.mxu0 0.0
        %3077 = vmatpush1.xpose.msra.mxu0 0.0
        %3078 = vmatprep.subr.mxu0 0.0
        %3079 = vmatpush1.xpose.msra.mxu0 0.0
        %3080 = vmatprep.subr.mxu0 0.0
        %3081 = vmatpush1.xpose.msra.mxu0 0.0
        %3082 = vmatprep.subr.mxu0 0.0
        %3083 = vmatpush1.xpose.msra.mxu0 0.0
        %3084 = vmatprep.subr.mxu0 0.0
        %3085 = vmatpush1.xpose.msra.mxu0 0.0
        %3086 = vmatprep.subr.mxu0 0.0
        %3087 = vmatpush1.xpose.msra.mxu0 0.0
        %3088 = vmatprep.subr.mxu0 0.0
        %3089 = vmatpush1.xpose.msra.mxu0 0.0
        %3090 = vmatprep.subr.mxu0 0.0
        %3091 = vmatpush1.xpose.msra.mxu0 0.0
        %3092 = vmatprep.subr.mxu0 0.0
        %3093 = vmatpush1.xpose.msra.mxu0 0.0
        %3094 = vmatprep.subr.mxu0 0.0
        %3095 = vmatpush1.xpose.msra.mxu0 0.0
        %3096 = vmatprep.subr.mxu0 0.0
        %3097 = vmatpush1.xpose.msra.mxu0 0.0
        %3098 = vmatprep.subr.mxu0 0.0
        %3099 = vmatpush1.xpose.msra.mxu0 0.0
        %3100 = vmatprep.subr.mxu0 0.0
        %3101 = vmatpush1.xpose.msra.mxu0 0.0
        %3102 = vmatprep.subr.mxu0 0.0
        %3103 = vmatpush1.xpose.msra.mxu0 0.0
        %3104 = vmatprep.subr.mxu0 0.0
        %3105 = vmatpush1.xpose.msra.mxu0 0.0
        %3106 = vmatprep.subr.mxu0 0.0
        %3107 = vmatpush1.xpose.msra.mxu0 0.0
        %3108 = vmatprep.subr.mxu0 0.0
        %3109 = vmatpush1.xpose.msra.mxu0 0.0
        %3110 = vmatprep.subr.mxu0 0.0
        %3111 = vmatpush1.xpose.msra.mxu0 0.0
        %3112 = vmatprep.subr.mxu0 0.0
        %3113 = vmatpush1.xpose.msra.mxu0 0.0
        %3114 = vmatprep.subr.mxu0 0.0
        %3115 = vmatpush1.xpose.msra.mxu0 0.0
        %3116 = vmatprep.mubr.f32.mxu0 0.0
        %3117 = vmatmul.mubr.f32.gmra.mrb[0].mxu0 %v3046
        %v3118 = vpop.f32.mrb[0].mxu0
        %v3119 = vadd.f32 0.0, %v3118
        %v3120 = vpop.f32.mrb[0].mxu0
        %3121 = vdwg.mxu0
        %v3122 = vmul.f32 %v3119, 0.5
        %v3123 = vadd.f32 %v3122, %v494
        %v3124 = vsel %vm2874, %v3123, -inf
        %3125 = vmax.xlane.f32.xlu0 %v3124
        %v3126 = vpop.xlane.xlu0 %3125
        %v3127 = vsub.f32 %v3123, %v3126
        %v3128 = vmul.f32 %v3127, 1.442695
        %v3129 = vpow.pop %v3128
        %v3130 = vsel %vm2874, %v3129, 0.0
        %3131 = vadd.xlane.f32.xlu0 %v3130
        %v3132 = vpop.xlane.xlu0 %3131
        %v3133 = vrcp.pop %v3132
        %v3134 = vmul.f32 %v3129, %v3133
        %3135 = vrot.lane.b32.xlu0 %v2785, 92
        %v3136 = vpop.permute.xlu0 %3135
        %3137 = vrot.lane.b32.xlu0 %v2790, 92
        %v3138 = vpop.permute.xlu0 %3137
        %v3141 = vsel %vm2874, %v3134, 0
        %v3143 = vsel %vm807, %v3138, 0
        %3145 = vmatprep.subr.mxu0 0.0
        %3146 = vmatpush1.msra.mxu0 %v3136
        %3147 = vmatprep.subr.mxu0 0.0
        %3148 = vmatpush1.msra.mxu0 %v3143
        %3149 = vmatprep.subr.mxu0 0.0
        %3150 = vmatpush1.msra.mxu0 0.0
        %3151 = vmatprep.subr.mxu0 0.0
        %3152 = vmatpush1.msra.mxu0 0.0
        %3153 = vmatprep.subr.mxu0 0.0
        %3154 = vmatpush1.msra.mxu0 0.0
        %3155 = vmatprep.subr.mxu0 0.0
        %3156 = vmatpush1.msra.mxu0 0.0
        %3157 = vmatprep.subr.mxu0 0.0
        %3158 = vmatpush1.msra.mxu0 0.0
        %3159 = vmatprep.subr.mxu0 0.0
        %3160 = vmatpush1.msra.mxu0 0.0
        %3161 = vmatprep.subr.mxu0 0.0
        %3162 = vmatpush1.msra.mxu0 0.0
        %3163 = vmatprep.subr.mxu0 0.0
        %3164 = vmatpush1.msra.mxu0 0.0
        %3165 = vmatprep.subr.mxu0 0.0
        %3166 = vmatpush1.msra.mxu0 0.0
        %3167 = vmatprep.subr.mxu0 0.0
        %3168 = vmatpush1.msra.mxu0 0.0
        %3169 = vmatprep.subr.mxu0 0.0
        %3170 = vmatpush1.msra.mxu0 0.0
        %3171 = vmatprep.subr.mxu0 0.0
        %3172 = vmatpush1.msra.mxu0 0.0
        %3173 = vmatprep.subr.mxu0 0.0
        %3174 = vmatpush1.msra.mxu0 0.0
        %3175 = vmatprep.subr.mxu0 0.0
        %3176 = vmatpush1.msra.mxu0 0.0
        %3177 = vmatprep.subr.mxu0 0.0
        %3178 = vmatpush1.msra.mxu0 0.0
        %3179 = vmatprep.subr.mxu0 0.0
        %3180 = vmatpush1.msra.mxu0 0.0
        %3181 = vmatprep.subr.mxu0 0.0
        %3182 = vmatpush1.msra.mxu0 0.0
        %3183 = vmatprep.subr.mxu0 0.0
        %3184 = vmatpush1.msra.mxu0 0.0
        %3185 = vmatprep.subr.mxu0 0.0
        %3186 = vmatpush1.msra.mxu0 0.0
        %3187 = vmatprep.subr.mxu0 0.0
        %3188 = vmatpush1.msra.mxu0 0.0
        %3189 = vmatprep.subr.mxu0 0.0
        %3190 = vmatpush1.msra.mxu0 0.0
        %3191 = vmatprep.subr.mxu0 0.0
        %3192 = vmatpush1.msra.mxu0 0.0
        %3193 = vmatprep.subr.mxu0 0.0
        %3194 = vmatpush1.msra.mxu0 0.0
        %3195 = vmatprep.subr.mxu0 0.0
        %3196 = vmatpush1.msra.mxu0 0.0
        %3197 = vmatprep.subr.mxu0 0.0
        %3198 = vmatpush1.msra.mxu0 0.0
        %3199 = vmatprep.subr.mxu0 0.0
        %3200 = vmatpush1.msra.mxu0 0.0
        %3201 = vmatprep.subr.mxu0 0.0
        %3202 = vmatpush1.msra.mxu0 0.0
        %3203 = vmatprep.subr.mxu0 0.0
        %3204 = vmatpush1.msra.mxu0 0.0
        %3205 = vmatprep.subr.mxu0 0.0
        %3206 = vmatpush1.msra.mxu0 0.0
        %3207 = vmatprep.subr.mxu0 0.0
        %3208 = vmatpush1.msra.mxu0 0.0
        %3209 = vmatprep.mubr.f32.mxu0 0.0
        %3210 = vmatmul.mubr.f32.gmra.mrb[0].mxu0 %v3141
        %v3211 = vpop.f32.mrb[0].mxu0
        %v3212 = vadd.f32 0.0, %v3211
        %v3213 = vpop.f32.mrb[0].mxu0
        %3214 = vdwg.mxu0
        %v3216 = vsel %vm639, %v3212, 0
        %3218 = vmatprep.subr.mxu0 0.0
        %3219 = vmatpush1.msra.mxu0 %v1059
        %3220 = vmatprep.subr.mxu0 0.0
        %3221 = vmatpush1.msra.mxu0 0.0
        %3222 = vmatprep.subr.mxu0 0.0
        %3223 = vmatpush1.msra.mxu0 0.0
        %3224 = vmatprep.subr.mxu0 0.0
        %3225 = vmatpush1.msra.mxu0 0.0
        %3226 = vmatprep.subr.mxu0 0.0
        %3227 = vmatpush1.msra.mxu0 0.0
        %3228 = vmatprep.subr.mxu0 0.0
        %3229 = vmatpush1.msra.mxu0 0.0
        %3230 = vmatprep.subr.mxu0 0.0
        %3231 = vmatpush1.msra.mxu0 0.0
        %3232 = vmatprep.subr.mxu0 0.0
        %3233 = vmatpush1.msra.mxu0 0.0
        %3234 = vmatprep.subr.mxu0 0.0
        %3235 = vmatpush1.msra.mxu0 0.0
        %3236 = vmatprep.subr.mxu0 0.0
        %3237 = vmatpush1.msra.mxu0 0.0
        %3238 = vmatprep.subr.mxu0 0.0
        %3239 = vmatpush1.msra.mxu0 0.0
        %3240 = vmatprep.subr.mxu0 0.0
        %3241 = vmatpush1.msra.mxu0 0.0
        %3242 = vmatprep.subr.mxu0 0.0
        %3243 = vmatpush1.msra.mxu0 0.0
        %3244 = vmatprep.subr.mxu0 0.0
        %3245 = vmatpush1.msra.mxu0 0.0
        %3246 = vmatprep.subr.mxu0 0.0
        %3247 = vmatpush1.msra.mxu0 0.0
        %3248 = vmatprep.subr.mxu0 0.0
        %3249 = vmatpush1.msra.mxu0 0.0
        %3250 = vmatprep.subr.mxu0 0.0
        %3251 = vmatpush1.msra.mxu0 0.0
        %3252 = vmatprep.subr.mxu0 0.0
        %3253 = vmatpush1.msra.mxu0 0.0
        %3254 = vmatprep.subr.mxu0 0.0
        %3255 = vmatpush1.msra.mxu0 0.0
        %3256 = vmatprep.subr.mxu0 0.0
        %3257 = vmatpush1.msra.mxu0 0.0
        %3258 = vmatprep.subr.mxu0 0.0
        %3259 = vmatpush1.msra.mxu0 0.0
        %3260 = vmatprep.subr.mxu0 0.0
        %3261 = vmatpush1.msra.mxu0 0.0
        %3262 = vmatprep.subr.mxu0 0.0
        %3263 = vmatpush1.msra.mxu0 0.0
        %3264 = vmatprep.subr.mxu0 0.0
        %3265 = vmatpush1.msra.mxu0 0.0
        %3266 = vmatprep.subr.mxu0 0.0
        %3267 = vmatpush1.msra.mxu0 0.0
        %3268 = vmatprep.subr.mxu0 0.0
        %3269 = vmatpush1.msra.mxu0 0.0
        %3270 = vmatprep.subr.mxu0 0.0
        %3271 = vmatpush1.msra.mxu0 0.0
        %3272 = vmatprep.subr.mxu0 0.0
        %3273 = vmatpush1.msra.mxu0 0.0
        %3274 = vmatprep.subr.mxu0 0.0
        %3275 = vmatpush1.msra.mxu0 0.0
        %3276 = vmatprep.subr.mxu0 0.0
        %3277 = vmatpush1.msra.mxu0 0.0
        %3278 = vmatprep.subr.mxu0 0.0
        %3279 = vmatpush1.msra.mxu0 0.0
        %3280 = vmatprep.subr.mxu0 0.0
        %3281 = vmatpush1.msra.mxu0 0.0
        %3282 = vmatprep.mubr.f32.mxu0 0.0
        %3283 = vmatmul.mubr.f32.gmra.mrb[0].mxu0 %v3216
        %v3284 = vpop.f32.mrb[0].mxu0
        %v3285 = vadd.f32 0.0, %v3284
        %v3286 = vpop.f32.mrb[0].mxu0
        %3287 = vdwg.mxu0
        %v3288 = vadd.f32 %v3039, %v3285
        %3289 = vrot.lane.b32.xlu0 %v2690, 120
        %v3290 = vpop.permute.xlu0 %3289
        %3291 = vrot.lane.b32.xlu0 %v2785, 120
        %v3292 = vpop.permute.xlu0 %3291
        %3293 = vrot.lane.b32.xlu0 %v2790, 120
        %v3294 = vpop.permute.xlu0 %3293
        %v3295 = vsel %vm639, %v3290, 0
        %v3297 = vsel %vm639, %v3292, 0
        %v3299 = vsel %vm639, %v3294, 0
        %3301 = vmatprep.subr.mxu0 0.0
        %3302 = vmatpush1.xpose.msra.mxu0 %v3297
        %3303 = vmatprep.subr.mxu0 0.0
        %3304 = vmatpush1.xpose.msra.mxu0 %v3299
        %3305 = vmatprep.subr.mxu0 0.0
        %3306 = vmatpush1.xpose.msra.mxu0 0.0
        %3307 = vmatprep.subr.mxu0 0.0
        %3308 = vmatpush1.xpose.msra.mxu0 0.0
        %3309 = vmatprep.subr.mxu0 0.0
        %3310 = vmatpush1.xpose.msra.mxu0 0.0
        %3311 = vmatprep.subr.mxu0 0.0
        %3312 = vmatpush1.xpose.msra.mxu0 0.0
        %3313 = vmatprep.subr.mxu0 0.0
        %3314 = vmatpush1.xpose.msra.mxu0 0.0
        %3315 = vmatprep.subr.mxu0 0.0
        %3316 = vmatpush1.xpose.msra.mxu0 0.0
        %3317 = vmatprep.subr.mxu0 0.0
        %3318 = vmatpush1.xpose.msra.mxu0 0.0
        %3319 = vmatprep.subr.mxu0 0.0
        %3320 = vmatpush1.xpose.msra.mxu0 0.0
        %3321 = vmatprep.subr.mxu0 0.0
        %3322 = vmatpush1.xpose.msra.mxu0 0.0
        %3323 = vmatprep.subr.mxu0 0.0
        %3324 = vmatpush1.xpose.msra.mxu0 0.0
        %3325 = vmatprep.subr.mxu0 0.0
        %3326 = vmatpush1.xpose.msra.mxu0 0.0
        %3327 = vmatprep.subr.mxu0 0.0
        %3328 = vmatpush1.xpose.msra.mxu0 0.0
        %3329 = vmatprep.subr.mxu0 0.0
        %3330 = vmatpush1.xpose.msra.mxu0 0.0
        %3331 = vmatprep.subr.mxu0 0.0
        %3332 = vmatpush1.xpose.msra.mxu0 0.0
        %3333 = vmatprep.subr.mxu0 0.0
        %3334 = vmatpush1.xpose.msra.mxu0 0.0
        %3335 = vmatprep.subr.mxu0 0.0
        %3336 = vmatpush1.xpose.msra.mxu0 0.0
        %3337 = vmatprep.subr.mxu0 0.0
        %3338 = vmatpush1.xpose.msra.mxu0 0.0
        %3339 = vmatprep.subr.mxu0 0.0
        %3340 = vmatpush1.xpose.msra.mxu0 0.0
        %3341 = vmatprep.subr.mxu0 0.0
        %3342 = vmatpush1.xpose.msra.mxu0 0.0
        %3343 = vmatprep.subr.mxu0 0.0
        %3344 = vmatpush1.xpose.msra.mxu0 0.0
        %3345 = vmatprep.subr.mxu0 0.0
        %3346 = vmatpush1.xpose.msra.mxu0 0.0
        %3347 = vmatprep.subr.mxu0 0.0
        %3348 = vmatpush1.xpose.msra.mxu0 0.0
        %3349 = vmatprep.subr.mxu0 0.0
        %3350 = vmatpush1.xpose.msra.mxu0 0.0
        %3351 = vmatprep.subr.mxu0 0.0
        %3352 = vmatpush1.xpose.msra.mxu0 0.0
        %3353 = vmatprep.subr.mxu0 0.0
        %3354 = vmatpush1.xpose.msra.mxu0 0.0
        %3355 = vmatprep.subr.mxu0 0.0
        %3356 = vmatpush1.xpose.msra.mxu0 0.0
        %3357 = vmatprep.subr.mxu0 0.0
        %3358 = vmatpush1.xpose.msra.mxu0 0.0
        %3359 = vmatprep.subr.mxu0 0.0
        %3360 = vmatpush1.xpose.msra.mxu0 0.0
        %3361 = vmatprep.subr.mxu0 0.0
        %3362 = vmatpush1.xpose.msra.mxu0 0.0
        %3363 = vmatprep.subr.mxu0 0.0
        %3364 = vmatpush1.xpose.msra.mxu0 0.0
        %3365 = vmatprep.mubr.f32.mxu0 0.0
        %3366 = vmatmul.mubr.f32.gmra.mrb[0].mxu0 %v3295
        %v3367 = vpop.f32.mrb[0].mxu0
        %v3368 = vadd.f32 0.0, %v3367
        %v3369 = vpop.f32.mrb[0].mxu0
        %3370 = vdwg.mxu0
        %v3371 = vmul.f32 %v3368, 0.5
        %v3372 = vadd.f32 %v3371, %v494
        %v3373 = vsel %vm2874, %v3372, -inf
        %3374 = vmax.xlane.f32.xlu0 %v3373
        %v3375 = vpop.xlane.xlu0 %3374
        %v3376 = vsub.f32 %v3372, %v3375
        %v3377 = vmul.f32 %v3376, 1.442695
        %v3378 = vpow.pop %v3377
        %v3379 = vsel %vm2874, %v3378, 0.0
        %3380 = vadd.xlane.f32.xlu0 %v3379
        %v3381 = vpop.xlane.xlu0 %3380
        %v3382 = vrcp.pop %v3381
        %v3383 = vmul.f32 %v3378, %v3382
        %3384 = vrot.lane.b32.xlu0 %v2785, 88
        %v3385 = vpop.permute.xlu0 %3384
        %3386 = vrot.lane.b32.xlu0 %v2790, 88
        %v3387 = vpop.permute.xlu0 %3386
        %v3390 = vsel %vm2874, %v3383, 0
        %v3392 = vsel %vm807, %v3387, 0
        %3394 = vmatprep.subr.mxu0 0.0
        %3395 = vmatpush1.msra.mxu0 %v3385
        %3396 = vmatprep.subr.mxu0 0.0
        %3397 = vmatpush1.msra.mxu0 %v3392
        %3398 = vmatprep.subr.mxu0 0.0
        %3399 = vmatpush1.msra.mxu0 0.0
        %3400 = vmatprep.subr.mxu0 0.0
        %3401 = vmatpush1.msra.mxu0 0.0
        %3402 = vmatprep.subr.mxu0 0.0
        %3403 = vmatpush1.msra.mxu0 0.0
        %3404 = vmatprep.subr.mxu0 0.0
        %3405 = vmatpush1.msra.mxu0 0.0
        %3406 = vmatprep.subr.mxu0 0.0
        %3407 = vmatpush1.msra.mxu0 0.0
        %3408 = vmatprep.subr.mxu0 0.0
        %3409 = vmatpush1.msra.mxu0 0.0
        %3410 = vmatprep.subr.mxu0 0.0
        %3411 = vmatpush1.msra.mxu0 0.0
        %3412 = vmatprep.subr.mxu0 0.0
        %3413 = vmatpush1.msra.mxu0 0.0
        %3414 = vmatprep.subr.mxu0 0.0
        %3415 = vmatpush1.msra.mxu0 0.0
        %3416 = vmatprep.subr.mxu0 0.0
        %3417 = vmatpush1.msra.mxu0 0.0
        %3418 = vmatprep.subr.mxu0 0.0
        %3419 = vmatpush1.msra.mxu0 0.0
        %3420 = vmatprep.subr.mxu0 0.0
        %3421 = vmatpush1.msra.mxu0 0.0
        %3422 = vmatprep.subr.mxu0 0.0
        %3423 = vmatpush1.msra.mxu0 0.0
        %3424 = vmatprep.subr.mxu0 0.0
        %3425 = vmatpush1.msra.mxu0 0.0
        %3426 = vmatprep.subr.mxu0 0.0
        %3427 = vmatpush1.msra.mxu0 0.0
        %3428 = vmatprep.subr.mxu0 0.0
        %3429 = vmatpush1.msra.mxu0 0.0
        %3430 = vmatprep.subr.mxu0 0.0
        %3431 = vmatpush1.msra.mxu0 0.0
        %3432 = vmatprep.subr.mxu0 0.0
        %3433 = vmatpush1.msra.mxu0 0.0
        %3434 = vmatprep.subr.mxu0 0.0
        %3435 = vmatpush1.msra.mxu0 0.0
        %3436 = vmatprep.subr.mxu0 0.0
        %3437 = vmatpush1.msra.mxu0 0.0
        %3438 = vmatprep.subr.mxu0 0.0
        %3439 = vmatpush1.msra.mxu0 0.0
        %3440 = vmatprep.subr.mxu0 0.0
        %3441 = vmatpush1.msra.mxu0 0.0
        %3442 = vmatprep.subr.mxu0 0.0
        %3443 = vmatpush1.msra.mxu0 0.0
        %3444 = vmatprep.subr.mxu0 0.0
        %3445 = vmatpush1.msra.mxu0 0.0
        %3446 = vmatprep.subr.mxu0 0.0
        %3447 = vmatpush1.msra.mxu0 0.0
        %3448 = vmatprep.subr.mxu0 0.0
        %3449 = vmatpush1.msra.mxu0 0.0
        %3450 = vmatprep.subr.mxu0 0.0
        %3451 = vmatpush1.msra.mxu0 0.0
        %3452 = vmatprep.subr.mxu0 0.0
        %3453 = vmatpush1.msra.mxu0 0.0
        %3454 = vmatprep.subr.mxu0 0.0
        %3455 = vmatpush1.msra.mxu0 0.0
        %3456 = vmatprep.subr.mxu0 0.0
        %3457 = vmatpush1.msra.mxu0 0.0
        %3458 = vmatprep.mubr.f32.mxu0 0.0
        %3459 = vmatmul.mubr.f32.gmra.mrb[0].mxu0 %v3390
        %v3460 = vpop.f32.mrb[0].mxu0
        %v3461 = vadd.f32 0.0, %v3460
        %v3462 = vpop.f32.mrb[0].mxu0
        %3463 = vdwg.mxu0
        %v3465 = vsel %vm639, %v3461, 0
        %3467 = vmatprep.subr.mxu0 0.0
        %3468 = vmatpush1.msra.mxu0 %v1303
        %3469 = vmatprep.subr.mxu0 0.0
        %3470 = vmatpush1.msra.mxu0 0.0
        %3471 = vmatprep.subr.mxu0 0.0
        %3472 = vmatpush1.msra.mxu0 0.0
        %3473 = vmatprep.subr.mxu0 0.0
        %3474 = vmatpush1.msra.mxu0 0.0
        %3475 = vmatprep.subr.mxu0 0.0
        %3476 = vmatpush1.msra.mxu0 0.0
        %3477 = vmatprep.subr.mxu0 0.0
        %3478 = vmatpush1.msra.mxu0 0.0
        %3479 = vmatprep.subr.mxu0 0.0
        %3480 = vmatpush1.msra.mxu0 0.0
        %3481 = vmatprep.subr.mxu0 0.0
        %3482 = vmatpush1.msra.mxu0 0.0
        %3483 = vmatprep.subr.mxu0 0.0
        %3484 = vmatpush1.msra.mxu0 0.0
        %3485 = vmatprep.subr.mxu0 0.0
        %3486 = vmatpush1.msra.mxu0 0.0
        %3487 = vmatprep.subr.mxu0 0.0
        %3488 = vmatpush1.msra.mxu0 0.0
        %3489 = vmatprep.subr.mxu0 0.0
        %3490 = vmatpush1.msra.mxu0 0.0
        %3491 = vmatprep.subr.mxu0 0.0
        %3492 = vmatpush1.msra.mxu0 0.0
        %3493 = vmatprep.subr.mxu0 0.0
        %3494 = vmatpush1.msra.mxu0 0.0
        %3495 = vmatprep.subr.mxu0 0.0
        %3496 = vmatpush1.msra.mxu0 0.0
        %3497 = vmatprep.subr.mxu0 0.0
        %3498 = vmatpush1.msra.mxu0 0.0
        %3499 = vmatprep.subr.mxu0 0.0
        %3500 = vmatpush1.msra.mxu0 0.0
        %3501 = vmatprep.subr.mxu0 0.0
        %3502 = vmatpush1.msra.mxu0 0.0
        %3503 = vmatprep.subr.mxu0 0.0
        %3504 = vmatpush1.msra.mxu0 0.0
        %3505 = vmatprep.subr.mxu0 0.0
        %3506 = vmatpush1.msra.mxu0 0.0
        %3507 = vmatprep.subr.mxu0 0.0
        %3508 = vmatpush1.msra.mxu0 0.0
        %3509 = vmatprep.subr.mxu0 0.0
        %3510 = vmatpush1.msra.mxu0 0.0
        %3511 = vmatprep.subr.mxu0 0.0
        %3512 = vmatpush1.msra.mxu0 0.0
        %3513 = vmatprep.subr.mxu0 0.0
        %3514 = vmatpush1.msra.mxu0 0.0
        %3515 = vmatprep.subr.mxu0 0.0
        %3516 = vmatpush1.msra.mxu0 0.0
        %3517 = vmatprep.subr.mxu0 0.0
        %3518 = vmatpush1.msra.mxu0 0.0
        %3519 = vmatprep.subr.mxu0 0.0
        %3520 = vmatpush1.msra.mxu0 0.0
        %3521 = vmatprep.subr.mxu0 0.0
        %3522 = vmatpush1.msra.mxu0 0.0
        %3523 = vmatprep.subr.mxu0 0.0
        %3524 = vmatpush1.msra.mxu0 0.0
        %3525 = vmatprep.subr.mxu0 0.0
        %3526 = vmatpush1.msra.mxu0 0.0
        %3527 = vmatprep.subr.mxu0 0.0
        %3528 = vmatpush1.msra.mxu0 0.0
        %3529 = vmatprep.subr.mxu0 0.0
        %3530 = vmatpush1.msra.mxu0 0.0
        %3531 = vmatprep.mubr.f32.mxu0 0.0
        %3532 = vmatmul.mubr.f32.gmra.mrb[0].mxu0 %v3465
        %v3533 = vpop.f32.mrb[0].mxu0
        %v3534 = vadd.f32 0.0, %v3533
        %v3535 = vpop.f32.mrb[0].mxu0
        %3536 = vdwg.mxu0
        %v3537 = vadd.f32 %v3288, %v3534
        %3538 = vrot.lane.b32.xlu0 %v2690, 116
        %v3539 = vpop.permute.xlu0 %3538
        %3540 = vrot.lane.b32.xlu0 %v2785, 116
        %v3541 = vpop.permute.xlu0 %3540
        %3542 = vrot.lane.b32.xlu0 %v2790, 116
        %v3543 = vpop.permute.xlu0 %3542
        %v3544 = vsel %vm639, %v3539, 0
        %v3546 = vsel %vm639, %v3541, 0
        %v3548 = vsel %vm639, %v3543, 0
        %3550 = vmatprep.subr.mxu0 0.0
        %3551 = vmatpush1.xpose.msra.mxu0 %v3546
        %3552 = vmatprep.subr.mxu0 0.0
        %3553 = vmatpush1.xpose.msra.mxu0 %v3548
        %3554 = vmatprep.subr.mxu0 0.0
        %3555 = vmatpush1.xpose.msra.mxu0 0.0
        %3556 = vmatprep.subr.mxu0 0.0
        %3557 = vmatpush1.xpose.msra.mxu0 0.0
        %3558 = vmatprep.subr.mxu0 0.0
        %3559 = vmatpush1.xpose.msra.mxu0 0.0
        %3560 = vmatprep.subr.mxu0 0.0
        %3561 = vmatpush1.xpose.msra.mxu0 0.0
        %3562 = vmatprep.subr.mxu0 0.0
        %3563 = vmatpush1.xpose.msra.mxu0 0.0
        %3564 = vmatprep.subr.mxu0 0.0
        %3565 = vmatpush1.xpose.msra.mxu0 0.0
        %3566 = vmatprep.subr.mxu0 0.0
        %3567 = vmatpush1.xpose.msra.mxu0 0.0
        %3568 = vmatprep.subr.mxu0 0.0
        %3569 = vmatpush1.xpose.msra.mxu0 0.0
        %3570 = vmatprep.subr.mxu0 0.0
        %3571 = vmatpush1.xpose.msra.mxu0 0.0
        %3572 = vmatprep.subr.mxu0 0.0
        %3573 = vmatpush1.xpose.msra.mxu0 0.0
        %3574 = vmatprep.subr.mxu0 0.0
        %3575 = vmatpush1.xpose.msra.mxu0 0.0
        %3576 = vmatprep.subr.mxu0 0.0
        %3577 = vmatpush1.xpose.msra.mxu0 0.0
        %3578 = vmatprep.subr.mxu0 0.0
        %3579 = vmatpush1.xpose.msra.mxu0 0.0
        %3580 = vmatprep.subr.mxu0 0.0
        %3581 = vmatpush1.xpose.msra.mxu0 0.0
        %3582 = vmatprep.subr.mxu0 0.0
        %3583 = vmatpush1.xpose.msra.mxu0 0.0
        %3584 = vmatprep.subr.mxu0 0.0
        %3585 = vmatpush1.xpose.msra.mxu0 0.0
        %3586 = vmatprep.subr.mxu0 0.0
        %3587 = vmatpush1.xpose.msra.mxu0 0.0
        %3588 = vmatprep.subr.mxu0 0.0
        %3589 = vmatpush1.xpose.msra.mxu0 0.0
        %3590 = vmatprep.subr.mxu0 0.0
        %3591 = vmatpush1.xpose.msra.mxu0 0.0
        %3592 = vmatprep.subr.mxu0 0.0
        %3593 = vmatpush1.xpose.msra.mxu0 0.0
        %3594 = vmatprep.subr.mxu0 0.0
        %3595 = vmatpush1.xpose.msra.mxu0 0.0
        %3596 = vmatprep.subr.mxu0 0.0
        %3597 = vmatpush1.xpose.msra.mxu0 0.0
        %3598 = vmatprep.subr.mxu0 0.0
        %3599 = vmatpush1.xpose.msra.mxu0 0.0
        %3600 = vmatprep.subr.mxu0 0.0
        %3601 = vmatpush1.xpose.msra.mxu0 0.0
        %3602 = vmatprep.subr.mxu0 0.0
        %3603 = vmatpush1.xpose.msra.mxu0 0.0
        %3604 = vmatprep.subr.mxu0 0.0
        %3605 = vmatpush1.xpose.msra.mxu0 0.0
        %3606 = vmatprep.subr.mxu0 0.0
        %3607 = vmatpush1.xpose.msra.mxu0 0.0
        %3608 = vmatprep.subr.mxu0 0.0
        %3609 = vmatpush1.xpose.msra.mxu0 0.0
        %3610 = vmatprep.subr.mxu0 0.0
        %3611 = vmatpush1.xpose.msra.mxu0 0.0
        %3612 = vmatprep.subr.mxu0 0.0
        %3613 = vmatpush1.xpose.msra.mxu0 0.0
        %3614 = vmatprep.mubr.f32.mxu0 0.0
        %3615 = vmatmul.mubr.f32.gmra.mrb[0].mxu0 %v3544
        %v3616 = vpop.f32.mrb[0].mxu0
        %v3617 = vadd.f32 0.0, %v3616
        %v3618 = vpop.f32.mrb[0].mxu0
        %3619 = vdwg.mxu0
        %v3620 = vmul.f32 %v3617, 0.5
        %v3621 = vadd.f32 %v3620, %v494
        %v3622 = vsel %vm2874, %v3621, -inf
        %3623 = vmax.xlane.f32.xlu0 %v3622
        %v3624 = vpop.xlane.xlu0 %3623
        %v3625 = vsub.f32 %v3621, %v3624
        %v3626 = vmul.f32 %v3625, 1.442695
        %v3627 = vpow.pop %v3626
        %v3628 = vsel %vm2874, %v3627, 0.0
        %3629 = vadd.xlane.f32.xlu0 %v3628
        %v3630 = vpop.xlane.xlu0 %3629
        %v3631 = vrcp.pop %v3630
        %v3632 = vmul.f32 %v3627, %v3631
        %3633 = vrot.lane.b32.xlu0 %v2785, 84
        %v3634 = vpop.permute.xlu0 %3633
        %3635 = vrot.lane.b32.xlu0 %v2790, 84
        %v3636 = vpop.permute.xlu0 %3635
        %v3639 = vsel %vm2874, %v3632, 0
        %v3641 = vsel %vm807, %v3636, 0
        %3643 = vmatprep.subr.mxu0 0.0
        %3644 = vmatpush1.msra.mxu0 %v3634
        %3645 = vmatprep.subr.mxu0 0.0
        %3646 = vmatpush1.msra.mxu0 %v3641
        %3647 = vmatprep.subr.mxu0 0.0
        %3648 = vmatpush1.msra.mxu0 0.0
        %3649 = vmatprep.subr.mxu0 0.0
        %3650 = vmatpush1.msra.mxu0 0.0
        %3651 = vmatprep.subr.mxu0 0.0
        %3652 = vmatpush1.msra.mxu0 0.0
        %3653 = vmatprep.subr.mxu0 0.0
        %3654 = vmatpush1.msra.mxu0 0.0
        %3655 = vmatprep.subr.mxu0 0.0
        %3656 = vmatpush1.msra.mxu0 0.0
        %3657 = vmatprep.subr.mxu0 0.0
        %3658 = vmatpush1.msra.mxu0 0.0
        %3659 = vmatprep.subr.mxu0 0.0
        %3660 = vmatpush1.msra.mxu0 0.0
        %3661 = vmatprep.subr.mxu0 0.0
        %3662 = vmatpush1.msra.mxu0 0.0
        %3663 = vmatprep.subr.mxu0 0.0
        %3664 = vmatpush1.msra.mxu0 0.0
        %3665 = vmatprep.subr.mxu0 0.0
        %3666 = vmatpush1.msra.mxu0 0.0
        %3667 = vmatprep.subr.mxu0 0.0
        %3668 = vmatpush1.msra.mxu0 0.0
        %3669 = vmatprep.subr.mxu0 0.0
        %3670 = vmatpush1.msra.mxu0 0.0
        %3671 = vmatprep.subr.mxu0 0.0
        %3672 = vmatpush1.msra.mxu0 0.0
        %3673 = vmatprep.subr.mxu0 0.0
        %3674 = vmatpush1.msra.mxu0 0.0
        %3675 = vmatprep.subr.mxu0 0.0
        %3676 = vmatpush1.msra.mxu0 0.0
        %3677 = vmatprep.subr.mxu0 0.0
        %3678 = vmatpush1.msra.mxu0 0.0
        %3679 = vmatprep.subr.mxu0 0.0
        %3680 = vmatpush1.msra.mxu0 0.0
        %3681 = vmatprep.subr.mxu0 0.0
        %3682 = vmatpush1.msra.mxu0 0.0
        %3683 = vmatprep.subr.mxu0 0.0
        %3684 = vmatpush1.msra.mxu0 0.0
        %3685 = vmatprep.subr.mxu0 0.0
        %3686 = vmatpush1.msra.mxu0 0.0
        %3687 = vmatprep.subr.mxu0 0.0
        %3688 = vmatpush1.msra.mxu0 0.0
        %3689 = vmatprep.subr.mxu0 0.0
        %3690 = vmatpush1.msra.mxu0 0.0
        %3691 = vmatprep.subr.mxu0 0.0
        %3692 = vmatpush1.msra.mxu0 0.0
        %3693 = vmatprep.subr.mxu0 0.0
        %3694 = vmatpush1.msra.mxu0 0.0
        %3695 = vmatprep.subr.mxu0 0.0
        %3696 = vmatpush1.msra.mxu0 0.0
        %3697 = vmatprep.subr.mxu0 0.0
        %3698 = vmatpush1.msra.mxu0 0.0
        %3699 = vmatprep.subr.mxu0 0.0
        %3700 = vmatpush1.msra.mxu0 0.0
        %3701 = vmatprep.subr.mxu0 0.0
        %3702 = vmatpush1.msra.mxu0 0.0
        %3703 = vmatprep.subr.mxu0 0.0
        %3704 = vmatpush1.msra.mxu0 0.0
        %3705 = vmatprep.subr.mxu0 0.0
        %3706 = vmatpush1.msra.mxu0 0.0
        %3707 = vmatprep.mubr.f32.mxu0 0.0
        %3708 = vmatmul.mubr.f32.gmra.mrb[0].mxu0 %v3639
        %v3709 = vpop.f32.mrb[0].mxu0
        %v3710 = vadd.f32 0.0, %v3709
        %v3711 = vpop.f32.mrb[0].mxu0
        %3712 = vdwg.mxu0
        %v3714 = vsel %vm639, %v3710, 0
        %3716 = vmatprep.subr.mxu0 0.0
        %3717 = vmatpush1.msra.mxu0 %v1547
        %3718 = vmatprep.subr.mxu0 0.0
        %3719 = vmatpush1.msra.mxu0 0.0
        %3720 = vmatprep.subr.mxu0 0.0
        %3721 = vmatpush1.msra.mxu0 0.0
        %3722 = vmatprep.subr.mxu0 0.0
        %3723 = vmatpush1.msra.mxu0 0.0
        %3724 = vmatprep.subr.mxu0 0.0
        %3725 = vmatpush1.msra.mxu0 0.0
        %3726 = vmatprep.subr.mxu0 0.0
        %3727 = vmatpush1.msra.mxu0 0.0
        %3728 = vmatprep.subr.mxu0 0.0
        %3729 = vmatpush1.msra.mxu0 0.0
        %3730 = vmatprep.subr.mxu0 0.0
        %3731 = vmatpush1.msra.mxu0 0.0
        %3732 = vmatprep.subr.mxu0 0.0
        %3733 = vmatpush1.msra.mxu0 0.0
        %3734 = vmatprep.subr.mxu0 0.0
        %3735 = vmatpush1.msra.mxu0 0.0
        %3736 = vmatprep.subr.mxu0 0.0
        %3737 = vmatpush1.msra.mxu0 0.0
        %3738 = vmatprep.subr.mxu0 0.0
        %3739 = vmatpush1.msra.mxu0 0.0
        %3740 = vmatprep.subr.mxu0 0.0
        %3741 = vmatpush1.msra.mxu0 0.0
        %3742 = vmatprep.subr.mxu0 0.0
        %3743 = vmatpush1.msra.mxu0 0.0
        %3744 = vmatprep.subr.mxu0 0.0
        %3745 = vmatpush1.msra.mxu0 0.0
        %3746 = vmatprep.subr.mxu0 0.0
        %3747 = vmatpush1.msra.mxu0 0.0
        %3748 = vmatprep.subr.mxu0 0.0
        %3749 = vmatpush1.msra.mxu0 0.0
        %3750 = vmatprep.subr.mxu0 0.0
        %3751 = vmatpush1.msra.mxu0 0.0
        %3752 = vmatprep.subr.mxu0 0.0
        %3753 = vmatpush1.msra.mxu0 0.0
        %3754 = vmatprep.subr.mxu0 0.0
        %3755 = vmatpush1.msra.mxu0 0.0
        %3756 = vmatprep.subr.mxu0 0.0
        %3757 = vmatpush1.msra.mxu0 0.0
        %3758 = vmatprep.subr.mxu0 0.0
        %3759 = vmatpush1.msra.mxu0 0.0
        %3760 = vmatprep.subr.mxu0 0.0
        %3761 = vmatpush1.msra.mxu0 0.0
        %3762 = vmatprep.subr.mxu0 0.0
        %3763 = vmatpush1.msra.mxu0 0.0
        %3764 = vmatprep.subr.mxu0 0.0
        %3765 = vmatpush1.msra.mxu0 0.0
        %3766 = vmatprep.subr.mxu0 0.0
        %3767 = vmatpush1.msra.mxu0 0.0
        %3768 = vmatprep.subr.mxu0 0.0
        %3769 = vmatpush1.msra.mxu0 0.0
        %3770 = vmatprep.subr.mxu0 0.0
        %3771 = vmatpush1.msra.mxu0 0.0
        %3772 = vmatprep.subr.mxu0 0.0
        %3773 = vmatpush1.msra.mxu0 0.0
        %3774 = vmatprep.subr.mxu0 0.0
        %3775 = vmatpush1.msra.mxu0 0.0
        %3776 = vmatprep.subr.mxu0 0.0
        %3777 = vmatpush1.msra.mxu0 0.0
        %3778 = vmatprep.subr.mxu0 0.0
        %3779 = vmatpush1.msra.mxu0 0.0
        %3780 = vmatprep.mubr.f32.mxu0 0.0
        %3781 = vmatmul.mubr.f32.gmra.mrb[0].mxu0 %v3714
        %v3782 = vpop.f32.mrb[0].mxu0
        %v3783 = vadd.f32 0.0, %v3782
        %v3784 = vpop.f32.mrb[0].mxu0
        %3785 = vdwg.mxu0
        %v3786 = vadd.f32 %v3537, %v3783
        %3787 = vrot.lane.b32.xlu0 %v2690, 112
        %v3788 = vpop.permute.xlu0 %3787
        %3789 = vrot.lane.b32.xlu0 %v2785, 112
        %v3790 = vpop.permute.xlu0 %3789
        %3791 = vrot.lane.b32.xlu0 %v2790, 112
        %v3792 = vpop.permute.xlu0 %3791
        %v3793 = vsel %vm639, %v3788, 0
        %v3795 = vsel %vm639, %v3790, 0
        %v3797 = vsel %vm639, %v3792, 0
        %3799 = vmatprep.subr.mxu0 0.0
        %3800 = vmatpush1.xpose.msra.mxu0 %v3795
        %3801 = vmatprep.subr.mxu0 0.0
        %3802 = vmatpush1.xpose.msra.mxu0 %v3797
        %3803 = vmatprep.subr.mxu0 0.0
        %3804 = vmatpush1.xpose.msra.mxu0 0.0
        %3805 = vmatprep.subr.mxu0 0.0
        %3806 = vmatpush1.xpose.msra.mxu0 0.0
        %3807 = vmatprep.subr.mxu0 0.0
        %3808 = vmatpush1.xpose.msra.mxu0 0.0
        %3809 = vmatprep.subr.mxu0 0.0
        %3810 = vmatpush1.xpose.msra.mxu0 0.0
        %3811 = vmatprep.subr.mxu0 0.0
        %3812 = vmatpush1.xpose.msra.mxu0 0.0
        %3813 = vmatprep.subr.mxu0 0.0
        %3814 = vmatpush1.xpose.msra.mxu0 0.0
        %3815 = vmatprep.subr.mxu0 0.0
        %3816 = vmatpush1.xpose.msra.mxu0 0.0
        %3817 = vmatprep.subr.mxu0 0.0
        %3818 = vmatpush1.xpose.msra.mxu0 0.0
        %3819 = vmatprep.subr.mxu0 0.0
        %3820 = vmatpush1.xpose.msra.mxu0 0.0
        %3821 = vmatprep.subr.mxu0 0.0
        %3822 = vmatpush1.xpose.msra.mxu0 0.0
        %3823 = vmatprep.subr.mxu0 0.0
        %3824 = vmatpush1.xpose.msra.mxu0 0.0
        %3825 = vmatprep.subr.mxu0 0.0
        %3826 = vmatpush1.xpose.msra.mxu0 0.0
        %3827 = vmatprep.subr.mxu0 0.0
        %3828 = vmatpush1.xpose.msra.mxu0 0.0
        %3829 = vmatprep.subr.mxu0 0.0
        %3830 = vmatpush1.xpose.msra.mxu0 0.0
        %3831 = vmatprep.subr.mxu0 0.0
        %3832 = vmatpush1.xpose.msra.mxu0 0.0
        %3833 = vmatprep.subr.mxu0 0.0
        %3834 = vmatpush1.xpose.msra.mxu0 0.0
        %3835 = vmatprep.subr.mxu0 0.0
        %3836 = vmatpush1.xpose.msra.mxu0 0.0
        %3837 = vmatprep.subr.mxu0 0.0
        %3838 = vmatpush1.xpose.msra.mxu0 0.0
        %3839 = vmatprep.subr.mxu0 0.0
        %3840 = vmatpush1.xpose.msra.mxu0 0.0
        %3841 = vmatprep.subr.mxu0 0.0
        %3842 = vmatpush1.xpose.msra.mxu0 0.0
        %3843 = vmatprep.subr.mxu0 0.0
        %3844 = vmatpush1.xpose.msra.mxu0 0.0
        %3845 = vmatprep.subr.mxu0 0.0
        %3846 = vmatpush1.xpose.msra.mxu0 0.0
        %3847 = vmatprep.subr.mxu0 0.0
        %3848 = vmatpush1.xpose.msra.mxu0 0.0
        %3849 = vmatprep.subr.mxu0 0.0
        %3850 = vmatpush1.xpose.msra.mxu0 0.0
        %3851 = vmatprep.subr.mxu0 0.0
        %3852 = vmatpush1.xpose.msra.mxu0 0.0
        %3853 = vmatprep.subr.mxu0 0.0
        %3854 = vmatpush1.xpose.msra.mxu0 0.0
        %3855 = vmatprep.subr.mxu0 0.0
        %3856 = vmatpush1.xpose.msra.mxu0 0.0
        %3857 = vmatprep.subr.mxu0 0.0
        %3858 = vmatpush1.xpose.msra.mxu0 0.0
        %3859 = vmatprep.subr.mxu0 0.0
        %3860 = vmatpush1.xpose.msra.mxu0 0.0
        %3861 = vmatprep.subr.mxu0 0.0
        %3862 = vmatpush1.xpose.msra.mxu0 0.0
        %3863 = vmatprep.mubr.f32.mxu0 0.0
        %3864 = vmatmul.mubr.f32.gmra.mrb[0].mxu0 %v3793
        %v3865 = vpop.f32.mrb[0].mxu0
        %v3866 = vadd.f32 0.0, %v3865
        %v3867 = vpop.f32.mrb[0].mxu0
        %3868 = vdwg.mxu0
        %v3869 = vmul.f32 %v3866, 0.5
        %v3870 = vadd.f32 %v3869, %v494
        %v3871 = vsel %vm2874, %v3870, -inf
        %3872 = vmax.xlane.f32.xlu0 %v3871
        %v3873 = vpop.xlane.xlu0 %3872
        %v3874 = vsub.f32 %v3870, %v3873
        %v3875 = vmul.f32 %v3874, 1.442695
        %v3876 = vpow.pop %v3875
        %v3877 = vsel %vm2874, %v3876, 0.0
        %3878 = vadd.xlane.f32.xlu0 %v3877
        %v3879 = vpop.xlane.xlu0 %3878
        %v3880 = vrcp.pop %v3879
        %v3881 = vmul.f32 %v3876, %v3880
        %3882 = vrot.lane.b32.xlu0 %v2785, 80
        %v3883 = vpop.permute.xlu0 %3882
        %3884 = vrot.lane.b32.xlu0 %v2790, 80
        %v3885 = vpop.permute.xlu0 %3884
        %v3888 = vsel %vm2874, %v3881, 0
        %v3890 = vsel %vm807, %v3885, 0
        %3892 = vmatprep.subr.mxu0 0.0
        %3893 = vmatpush1.msra.mxu0 %v3883
        %3894 = vmatprep.subr.mxu0 0.0
        %3895 = vmatpush1.msra.mxu0 %v3890
        %3896 = vmatprep.subr.mxu0 0.0
        %3897 = vmatpush1.msra.mxu0 0.0
        %3898 = vmatprep.subr.mxu0 0.0
        %3899 = vmatpush1.msra.mxu0 0.0
        %3900 = vmatprep.subr.mxu0 0.0
        %3901 = vmatpush1.msra.mxu0 0.0
        %3902 = vmatprep.subr.mxu0 0.0
        %3903 = vmatpush1.msra.mxu0 0.0
        %3904 = vmatprep.subr.mxu0 0.0
        %3905 = vmatpush1.msra.mxu0 0.0
        %3906 = vmatprep.subr.mxu0 0.0
        %3907 = vmatpush1.msra.mxu0 0.0
        %3908 = vmatprep.subr.mxu0 0.0
        %3909 = vmatpush1.msra.mxu0 0.0
        %3910 = vmatprep.subr.mxu0 0.0
        %3911 = vmatpush1.msra.mxu0 0.0
        %3912 = vmatprep.subr.mxu0 0.0
        %3913 = vmatpush1.msra.mxu0 0.0
        %3914 = vmatprep.subr.mxu0 0.0
        %3915 = vmatpush1.msra.mxu0 0.0
        %3916 = vmatprep.subr.mxu0 0.0
        %3917 = vmatpush1.msra.mxu0 0.0
        %3918 = vmatprep.subr.mxu0 0.0
        %3919 = vmatpush1.msra.mxu0 0.0
        %3920 = vmatprep.subr.mxu0 0.0
        %3921 = vmatpush1.msra.mxu0 0.0
        %3922 = vmatprep.subr.mxu0 0.0
        %3923 = vmatpush1.msra.mxu0 0.0
        %3924 = vmatprep.subr.mxu0 0.0
        %3925 = vmatpush1.msra.mxu0 0.0
        %3926 = vmatprep.subr.mxu0 0.0
        %3927 = vmatpush1.msra.mxu0 0.0
        %3928 = vmatprep.subr.mxu0 0.0
        %3929 = vmatpush1.msra.mxu0 0.0
        %3930 = vmatprep.subr.mxu0 0.0
        %3931 = vmatpush1.msra.mxu0 0.0
        %3932 = vmatprep.subr.mxu0 0.0
        %3933 = vmatpush1.msra.mxu0 0.0
        %3934 = vmatprep.subr.mxu0 0.0
        %3935 = vmatpush1.msra.mxu0 0.0
        %3936 = vmatprep.subr.mxu0 0.0
        %3937 = vmatpush1.msra.mxu0 0.0
        %3938 = vmatprep.subr.mxu0 0.0
        %3939 = vmatpush1.msra.mxu0 0.0
        %3940 = vmatprep.subr.mxu0 0.0
        %3941 = vmatpush1.msra.mxu0 0.0
        %3942 = vmatprep.subr.mxu0 0.0
        %3943 = vmatpush1.msra.mxu0 0.0
        %3944 = vmatprep.subr.mxu0 0.0
        %3945 = vmatpush1.msra.mxu0 0.0
        %3946 = vmatprep.subr.mxu0 0.0
        %3947 = vmatpush1.msra.mxu0 0.0
        %3948 = vmatprep.subr.mxu0 0.0
        %3949 = vmatpush1.msra.mxu0 0.0
        %3950 = vmatprep.subr.mxu0 0.0
        %3951 = vmatpush1.msra.mxu0 0.0
        %3952 = vmatprep.subr.mxu0 0.0
        %3953 = vmatpush1.msra.mxu0 0.0
        %3954 = vmatprep.subr.mxu0 0.0
        %3955 = vmatpush1.msra.mxu0 0.0
        %3956 = vmatprep.mubr.f32.mxu0 0.0
        %3957 = vmatmul.mubr.f32.gmra.mrb[0].mxu0 %v3888
        %v3958 = vpop.f32.mrb[0].mxu0
        %v3959 = vadd.f32 0.0, %v3958
        %v3960 = vpop.f32.mrb[0].mxu0
        %3961 = vdwg.mxu0
        %v3963 = vsel %vm639, %v3959, 0
        %3965 = vmatprep.subr.mxu0 0.0
        %3966 = vmatpush1.msra.mxu0 %v1791
        %3967 = vmatprep.subr.mxu0 0.0
        %3968 = vmatpush1.msra.mxu0 0.0
        %3969 = vmatprep.subr.mxu0 0.0
        %3970 = vmatpush1.msra.mxu0 0.0
        %3971 = vmatprep.subr.mxu0 0.0
        %3972 = vmatpush1.msra.mxu0 0.0
        %3973 = vmatprep.subr.mxu0 0.0
        %3974 = vmatpush1.msra.mxu0 0.0
        %3975 = vmatprep.subr.mxu0 0.0
        %3976 = vmatpush1.msra.mxu0 0.0
        %3977 = vmatprep.subr.mxu0 0.0
        %3978 = vmatpush1.msra.mxu0 0.0
        %3979 = vmatprep.subr.mxu0 0.0
        %3980 = vmatpush1.msra.mxu0 0.0
        %3981 = vmatprep.subr.mxu0 0.0
        %3982 = vmatpush1.msra.mxu0 0.0
        %3983 = vmatprep.subr.mxu0 0.0
        %3984 = vmatpush1.msra.mxu0 0.0
        %3985 = vmatprep.subr.mxu0 0.0
        %3986 = vmatpush1.msra.mxu0 0.0
        %3987 = vmatprep.subr.mxu0 0.0
        %3988 = vmatpush1.msra.mxu0 0.0
        %3989 = vmatprep.subr.mxu0 0.0
        %3990 = vmatpush1.msra.mxu0 0.0
        %3991 = vmatprep.subr.mxu0 0.0
        %3992 = vmatpush1.msra.mxu0 0.0
        %3993 = vmatprep.subr.mxu0 0.0
        %3994 = vmatpush1.msra.mxu0 0.0
        %3995 = vmatprep.subr.mxu0 0.0
        %3996 = vmatpush1.msra.mxu0 0.0
        %3997 = vmatprep.subr.mxu0 0.0
        %3998 = vmatpush1.msra.mxu0 0.0
        %3999 = vmatprep.subr.mxu0 0.0
        %4000 = vmatpush1.msra.mxu0 0.0
        %4001 = vmatprep.subr.mxu0 0.0
        %4002 = vmatpush1.msra.mxu0 0.0
        %4003 = vmatprep.subr.mxu0 0.0
        %4004 = vmatpush1.msra.mxu0 0.0
        %4005 = vmatprep.subr.mxu0 0.0
        %4006 = vmatpush1.msra.mxu0 0.0
        %4007 = vmatprep.subr.mxu0 0.0
        %4008 = vmatpush1.msra.mxu0 0.0
        %4009 = vmatprep.subr.mxu0 0.0
        %4010 = vmatpush1.msra.mxu0 0.0
        %4011 = vmatprep.subr.mxu0 0.0
        %4012 = vmatpush1.msra.mxu0 0.0
        %4013 = vmatprep.subr.mxu0 0.0
        %4014 = vmatpush1.msra.mxu0 0.0
        %4015 = vmatprep.subr.mxu0 0.0
        %4016 = vmatpush1.msra.mxu0 0.0
        %4017 = vmatprep.subr.mxu0 0.0
        %4018 = vmatpush1.msra.mxu0 0.0
        %4019 = vmatprep.subr.mxu0 0.0
        %4020 = vmatpush1.msra.mxu0 0.0
        %4021 = vmatprep.subr.mxu0 0.0
        %4022 = vmatpush1.msra.mxu0 0.0
        %4023 = vmatprep.subr.mxu0 0.0
        %4024 = vmatpush1.msra.mxu0 0.0
        %4025 = vmatprep.subr.mxu0 0.0
        %4026 = vmatpush1.msra.mxu0 0.0
        %4027 = vmatprep.subr.mxu0 0.0
        %4028 = vmatpush1.msra.mxu0 0.0
        %4029 = vmatprep.mubr.f32.mxu0 0.0
        %4030 = vmatmul.mubr.f32.gmra.mrb[0].mxu0 %v3963
        %v4031 = vpop.f32.mrb[0].mxu0
        %v4032 = vadd.f32 0.0, %v4031
        %v4033 = vpop.f32.mrb[0].mxu0
        %4034 = vdwg.mxu0
        %v4035 = vadd.f32 %v3786, %v4032
        %4036 = vrot.lane.b32.xlu0 %v2690, 108
        %v4037 = vpop.permute.xlu0 %4036
        %4038 = vrot.lane.b32.xlu0 %v2785, 108
        %v4039 = vpop.permute.xlu0 %4038
        %4040 = vrot.lane.b32.xlu0 %v2790, 108
        %v4041 = vpop.permute.xlu0 %4040
        %v4042 = vsel %vm639, %v4037, 0
        %v4044 = vsel %vm639, %v4039, 0
        %v4046 = vsel %vm639, %v4041, 0
        %4048 = vmatprep.subr.mxu0 0.0
        %4049 = vmatpush1.xpose.msra.mxu0 %v4044
        %4050 = vmatprep.subr.mxu0 0.0
        %4051 = vmatpush1.xpose.msra.mxu0 %v4046
        %4052 = vmatprep.subr.mxu0 0.0
        %4053 = vmatpush1.xpose.msra.mxu0 0.0
        %4054 = vmatprep.subr.mxu0 0.0
        %4055 = vmatpush1.xpose.msra.mxu0 0.0
        %4056 = vmatprep.subr.mxu0 0.0
        %4057 = vmatpush1.xpose.msra.mxu0 0.0
        %4058 = vmatprep.subr.mxu0 0.0
        %4059 = vmatpush1.xpose.msra.mxu0 0.0
        %4060 = vmatprep.subr.mxu0 0.0
        %4061 = vmatpush1.xpose.msra.mxu0 0.0
        %4062 = vmatprep.subr.mxu0 0.0
        %4063 = vmatpush1.xpose.msra.mxu0 0.0
        %4064 = vmatprep.subr.mxu0 0.0
        %4065 = vmatpush1.xpose.msra.mxu0 0.0
        %4066 = vmatprep.subr.mxu0 0.0
        %4067 = vmatpush1.xpose.msra.mxu0 0.0
        %4068 = vmatprep.subr.mxu0 0.0
        %4069 = vmatpush1.xpose.msra.mxu0 0.0
        %4070 = vmatprep.subr.mxu0 0.0
        %4071 = vmatpush1.xpose.msra.mxu0 0.0
        %4072 = vmatprep.subr.mxu0 0.0
        %4073 = vmatpush1.xpose.msra.mxu0 0.0
        %4074 = vmatprep.subr.mxu0 0.0
        %4075 = vmatpush1.xpose.msra.mxu0 0.0
        %4076 = vmatprep.subr.mxu0 0.0
        %4077 = vmatpush1.xpose.msra.mxu0 0.0
        %4078 = vmatprep.subr.mxu0 0.0
        %4079 = vmatpush1.xpose.msra.mxu0 0.0
        %4080 = vmatprep.subr.mxu0 0.0
        %4081 = vmatpush1.xpose.msra.mxu0 0.0
        %4082 = vmatprep.subr.mxu0 0.0
        %4083 = vmatpush1.xpose.msra.mxu0 0.0
        %4084 = vmatprep.subr.mxu0 0.0
        %4085 = vmatpush1.xpose.msra.mxu0 0.0
        %4086 = vmatprep.subr.mxu0 0.0
        %4087 = vmatpush1.xpose.msra.mxu0 0.0
        %4088 = vmatprep.subr.mxu0 0.0
        %4089 = vmatpush1.xpose.msra.mxu0 0.0
        %4090 = vmatprep.subr.mxu0 0.0
        %4091 = vmatpush1.xpose.msra.mxu0 0.0
        %4092 = vmatprep.subr.mxu0 0.0
        %4093 = vmatpush1.xpose.msra.mxu0 0.0
        %4094 = vmatprep.subr.mxu0 0.0
        %4095 = vmatpush1.xpose.msra.mxu0 0.0
        %4096 = vmatprep.subr.mxu0 0.0
        %4097 = vmatpush1.xpose.msra.mxu0 0.0
        %4098 = vmatprep.subr.mxu0 0.0
        %4099 = vmatpush1.xpose.msra.mxu0 0.0
        %4100 = vmatprep.subr.mxu0 0.0
        %4101 = vmatpush1.xpose.msra.mxu0 0.0
        %4102 = vmatprep.subr.mxu0 0.0
        %4103 = vmatpush1.xpose.msra.mxu0 0.0
        %4104 = vmatprep.subr.mxu0 0.0
        %4105 = vmatpush1.xpose.msra.mxu0 0.0
        %4106 = vmatprep.subr.mxu0 0.0
        %4107 = vmatpush1.xpose.msra.mxu0 0.0
        %4108 = vmatprep.subr.mxu0 0.0
        %4109 = vmatpush1.xpose.msra.mxu0 0.0
        %4110 = vmatprep.subr.mxu0 0.0
        %4111 = vmatpush1.xpose.msra.mxu0 0.0
        %4112 = vmatprep.mubr.f32.mxu0 0.0
        %4113 = vmatmul.mubr.f32.gmra.mrb[0].mxu0 %v4042
        %v4114 = vpop.f32.mrb[0].mxu0
        %v4115 = vadd.f32 0.0, %v4114
        %v4116 = vpop.f32.mrb[0].mxu0
        %4117 = vdwg.mxu0
        %v4118 = vmul.f32 %v4115, 0.5
        %v4119 = vadd.f32 %v4118, %v494
        %v4120 = vsel %vm2874, %v4119, -inf
        %4121 = vmax.xlane.f32.xlu0 %v4120
        %v4122 = vpop.xlane.xlu0 %4121
        %v4123 = vsub.f32 %v4119, %v4122
        %v4124 = vmul.f32 %v4123, 1.442695
        %v4125 = vpow.pop %v4124
        %v4126 = vsel %vm2874, %v4125, 0.0
        %4127 = vadd.xlane.f32.xlu0 %v4126
        %v4128 = vpop.xlane.xlu0 %4127
        %v4129 = vrcp.pop %v4128
        %v4130 = vmul.f32 %v4125, %v4129
        %4131 = vrot.lane.b32.xlu0 %v2785, 76
        %v4132 = vpop.permute.xlu0 %4131
        %4133 = vrot.lane.b32.xlu0 %v2790, 76
        %v4134 = vpop.permute.xlu0 %4133
        %v4137 = vsel %vm2874, %v4130, 0
        %v4139 = vsel %vm807, %v4134, 0
        %4141 = vmatprep.subr.mxu0 0.0
        %4142 = vmatpush1.msra.mxu0 %v4132
        %4143 = vmatprep.subr.mxu0 0.0
        %4144 = vmatpush1.msra.mxu0 %v4139
        %4145 = vmatprep.subr.mxu0 0.0
        %4146 = vmatpush1.msra.mxu0 0.0
        %4147 = vmatprep.subr.mxu0 0.0
        %4148 = vmatpush1.msra.mxu0 0.0
        %4149 = vmatprep.subr.mxu0 0.0
        %4150 = vmatpush1.msra.mxu0 0.0
        %4151 = vmatprep.subr.mxu0 0.0
        %4152 = vmatpush1.msra.mxu0 0.0
        %4153 = vmatprep.subr.mxu0 0.0
        %4154 = vmatpush1.msra.mxu0 0.0
        %4155 = vmatprep.subr.mxu0 0.0
        %4156 = vmatpush1.msra.mxu0 0.0
        %4157 = vmatprep.subr.mxu0 0.0
        %4158 = vmatpush1.msra.mxu0 0.0
        %4159 = vmatprep.subr.mxu0 0.0
        %4160 = vmatpush1.msra.mxu0 0.0
        %4161 = vmatprep.subr.mxu0 0.0
        %4162 = vmatpush1.msra.mxu0 0.0
        %4163 = vmatprep.subr.mxu0 0.0
        %4164 = vmatpush1.msra.mxu0 0.0
        %4165 = vmatprep.subr.mxu0 0.0
        %4166 = vmatpush1.msra.mxu0 0.0
        %4167 = vmatprep.subr.mxu0 0.0
        %4168 = vmatpush1.msra.mxu0 0.0
        %4169 = vmatprep.subr.mxu0 0.0
        %4170 = vmatpush1.msra.mxu0 0.0
        %4171 = vmatprep.subr.mxu0 0.0
        %4172 = vmatpush1.msra.mxu0 0.0
        %4173 = vmatprep.subr.mxu0 0.0
        %4174 = vmatpush1.msra.mxu0 0.0
        %4175 = vmatprep.subr.mxu0 0.0
        %4176 = vmatpush1.msra.mxu0 0.0
        %4177 = vmatprep.subr.mxu0 0.0
        %4178 = vmatpush1.msra.mxu0 0.0
        %4179 = vmatprep.subr.mxu0 0.0
        %4180 = vmatpush1.msra.mxu0 0.0
        %4181 = vmatprep.subr.mxu0 0.0
        %4182 = vmatpush1.msra.mxu0 0.0
        %4183 = vmatprep.subr.mxu0 0.0
        %4184 = vmatpush1.msra.mxu0 0.0
        %4185 = vmatprep.subr.mxu0 0.0
        %4186 = vmatpush1.msra.mxu0 0.0
        %4187 = vmatprep.subr.mxu0 0.0
        %4188 = vmatpush1.msra.mxu0 0.0
        %4189 = vmatprep.subr.mxu0 0.0
        %4190 = vmatpush1.msra.mxu0 0.0
        %4191 = vmatprep.subr.mxu0 0.0
        %4192 = vmatpush1.msra.mxu0 0.0
        %4193 = vmatprep.subr.mxu0 0.0
        %4194 = vmatpush1.msra.mxu0 0.0
        %4195 = vmatprep.subr.mxu0 0.0
        %4196 = vmatpush1.msra.mxu0 0.0
        %4197 = vmatprep.subr.mxu0 0.0
        %4198 = vmatpush1.msra.mxu0 0.0
        %4199 = vmatprep.subr.mxu0 0.0
        %4200 = vmatpush1.msra.mxu0 0.0
        %4201 = vmatprep.subr.mxu0 0.0
        %4202 = vmatpush1.msra.mxu0 0.0
        %4203 = vmatprep.subr.mxu0 0.0
        %4204 = vmatpush1.msra.mxu0 0.0
        %4205 = vmatprep.mubr.f32.mxu0 0.0
        %4206 = vmatmul.mubr.f32.gmra.mrb[0].mxu0 %v4137
        %v4207 = vpop.f32.mrb[0].mxu0
        %v4208 = vadd.f32 0.0, %v4207
        %v4209 = vpop.f32.mrb[0].mxu0
        %4210 = vdwg.mxu0
        %v4212 = vsel %vm639, %v4208, 0
        %4214 = vmatprep.subr.mxu0 0.0
        %4215 = vmatpush1.msra.mxu0 %v2035
        %4216 = vmatprep.subr.mxu0 0.0
        %4217 = vmatpush1.msra.mxu0 0.0
        %4218 = vmatprep.subr.mxu0 0.0
        %4219 = vmatpush1.msra.mxu0 0.0
        %4220 = vmatprep.subr.mxu0 0.0
        %4221 = vmatpush1.msra.mxu0 0.0
        %4222 = vmatprep.subr.mxu0 0.0
        %4223 = vmatpush1.msra.mxu0 0.0
        %4224 = vmatprep.subr.mxu0 0.0
        %4225 = vmatpush1.msra.mxu0 0.0
        %4226 = vmatprep.subr.mxu0 0.0
        %4227 = vmatpush1.msra.mxu0 0.0
        %4228 = vmatprep.subr.mxu0 0.0
        %4229 = vmatpush1.msra.mxu0 0.0
        %4230 = vmatprep.subr.mxu0 0.0
        %4231 = vmatpush1.msra.mxu0 0.0
        %4232 = vmatprep.subr.mxu0 0.0
        %4233 = vmatpush1.msra.mxu0 0.0
        %4234 = vmatprep.subr.mxu0 0.0
        %4235 = vmatpush1.msra.mxu0 0.0
        %4236 = vmatprep.subr.mxu0 0.0
        %4237 = vmatpush1.msra.mxu0 0.0
        %4238 = vmatprep.subr.mxu0 0.0
        %4239 = vmatpush1.msra.mxu0 0.0
        %4240 = vmatprep.subr.mxu0 0.0
        %4241 = vmatpush1.msra.mxu0 0.0
        %4242 = vmatprep.subr.mxu0 0.0
        %4243 = vmatpush1.msra.mxu0 0.0
        %4244 = vmatprep.subr.mxu0 0.0
        %4245 = vmatpush1.msra.mxu0 0.0
        %4246 = vmatprep.subr.mxu0 0.0
        %4247 = vmatpush1.msra.mxu0 0.0
        %4248 = vmatprep.subr.mxu0 0.0
        %4249 = vmatpush1.msra.mxu0 0.0
        %4250 = vmatprep.subr.mxu0 0.0
        %4251 = vmatpush1.msra.mxu0 0.0
        %4252 = vmatprep.subr.mxu0 0.0
        %4253 = vmatpush1.msra.mxu0 0.0
        %4254 = vmatprep.subr.mxu0 0.0
        %4255 = vmatpush1.msra.mxu0 0.0
        %4256 = vmatprep.subr.mxu0 0.0
        %4257 = vmatpush1.msra.mxu0 0.0
        %4258 = vmatprep.subr.mxu0 0.0
        %4259 = vmatpush1.msra.mxu0 0.0
        %4260 = vmatprep.subr.mxu0 0.0
        %4261 = vmatpush1.msra.mxu0 0.0
        %4262 = vmatprep.subr.mxu0 0.0
        %4263 = vmatpush1.msra.mxu0 0.0
        %4264 = vmatprep.subr.mxu0 0.0
        %4265 = vmatpush1.msra.mxu0 0.0
        %4266 = vmatprep.subr.mxu0 0.0
        %4267 = vmatpush1.msra.mxu0 0.0
        %4268 = vmatprep.subr.mxu0 0.0
        %4269 = vmatpush1.msra.mxu0 0.0
        %4270 = vmatprep.subr.mxu0 0.0
        %4271 = vmatpush1.msra.mxu0 0.0
        %4272 = vmatprep.subr.mxu0 0.0
        %4273 = vmatpush1.msra.mxu0 0.0
        %4274 = vmatprep.subr.mxu0 0.0
        %4275 = vmatpush1.msra.mxu0 0.0
        %4276 = vmatprep.subr.mxu0 0.0
        %4277 = vmatpush1.msra.mxu0 0.0
        %4278 = vmatprep.mubr.f32.mxu0 0.0
        %4279 = vmatmul.mubr.f32.gmra.mrb[0].mxu0 %v4212
        %v4280 = vpop.f32.mrb[0].mxu0
        %v4281 = vadd.f32 0.0, %v4280
        %v4282 = vpop.f32.mrb[0].mxu0
        %4283 = vdwg.mxu0
        %v4284 = vadd.f32 %v4035, %v4281
        %4285 = vrot.lane.b32.xlu0 %v2690, 104
        %v4286 = vpop.permute.xlu0 %4285
        %4287 = vrot.lane.b32.xlu0 %v2785, 104
        %v4288 = vpop.permute.xlu0 %4287
        %4289 = vrot.lane.b32.xlu0 %v2790, 104
        %v4290 = vpop.permute.xlu0 %4289
        %v4291 = vsel %vm639, %v4286, 0
        %v4293 = vsel %vm639, %v4288, 0
        %v4295 = vsel %vm639, %v4290, 0
        %4297 = vmatprep.subr.mxu0 0.0
        %4298 = vmatpush1.xpose.msra.mxu0 %v4293
        %4299 = vmatprep.subr.mxu0 0.0
        %4300 = vmatpush1.xpose.msra.mxu0 %v4295
        %4301 = vmatprep.subr.mxu0 0.0
        %4302 = vmatpush1.xpose.msra.mxu0 0.0
        %4303 = vmatprep.subr.mxu0 0.0
        %4304 = vmatpush1.xpose.msra.mxu0 0.0
        %4305 = vmatprep.subr.mxu0 0.0
        %4306 = vmatpush1.xpose.msra.mxu0 0.0
        %4307 = vmatprep.subr.mxu0 0.0
        %4308 = vmatpush1.xpose.msra.mxu0 0.0
        %4309 = vmatprep.subr.mxu0 0.0
        %4310 = vmatpush1.xpose.msra.mxu0 0.0
        %4311 = vmatprep.subr.mxu0 0.0
        %4312 = vmatpush1.xpose.msra.mxu0 0.0
        %4313 = vmatprep.subr.mxu0 0.0
        %4314 = vmatpush1.xpose.msra.mxu0 0.0
        %4315 = vmatprep.subr.mxu0 0.0
        %4316 = vmatpush1.xpose.msra.mxu0 0.0
        %4317 = vmatprep.subr.mxu0 0.0
        %4318 = vmatpush1.xpose.msra.mxu0 0.0
        %4319 = vmatprep.subr.mxu0 0.0
        %4320 = vmatpush1.xpose.msra.mxu0 0.0
        %4321 = vmatprep.subr.mxu0 0.0
        %4322 = vmatpush1.xpose.msra.mxu0 0.0
        %4323 = vmatprep.subr.mxu0 0.0
        %4324 = vmatpush1.xpose.msra.mxu0 0.0
        %4325 = vmatprep.subr.mxu0 0.0
        %4326 = vmatpush1.xpose.msra.mxu0 0.0
        %4327 = vmatprep.subr.mxu0 0.0
        %4328 = vmatpush1.xpose.msra.mxu0 0.0
        %4329 = vmatprep.subr.mxu0 0.0
        %4330 = vmatpush1.xpose.msra.mxu0 0.0
        %4331 = vmatprep.subr.mxu0 0.0
        %4332 = vmatpush1.xpose.msra.mxu0 0.0
        %4333 = vmatprep.subr.mxu0 0.0
        %4334 = vmatpush1.xpose.msra.mxu0 0.0
        %4335 = vmatprep.subr.mxu0 0.0
        %4336 = vmatpush1.xpose.msra.mxu0 0.0
        %4337 = vmatprep.subr.mxu0 0.0
        %4338 = vmatpush1.xpose.msra.mxu0 0.0
        %4339 = vmatprep.subr.mxu0 0.0
        %4340 = vmatpush1.xpose.msra.mxu0 0.0
        %4341 = vmatprep.subr.mxu0 0.0
        %4342 = vmatpush1.xpose.msra.mxu0 0.0
        %4343 = vmatprep.subr.mxu0 0.0
        %4344 = vmatpush1.xpose.msra.mxu0 0.0
        %4345 = vmatprep.subr.mxu0 0.0
        %4346 = vmatpush1.xpose.msra.mxu0 0.0
        %4347 = vmatprep.subr.mxu0 0.0
        %4348 = vmatpush1.xpose.msra.mxu0 0.0
        %4349 = vmatprep.subr.mxu0 0.0
        %4350 = vmatpush1.xpose.msra.mxu0 0.0
        %4351 = vmatprep.subr.mxu0 0.0
        %4352 = vmatpush1.xpose.msra.mxu0 0.0
        %4353 = vmatprep.subr.mxu0 0.0
        %4354 = vmatpush1.xpose.msra.mxu0 0.0
        %4355 = vmatprep.subr.mxu0 0.0
        %4356 = vmatpush1.xpose.msra.mxu0 0.0
        %4357 = vmatprep.subr.mxu0 0.0
        %4358 = vmatpush1.xpose.msra.mxu0 0.0
        %4359 = vmatprep.subr.mxu0 0.0
        %4360 = vmatpush1.xpose.msra.mxu0 0.0
        %4361 = vmatprep.mubr.f32.mxu0 0.0
        %4362 = vmatmul.mubr.f32.gmra.mrb[0].mxu0 %v4291
        %v4363 = vpop.f32.mrb[0].mxu0
        %v4364 = vadd.f32 0.0, %v4363
        %v4365 = vpop.f32.mrb[0].mxu0
        %4366 = vdwg.mxu0
        %v4367 = vmul.f32 %v4364, 0.5
        %v4368 = vadd.f32 %v4367, %v494
        %v4369 = vsel %vm2874, %v4368, -inf
        %4370 = vmax.xlane.f32.xlu0 %v4369
        %v4371 = vpop.xlane.xlu0 %4370
        %v4372 = vsub.f32 %v4368, %v4371
        %v4373 = vmul.f32 %v4372, 1.442695
        %v4374 = vpow.pop %v4373
        %v4375 = vsel %vm2874, %v4374, 0.0
        %4376 = vadd.xlane.f32.xlu0 %v4375
        %v4377 = vpop.xlane.xlu0 %4376
        %v4378 = vrcp.pop %v4377
        %v4379 = vmul.f32 %v4374, %v4378
        %4380 = vrot.lane.b32.xlu0 %v2785, 72
        %v4381 = vpop.permute.xlu0 %4380
        %4382 = vrot.lane.b32.xlu0 %v2790, 72
        %v4383 = vpop.permute.xlu0 %4382
        %v4386 = vsel %vm2874, %v4379, 0
        %v4388 = vsel %vm807, %v4383, 0
        %4390 = vmatprep.subr.mxu0 0.0
        %4391 = vmatpush1.msra.mxu0 %v4381
        %4392 = vmatprep.subr.mxu0 0.0
        %4393 = vmatpush1.msra.mxu0 %v4388
        %4394 = vmatprep.subr.mxu0 0.0
        %4395 = vmatpush1.msra.mxu0 0.0
        %4396 = vmatprep.subr.mxu0 0.0
        %4397 = vmatpush1.msra.mxu0 0.0
        %4398 = vmatprep.subr.mxu0 0.0
        %4399 = vmatpush1.msra.mxu0 0.0
        %4400 = vmatprep.subr.mxu0 0.0
        %4401 = vmatpush1.msra.mxu0 0.0
        %4402 = vmatprep.subr.mxu0 0.0
        %4403 = vmatpush1.msra.mxu0 0.0
        %4404 = vmatprep.subr.mxu0 0.0
        %4405 = vmatpush1.msra.mxu0 0.0
        %4406 = vmatprep.subr.mxu0 0.0
        %4407 = vmatpush1.msra.mxu0 0.0
        %4408 = vmatprep.subr.mxu0 0.0
        %4409 = vmatpush1.msra.mxu0 0.0
        %4410 = vmatprep.subr.mxu0 0.0
        %4411 = vmatpush1.msra.mxu0 0.0
        %4412 = vmatprep.subr.mxu0 0.0
        %4413 = vmatpush1.msra.mxu0 0.0
        %4414 = vmatprep.subr.mxu0 0.0
        %4415 = vmatpush1.msra.mxu0 0.0
        %4416 = vmatprep.subr.mxu0 0.0
        %4417 = vmatpush1.msra.mxu0 0.0
        %4418 = vmatprep.subr.mxu0 0.0
        %4419 = vmatpush1.msra.mxu0 0.0
        %4420 = vmatprep.subr.mxu0 0.0
        %4421 = vmatpush1.msra.mxu0 0.0
        %4422 = vmatprep.subr.mxu0 0.0
        %4423 = vmatpush1.msra.mxu0 0.0
        %4424 = vmatprep.subr.mxu0 0.0
        %4425 = vmatpush1.msra.mxu0 0.0
        %4426 = vmatprep.subr.mxu0 0.0
        %4427 = vmatpush1.msra.mxu0 0.0
        %4428 = vmatprep.subr.mxu0 0.0
        %4429 = vmatpush1.msra.mxu0 0.0
        %4430 = vmatprep.subr.mxu0 0.0
        %4431 = vmatpush1.msra.mxu0 0.0
        %4432 = vmatprep.subr.mxu0 0.0
        %4433 = vmatpush1.msra.mxu0 0.0
        %4434 = vmatprep.subr.mxu0 0.0
        %4435 = vmatpush1.msra.mxu0 0.0
        %4436 = vmatprep.subr.mxu0 0.0
        %4437 = vmatpush1.msra.mxu0 0.0
        %4438 = vmatprep.subr.mxu0 0.0
        %4439 = vmatpush1.msra.mxu0 0.0
        %4440 = vmatprep.subr.mxu0 0.0
        %4441 = vmatpush1.msra.mxu0 0.0
        %4442 = vmatprep.subr.mxu0 0.0
        %4443 = vmatpush1.msra.mxu0 0.0
        %4444 = vmatprep.subr.mxu0 0.0
        %4445 = vmatpush1.msra.mxu0 0.0
        %4446 = vmatprep.subr.mxu0 0.0
        %4447 = vmatpush1.msra.mxu0 0.0
        %4448 = vmatprep.subr.mxu0 0.0
        %4449 = vmatpush1.msra.mxu0 0.0
        %4450 = vmatprep.subr.mxu0 0.0
        %4451 = vmatpush1.msra.mxu0 0.0
        %4452 = vmatprep.subr.mxu0 0.0
        %4453 = vmatpush1.msra.mxu0 0.0
        %4454 = vmatprep.mubr.f32.mxu0 0.0
        %4455 = vmatmul.mubr.f32.gmra.mrb[0].mxu0 %v4386
        %v4456 = vpop.f32.mrb[0].mxu0
        %v4457 = vadd.f32 0.0, %v4456
        %v4458 = vpop.f32.mrb[0].mxu0
        %4459 = vdwg.mxu0
        %v4461 = vsel %vm639, %v4457, 0
        %4463 = vmatprep.subr.mxu0 0.0
        %4464 = vmatpush1.msra.mxu0 %v2279
        %4465 = vmatprep.subr.mxu0 0.0
        %4466 = vmatpush1.msra.mxu0 0.0
        %4467 = vmatprep.subr.mxu0 0.0
        %4468 = vmatpush1.msra.mxu0 0.0
        %4469 = vmatprep.subr.mxu0 0.0
        %4470 = vmatpush1.msra.mxu0 0.0
        %4471 = vmatprep.subr.mxu0 0.0
        %4472 = vmatpush1.msra.mxu0 0.0
        %4473 = vmatprep.subr.mxu0 0.0
        %4474 = vmatpush1.msra.mxu0 0.0
        %4475 = vmatprep.subr.mxu0 0.0
        %4476 = vmatpush1.msra.mxu0 0.0
        %4477 = vmatprep.subr.mxu0 0.0
        %4478 = vmatpush1.msra.mxu0 0.0
        %4479 = vmatprep.subr.mxu0 0.0
        %4480 = vmatpush1.msra.mxu0 0.0
        %4481 = vmatprep.subr.mxu0 0.0
        %4482 = vmatpush1.msra.mxu0 0.0
        %4483 = vmatprep.subr.mxu0 0.0
        %4484 = vmatpush1.msra.mxu0 0.0
        %4485 = vmatprep.subr.mxu0 0.0
        %4486 = vmatpush1.msra.mxu0 0.0
        %4487 = vmatprep.subr.mxu0 0.0
        %4488 = vmatpush1.msra.mxu0 0.0
        %4489 = vmatprep.subr.mxu0 0.0
        %4490 = vmatpush1.msra.mxu0 0.0
        %4491 = vmatprep.subr.mxu0 0.0
        %4492 = vmatpush1.msra.mxu0 0.0
        %4493 = vmatprep.subr.mxu0 0.0
        %4494 = vmatpush1.msra.mxu0 0.0
        %4495 = vmatprep.subr.mxu0 0.0
        %4496 = vmatpush1.msra.mxu0 0.0
        %4497 = vmatprep.subr.mxu0 0.0
        %4498 = vmatpush1.msra.mxu0 0.0
        %4499 = vmatprep.subr.mxu0 0.0
        %4500 = vmatpush1.msra.mxu0 0.0
        %4501 = vmatprep.subr.mxu0 0.0
        %4502 = vmatpush1.msra.mxu0 0.0
        %4503 = vmatprep.subr.mxu0 0.0
        %4504 = vmatpush1.msra.mxu0 0.0
        %4505 = vmatprep.subr.mxu0 0.0
        %4506 = vmatpush1.msra.mxu0 0.0
        %4507 = vmatprep.subr.mxu0 0.0
        %4508 = vmatpush1.msra.mxu0 0.0
        %4509 = vmatprep.subr.mxu0 0.0
        %4510 = vmatpush1.msra.mxu0 0.0
        %4511 = vmatprep.subr.mxu0 0.0
        %4512 = vmatpush1.msra.mxu0 0.0
        %4513 = vmatprep.subr.mxu0 0.0
        %4514 = vmatpush1.msra.mxu0 0.0
        %4515 = vmatprep.subr.mxu0 0.0
        %4516 = vmatpush1.msra.mxu0 0.0
        %4517 = vmatprep.subr.mxu0 0.0
        %4518 = vmatpush1.msra.mxu0 0.0
        %4519 = vmatprep.subr.mxu0 0.0
        %4520 = vmatpush1.msra.mxu0 0.0
        %4521 = vmatprep.subr.mxu0 0.0
        %4522 = vmatpush1.msra.mxu0 0.0
        %4523 = vmatprep.subr.mxu0 0.0
        %4524 = vmatpush1.msra.mxu0 0.0
        %4525 = vmatprep.subr.mxu0 0.0
        %4526 = vmatpush1.msra.mxu0 0.0
        %4527 = vmatprep.mubr.f32.mxu0 0.0
        %4528 = vmatmul.mubr.f32.gmra.mrb[0].mxu0 %v4461
        %v4529 = vpop.f32.mrb[0].mxu0
        %v4530 = vadd.f32 0.0, %v4529
        %v4531 = vpop.f32.mrb[0].mxu0
        %4532 = vdwg.mxu0
        %v4533 = vadd.f32 %v4284, %v4530
        %4534 = vrot.lane.b32.xlu0 %v2690, 100
        %v4535 = vpop.permute.xlu0 %4534
        %4536 = vrot.lane.b32.xlu0 %v2785, 100
        %v4537 = vpop.permute.xlu0 %4536
        %4538 = vrot.lane.b32.xlu0 %v2790, 100
        %v4539 = vpop.permute.xlu0 %4538
        %v4540 = vsel %vm639, %v4535, 0
        %v4542 = vsel %vm639, %v4537, 0
        %v4544 = vsel %vm639, %v4539, 0
        %4546 = vmatprep.subr.mxu0 0.0
        %4547 = vmatpush1.xpose.msra.mxu0 %v4542
        %4548 = vmatprep.subr.mxu0 0.0
        %4549 = vmatpush1.xpose.msra.mxu0 %v4544
        %4550 = vmatprep.subr.mxu0 0.0
        %4551 = vmatpush1.xpose.msra.mxu0 0.0
        %4552 = vmatprep.subr.mxu0 0.0
        %4553 = vmatpush1.xpose.msra.mxu0 0.0
        %4554 = vmatprep.subr.mxu0 0.0
        %4555 = vmatpush1.xpose.msra.mxu0 0.0
        %4556 = vmatprep.subr.mxu0 0.0
        %4557 = vmatpush1.xpose.msra.mxu0 0.0
        %4558 = vmatprep.subr.mxu0 0.0
        %4559 = vmatpush1.xpose.msra.mxu0 0.0
        %4560 = vmatprep.subr.mxu0 0.0
        %4561 = vmatpush1.xpose.msra.mxu0 0.0
        %4562 = vmatprep.subr.mxu0 0.0
        %4563 = vmatpush1.xpose.msra.mxu0 0.0
        %4564 = vmatprep.subr.mxu0 0.0
        %4565 = vmatpush1.xpose.msra.mxu0 0.0
        %4566 = vmatprep.subr.mxu0 0.0
        %4567 = vmatpush1.xpose.msra.mxu0 0.0
        %4568 = vmatprep.subr.mxu0 0.0
        %4569 = vmatpush1.xpose.msra.mxu0 0.0
        %4570 = vmatprep.subr.mxu0 0.0
        %4571 = vmatpush1.xpose.msra.mxu0 0.0
        %4572 = vmatprep.subr.mxu0 0.0
        %4573 = vmatpush1.xpose.msra.mxu0 0.0
        %4574 = vmatprep.subr.mxu0 0.0
        %4575 = vmatpush1.xpose.msra.mxu0 0.0
        %4576 = vmatprep.subr.mxu0 0.0
        %4577 = vmatpush1.xpose.msra.mxu0 0.0
        %4578 = vmatprep.subr.mxu0 0.0
        %4579 = vmatpush1.xpose.msra.mxu0 0.0
        %4580 = vmatprep.subr.mxu0 0.0
        %4581 = vmatpush1.xpose.msra.mxu0 0.0
        %4582 = vmatprep.subr.mxu0 0.0
        %4583 = vmatpush1.xpose.msra.mxu0 0.0
        %4584 = vmatprep.subr.mxu0 0.0
        %4585 = vmatpush1.xpose.msra.mxu0 0.0
        %4586 = vmatprep.subr.mxu0 0.0
        %4587 = vmatpush1.xpose.msra.mxu0 0.0
        %4588 = vmatprep.subr.mxu0 0.0
        %4589 = vmatpush1.xpose.msra.mxu0 0.0
        %4590 = vmatprep.subr.mxu0 0.0
        %4591 = vmatpush1.xpose.msra.mxu0 0.0
        %4592 = vmatprep.subr.mxu0 0.0
        %4593 = vmatpush1.xpose.msra.mxu0 0.0
        %4594 = vmatprep.subr.mxu0 0.0
        %4595 = vmatpush1.xpose.msra.mxu0 0.0
        %4596 = vmatprep.subr.mxu0 0.0
        %4597 = vmatpush1.xpose.msra.mxu0 0.0
        %4598 = vmatprep.subr.mxu0 0.0
        %4599 = vmatpush1.xpose.msra.mxu0 0.0
        %4600 = vmatprep.subr.mxu0 0.0
        %4601 = vmatpush1.xpose.msra.mxu0 0.0
        %4602 = vmatprep.subr.mxu0 0.0
        %4603 = vmatpush1.xpose.msra.mxu0 0.0
        %4604 = vmatprep.subr.mxu0 0.0
        %4605 = vmatpush1.xpose.msra.mxu0 0.0
        %4606 = vmatprep.subr.mxu0 0.0
        %4607 = vmatpush1.xpose.msra.mxu0 0.0
        %4608 = vmatprep.subr.mxu0 0.0
        %4609 = vmatpush1.xpose.msra.mxu0 0.0
        %4610 = vmatprep.mubr.f32.mxu0 0.0
        %4611 = vmatmul.mubr.f32.gmra.mrb[0].mxu0 %v4540
        %v4612 = vpop.f32.mrb[0].mxu0
        %v4613 = vadd.f32 0.0, %v4612
        %v4614 = vpop.f32.mrb[0].mxu0
        %4615 = vdwg.mxu0
        %v4616 = vmul.f32 %v4613, 0.5
        %v4617 = vadd.f32 %v4616, %v494
        %v4618 = vsel %vm2874, %v4617, -inf
        %4619 = vmax.xlane.f32.xlu0 %v4618
        %v4620 = vpop.xlane.xlu0 %4619
        %v4621 = vsub.f32 %v4617, %v4620
        %v4622 = vmul.f32 %v4621, 1.442695
        %v4623 = vpow.pop %v4622
        %v4624 = vsel %vm2874, %v4623, 0.0
        %4625 = vadd.xlane.f32.xlu0 %v4624
        %v4626 = vpop.xlane.xlu0 %4625
        %v4627 = vrcp.pop %v4626
        %v4628 = vmul.f32 %v4623, %v4627
        %4629 = vrot.lane.b32.xlu0 %v2785, 68
        %v4630 = vpop.permute.xlu0 %4629
        %4631 = vrot.lane.b32.xlu0 %v2790, 68
        %v4632 = vpop.permute.xlu0 %4631
        %v4635 = vsel %vm2874, %v4628, 0
        %v4637 = vsel %vm807, %v4632, 0
        %4639 = vmatprep.subr.mxu0 0.0
        %4640 = vmatpush1.msra.mxu0 %v4630
        %4641 = vmatprep.subr.mxu0 0.0
        %4642 = vmatpush1.msra.mxu0 %v4637
        %4643 = vmatprep.subr.mxu0 0.0
        %4644 = vmatpush1.msra.mxu0 0.0
        %4645 = vmatprep.subr.mxu0 0.0
        %4646 = vmatpush1.msra.mxu0 0.0
        %4647 = vmatprep.subr.mxu0 0.0
        %4648 = vmatpush1.msra.mxu0 0.0
        %4649 = vmatprep.subr.mxu0 0.0
        %4650 = vmatpush1.msra.mxu0 0.0
        %4651 = vmatprep.subr.mxu0 0.0
        %4652 = vmatpush1.msra.mxu0 0.0
        %4653 = vmatprep.subr.mxu0 0.0
        %4654 = vmatpush1.msra.mxu0 0.0
        %4655 = vmatprep.subr.mxu0 0.0
        %4656 = vmatpush1.msra.mxu0 0.0
        %4657 = vmatprep.subr.mxu0 0.0
        %4658 = vmatpush1.msra.mxu0 0.0
        %4659 = vmatprep.subr.mxu0 0.0
        %4660 = vmatpush1.msra.mxu0 0.0
        %4661 = vmatprep.subr.mxu0 0.0
        %4662 = vmatpush1.msra.mxu0 0.0
        %4663 = vmatprep.subr.mxu0 0.0
        %4664 = vmatpush1.msra.mxu0 0.0
        %4665 = vmatprep.subr.mxu0 0.0
        %4666 = vmatpush1.msra.mxu0 0.0
        %4667 = vmatprep.subr.mxu0 0.0
        %4668 = vmatpush1.msra.mxu0 0.0
        %4669 = vmatprep.subr.mxu0 0.0
        %4670 = vmatpush1.msra.mxu0 0.0
        %4671 = vmatprep.subr.mxu0 0.0
        %4672 = vmatpush1.msra.mxu0 0.0
        %4673 = vmatprep.subr.mxu0 0.0
        %4674 = vmatpush1.msra.mxu0 0.0
        %4675 = vmatprep.subr.mxu0 0.0
        %4676 = vmatpush1.msra.mxu0 0.0
        %4677 = vmatprep.subr.mxu0 0.0
        %4678 = vmatpush1.msra.mxu0 0.0
        %4679 = vmatprep.subr.mxu0 0.0
        %4680 = vmatpush1.msra.mxu0 0.0
        %4681 = vmatprep.subr.mxu0 0.0
        %4682 = vmatpush1.msra.mxu0 0.0
        %4683 = vmatprep.subr.mxu0 0.0
        %4684 = vmatpush1.msra.mxu0 0.0
        %4685 = vmatprep.subr.mxu0 0.0
        %4686 = vmatpush1.msra.mxu0 0.0
        %4687 = vmatprep.subr.mxu0 0.0
        %4688 = vmatpush1.msra.mxu0 0.0
        %4689 = vmatprep.subr.mxu0 0.0
        %4690 = vmatpush1.msra.mxu0 0.0
        %4691 = vmatprep.subr.mxu0 0.0
        %4692 = vmatpush1.msra.mxu0 0.0
        %4693 = vmatprep.subr.mxu0 0.0
        %4694 = vmatpush1.msra.mxu0 0.0
        %4695 = vmatprep.subr.mxu0 0.0
        %4696 = vmatpush1.msra.mxu0 0.0
        %4697 = vmatprep.subr.mxu0 0.0
        %4698 = vmatpush1.msra.mxu0 0.0
        %4699 = vmatprep.subr.mxu0 0.0
        %4700 = vmatpush1.msra.mxu0 0.0
        %4701 = vmatprep.subr.mxu0 0.0
        %4702 = vmatpush1.msra.mxu0 0.0
        %4703 = vmatprep.mubr.f32.mxu0 0.0
        %4704 = vmatmul.mubr.f32.gmra.mrb[0].mxu0 %v4635
        %v4705 = vpop.f32.mrb[0].mxu0
        %v4706 = vadd.f32 0.0, %v4705
        %v4707 = vpop.f32.mrb[0].mxu0
        %4708 = vdwg.mxu0
        %v4710 = vsel %vm639, %v4706, 0
        %4712 = vmatprep.subr.mxu0 0.0
        %4713 = vmatpush1.msra.mxu0 %v2523
        %4714 = vmatprep.subr.mxu0 0.0
        %4715 = vmatpush1.msra.mxu0 0.0
        %4716 = vmatprep.subr.mxu0 0.0
        %4717 = vmatpush1.msra.mxu0 0.0
        %4718 = vmatprep.subr.mxu0 0.0
        %4719 = vmatpush1.msra.mxu0 0.0
        %4720 = vmatprep.subr.mxu0 0.0
        %4721 = vmatpush1.msra.mxu0 0.0
        %4722 = vmatprep.subr.mxu0 0.0
        %4723 = vmatpush1.msra.mxu0 0.0
        %4724 = vmatprep.subr.mxu0 0.0
        %4725 = vmatpush1.msra.mxu0 0.0
        %4726 = vmatprep.subr.mxu0 0.0
        %4727 = vmatpush1.msra.mxu0 0.0
        %4728 = vmatprep.subr.mxu0 0.0
        %4729 = vmatpush1.msra.mxu0 0.0
        %4730 = vmatprep.subr.mxu0 0.0
        %4731 = vmatpush1.msra.mxu0 0.0
        %4732 = vmatprep.subr.mxu0 0.0
        %4733 = vmatpush1.msra.mxu0 0.0
        %4734 = vmatprep.subr.mxu0 0.0
        %4735 = vmatpush1.msra.mxu0 0.0
        %4736 = vmatprep.subr.mxu0 0.0
        %4737 = vmatpush1.msra.mxu0 0.0
        %4738 = vmatprep.subr.mxu0 0.0
        %4739 = vmatpush1.msra.mxu0 0.0
        %4740 = vmatprep.subr.mxu0 0.0
        %4741 = vmatpush1.msra.mxu0 0.0
        %4742 = vmatprep.subr.mxu0 0.0
        %4743 = vmatpush1.msra.mxu0 0.0
        %4744 = vmatprep.subr.mxu0 0.0
        %4745 = vmatpush1.msra.mxu0 0.0
        %4746 = vmatprep.subr.mxu0 0.0
        %4747 = vmatpush1.msra.mxu0 0.0
        %4748 = vmatprep.subr.mxu0 0.0
        %4749 = vmatpush1.msra.mxu0 0.0
        %4750 = vmatprep.subr.mxu0 0.0
        %4751 = vmatpush1.msra.mxu0 0.0
        %4752 = vmatprep.subr.mxu0 0.0
        %4753 = vmatpush1.msra.mxu0 0.0
        %4754 = vmatprep.subr.mxu0 0.0
        %4755 = vmatpush1.msra.mxu0 0.0
        %4756 = vmatprep.subr.mxu0 0.0
        %4757 = vmatpush1.msra.mxu0 0.0
        %4758 = vmatprep.subr.mxu0 0.0
        %4759 = vmatpush1.msra.mxu0 0.0
        %4760 = vmatprep.subr.mxu0 0.0
        %4761 = vmatpush1.msra.mxu0 0.0
        %4762 = vmatprep.subr.mxu0 0.0
        %4763 = vmatpush1.msra.mxu0 0.0
        %4764 = vmatprep.subr.mxu0 0.0
        %4765 = vmatpush1.msra.mxu0 0.0
        %4766 = vmatprep.subr.mxu0 0.0
        %4767 = vmatpush1.msra.mxu0 0.0
        %4768 = vmatprep.subr.mxu0 0.0
        %4769 = vmatpush1.msra.mxu0 0.0
        %4770 = vmatprep.subr.mxu0 0.0
        %4771 = vmatpush1.msra.mxu0 0.0
        %4772 = vmatprep.subr.mxu0 0.0
        %4773 = vmatpush1.msra.mxu0 0.0
        %4774 = vmatprep.subr.mxu0 0.0
        %4775 = vmatpush1.msra.mxu0 0.0
        %4776 = vmatprep.mubr.f32.mxu0 0.0
        %4777 = vmatmul.mubr.f32.gmra.mrb[0].mxu0 %v4710
        %v4778 = vpop.f32.mrb[0].mxu0
        %v4779 = vadd.f32 0.0, %v4778
        %v4780 = vpop.f32.mrb[0].mxu0
        %4781 = vdwg.mxu0
        %v4782 = vadd.f32 %v4533, %v4779
        %v4783 = vadd.f32 %v4782, %v2596
        %v4784 = vsel %vm532, %v4783, 0.0
        %4785 = vadd.xlane.f32.xlu0 %v4784
        %v4786 = vpop.xlane.xlu0 %4785
        %v4787 = vmul.f32 %v4786, %v536
        %v4788 = vsub.f32 %v4783, %v4787
        %v4789 = vmul.f32 %v4788, %v4788
        %v4790 = vsel %vm532, %v4789, 0.0
        %4791 = vadd.xlane.f32.xlu0 %v4790
        %v4792 = vpop.xlane.xlu0 %4791
        %v4793 = vmul.f32 %v4792, %v536
        %v4794 = vadd.f32 %v4793, 1e-05
        %v4795 = vrsqrt.pop %v4794
        %v4796 = vmul.f32 %v4788, %v4795
        %v4797 = vlaneseq
        %v4798 = vshrl.u32 %v4797, 7
        %v4799 = vsub.s32 4, %v4798
        %v4800 = vrot.slane %v495, %v4799
        %v4801 = vmul.f32 %v4796, %v4800
        %v4802 = vlaneseq
        %v4803 = vshrl.u32 %v4802, 7
        %v4804 = vsub.s32 5, %v4803
        %v4805 = vrot.slane %v495, %v4804
        %v4806 = vadd.f32 %v4801, %v4805
        %v4808 = vlaneseq
        %v4809 = vshrl.u32 %v4808, 7
        %v4810 = vsub.s32 0, %v4809
        %v4811 = vrot.slane %v514, %v4810
        %v4814 = vsel %vm532, %v4806, 0
        %4816 = vmatprep.subr.mxu0 0.0
        %4817 = vmatpush1.msra.mxu0 %v510
        %4818 = vmatprep.subr.mxu0 0.0
        %4819 = vmatpush1.msra.mxu0 %v511
        %4820 = vmatprep.subr.mxu0 0.0
        %4821 = vmatpush1.msra.mxu0 %v512
        %4822 = vmatprep.subr.mxu0 0.0
        %4823 = vmatpush1.msra.mxu0 %v513
        %4824 = vmatprep.subr.mxu0 0.0
        %4825 = vmatpush1.msra.mxu0 0.0
        %4826 = vmatprep.subr.mxu0 0.0
        %4827 = vmatpush1.msra.mxu0 0.0
        %4828 = vmatprep.subr.mxu0 0.0
        %4829 = vmatpush1.msra.mxu0 0.0
        %4830 = vmatprep.subr.mxu0 0.0
        %4831 = vmatpush1.msra.mxu0 0.0
        %4832 = vmatprep.subr.mxu0 0.0
        %4833 = vmatpush1.msra.mxu0 0.0
        %4834 = vmatprep.subr.mxu0 0.0
        %4835 = vmatpush1.msra.mxu0 0.0
        %4836 = vmatprep.subr.mxu0 0.0
        %4837 = vmatpush1.msra.mxu0 0.0
        %4838 = vmatprep.subr.mxu0 0.0
        %4839 = vmatpush1.msra.mxu0 0.0
        %4840 = vmatprep.subr.mxu0 0.0
        %4841 = vmatpush1.msra.mxu0 0.0
        %4842 = vmatprep.subr.mxu0 0.0
        %4843 = vmatpush1.msra.mxu0 0.0
        %4844 = vmatprep.subr.mxu0 0.0
        %4845 = vmatpush1.msra.mxu0 0.0
        %4846 = vmatprep.subr.mxu0 0.0
        %4847 = vmatpush1.msra.mxu0 0.0
        %4848 = vmatprep.subr.mxu0 0.0
        %4849 = vmatpush1.msra.mxu0 0.0
        %4850 = vmatprep.subr.mxu0 0.0
        %4851 = vmatpush1.msra.mxu0 0.0
        %4852 = vmatprep.subr.mxu0 0.0
        %4853 = vmatpush1.msra.mxu0 0.0
        %4854 = vmatprep.subr.mxu0 0.0
        %4855 = vmatpush1.msra.mxu0 0.0
        %4856 = vmatprep.subr.mxu0 0.0
        %4857 = vmatpush1.msra.mxu0 0.0
        %4858 = vmatprep.subr.mxu0 0.0
        %4859 = vmatpush1.msra.mxu0 0.0
        %4860 = vmatprep.subr.mxu0 0.0
        %4861 = vmatpush1.msra.mxu0 0.0
        %4862 = vmatprep.subr.mxu0 0.0
        %4863 = vmatpush1.msra.mxu0 0.0
        %4864 = vmatprep.subr.mxu0 0.0
        %4865 = vmatpush1.msra.mxu0 0.0
        %4866 = vmatprep.subr.mxu0 0.0
        %4867 = vmatpush1.msra.mxu0 0.0
        %4868 = vmatprep.subr.mxu0 0.0
        %4869 = vmatpush1.msra.mxu0 0.0
        %4870 = vmatprep.subr.mxu0 0.0
        %4871 = vmatpush1.msra.mxu0 0.0
        %4872 = vmatprep.subr.mxu0 0.0
        %4873 = vmatpush1.msra.mxu0 0.0
        %4874 = vmatprep.subr.mxu0 0.0
        %4875 = vmatpush1.msra.mxu0 0.0
        %4876 = vmatprep.subr.mxu0 0.0
        %4877 = vmatpush1.msra.mxu0 0.0
        %4878 = vmatprep.subr.mxu0 0.0
        %4879 = vmatpush1.msra.mxu0 0.0
        %4880 = vmatprep.mubr.f32.mxu0 0.0
        %4881 = vmatmul.mubr.f32.gmra.mrb[0].mxu0 %v4814
        %v4882 = vpop.f32.mrb[0].mxu0
        %v4883 = vadd.f32 %v4811, %v4882
        %v4884 = vpop.f32.mrb[0].mxu0
        %4885 = vdwg.mxu0
        %v4886 = vmax.f32 %v4883, 0.0
        %v4888 = vlaneseq
        %v4889 = vshrl.u32 %v4888, 7
        %v4890 = vsub.s32 0, %v4889
        %v4891 = vrot.slane %v531, %v4890
        %4893 = vmatprep.subr.mxu0 0.0
        %4894 = vmatpush1.msra.mxu0 %v515
        %4895 = vmatprep.subr.mxu0 0.0
        %4896 = vmatpush1.msra.mxu0 %v516
        %4897 = vmatprep.subr.mxu0 0.0
        %4898 = vmatpush1.msra.mxu0 %v517
        %4899 = vmatprep.subr.mxu0 0.0
        %4900 = vmatpush1.msra.mxu0 %v518
        %4901 = vmatprep.subr.mxu0 0.0
        %4902 = vmatpush1.msra.mxu0 %v519
        %4903 = vmatprep.subr.mxu0 0.0
        %4904 = vmatpush1.msra.mxu0 %v520
        %4905 = vmatprep.subr.mxu0 0.0
        %4906 = vmatpush1.msra.mxu0 %v521
        %4907 = vmatprep.subr.mxu0 0.0
        %4908 = vmatpush1.msra.mxu0 %v522
        %4909 = vmatprep.subr.mxu0 0.0
        %4910 = vmatpush1.msra.mxu0 %v523
        %4911 = vmatprep.subr.mxu0 0.0
        %4912 = vmatpush1.msra.mxu0 %v524
        %4913 = vmatprep.subr.mxu0 0.0
        %4914 = vmatpush1.msra.mxu0 %v525
        %4915 = vmatprep.subr.mxu0 0.0
        %4916 = vmatpush1.msra.mxu0 %v526
        %4917 = vmatprep.subr.mxu0 0.0
        %4918 = vmatpush1.msra.mxu0 %v527
        %4919 = vmatprep.subr.mxu0 0.0
        %4920 = vmatpush1.msra.mxu0 %v528
        %4921 = vmatprep.subr.mxu0 0.0
        %4922 = vmatpush1.msra.mxu0 %v529
        %4923 = vmatprep.subr.mxu0 0.0
        %4924 = vmatpush1.msra.mxu0 %v530
        %4925 = vmatprep.subr.mxu0 0.0
        %4926 = vmatpush1.msra.mxu0 0.0
        %4927 = vmatprep.subr.mxu0 0.0
        %4928 = vmatpush1.msra.mxu0 0.0
        %4929 = vmatprep.subr.mxu0 0.0
        %4930 = vmatpush1.msra.mxu0 0.0
        %4931 = vmatprep.subr.mxu0 0.0
        %4932 = vmatpush1.msra.mxu0 0.0
        %4933 = vmatprep.subr.mxu0 0.0
        %4934 = vmatpush1.msra.mxu0 0.0
        %4935 = vmatprep.subr.mxu0 0.0
        %4936 = vmatpush1.msra.mxu0 0.0
        %4937 = vmatprep.subr.mxu0 0.0
        %4938 = vmatpush1.msra.mxu0 0.0
        %4939 = vmatprep.subr.mxu0 0.0
        %4940 = vmatpush1.msra.mxu0 0.0
        %4941 = vmatprep.subr.mxu0 0.0
        %4942 = vmatpush1.msra.mxu0 0.0
        %4943 = vmatprep.subr.mxu0 0.0
        %4944 = vmatpush1.msra.mxu0 0.0
        %4945 = vmatprep.subr.mxu0 0.0
        %4946 = vmatpush1.msra.mxu0 0.0
        %4947 = vmatprep.subr.mxu0 0.0
        %4948 = vmatpush1.msra.mxu0 0.0
        %4949 = vmatprep.subr.mxu0 0.0
        %4950 = vmatpush1.msra.mxu0 0.0
        %4951 = vmatprep.subr.mxu0 0.0
        %4952 = vmatpush1.msra.mxu0 0.0
        %4953 = vmatprep.subr.mxu0 0.0
        %4954 = vmatpush1.msra.mxu0 0.0
        %4955 = vmatprep.subr.mxu0 0.0
        %4956 = vmatpush1.msra.mxu0 0.0
        %4957 = vmatprep.mubr.f32.mxu0 0.0
        %4958 = vmatmul.mubr.f32.gmra.mrb[0].mxu0 %v4886
        %v4959 = vpop.f32.mrb[0].mxu0
        %v4960 = vadd.f32 %v4891, %v4959
        %v4961 = vpop.f32.mrb[0].mxu0
        %4962 = vdwg.mxu0
        %v4963 = vadd.f32 %v4960, %v4783
        %4964 = vst.msk [vmem:[%s472] sm:$0xff] %vm532, %v4963
        %s4965 = sand.u32 %s328, 1
        %s4966 = scalar_lea.sflag [#allocation3], %s4965
        %s4967 = sand.u32 %s328, 1
        %s4968 = smul.addr %s4967, 8
        %s4969 = scalar_lea.vmem [#allocation2], %s4968
        // Predicated region
        $region73: #{tpu_custom_call.1} parent=71 // pred_check
          %p4970 = pneg %p338
        $region74: #{tpu_custom_call.1} parent=71 // pred_check_branch
          %4972 = sbr.rel (%p4970) target = $region76
        $region75: #{tpu_custom_call.1} parent=71 // pred_region
          %s4974 = ssub.s32 128, 128
          %4975 = vsyncadd %s4966, %s4974
          %s4976 = smul.addr %s27, 128
          %s4977 = scalar_lea.hbm %s13, %s4976
          %s4979 = sshll.u32 %s4969, 4
          %s4980 = int_to_ptr.vmem [resolvable:$true] %s4979
          %4982 = dma.vmem_to_hbm [thread:$0]  %s4980, 128, %s4977, %s4966
        $region76: #{tpu_custom_call.1} parent=71 // pred_fallthru
          _
      $region72: #{tpu_custom_call.1} parent=5 // pred_fallthru
        _
      %p4983 = scmp.le.s32.totalorder 2, %s22
      // Predicated region
      $region77: #{tpu_custom_call.1} parent=5 // pred_check
        %p4984 = pneg %p4983
      $region78: #{tpu_custom_call.1} parent=5 // pred_check_branch
        %4986 = sbr.rel (%p4984) target = $region80
      $region79: #{tpu_custom_call.1} parent=5 // pred_region
        %s4987 = ssub.s32 %s22, 2
        // Predicated region
        $region81: #{tpu_custom_call.1} parent=79 // pred_check
          %p4988 = pneg %p344
        $region82: #{tpu_custom_call.1} parent=79 // pred_check_branch
          %4990 = sbr.rel (%p4988) target = $region84
        $region83: #{tpu_custom_call.1} parent=79 // pred_region
          %s4991 = sand.u32 %s329, 1
          %s4992 = scalar_lea.sflag [#allocation3], %s4991
          %s4993 = sand.u32 %s329, 1
          %s4994 = smul.addr %s4993, 8
          %s4995 = scalar_lea.vmem [#allocation2], %s4994
          %4996 = dma.done %s4992, 128
        $region84: #{tpu_custom_call.1} parent=79 // pred_fallthru
          _
      $region80: #{tpu_custom_call.1} parent=5 // pred_fallthru
        _
    $region6: #{tpu_custom_call.1} parent=1 // loop_footer
      %s26 = sadd.s32 1, %s22
    $region7: #{tpu_custom_call.1} parent=1 // loop_footer_branch
      %21 = sbr.rel target = $region3
    $region8: #{tpu_custom_call.1} parent=1 // loop_exit
      _
    %4997 = vsyncpa [#allocation3], 1
    %s4998 = scalar_lea.sflag [#allocation3], 1
    %4999 = vsyncpa %s4998, 1

</llo_original>
